<compile_context>
chip_gen: v6e
topology: v6e:2x2x1
jax: 0.10.0
libtpu: 0.0.40
codegen_flags: <defaults>
</compile_context>

<pallas_src>
import functools
import math

import jax
import jax.numpy as jnp
from jax import lax
from jax.experimental import pallas as pl
from jax.experimental.pallas import tpu as pltpu


# ----------------------------- fused kernel -----------------------------

def _attn_block_kernel(x_ref, gamma_ref, beta_ref, gmat_ref, wqv_ref, bqv_ref,
                       wkt_ref, bk_ref, wp_ref, bp_ref, o_ref,
                       xt_s, q_s, k_s, v_s, *, eps, inv_n, C, tq):
    i = pl.program_id(1)

    # ---- Phase 1 (once per batch image): GroupNorm(32) + fused 1x1 QKV into VMEM scratch ----
    @pl.when(i == 0)
    def _():
        xb = x_ref[0]                                          # [C, HW] f32 (NCHW-native)
        s1 = jnp.sum(xb, axis=1, keepdims=True)                # [C, 1] per-channel sum
        s2 = jnp.sum(xb * xb, axis=1, keepdims=True)           # [C, 1] per-channel sum of sq
        s12 = jnp.concatenate([s1, s2], axis=1)                # [C, 2]  -> one MXU push
        gs = jnp.dot(gmat_ref[...], s12, preferred_element_type=jnp.float32)
        mean = gs[:, 0:1] * inv_n                              # [C, 1] (constant per group)
        var = jnp.maximum(gs[:, 1:2] * inv_n - mean * mean, 0.0)
        h_chw = (xb - mean) * lax.rsqrt(var + eps) * gamma_ref[...] + beta_ref[...]

        xt_s[...] = xb.T                                       # token-major residual copy
        h_t = h_chw.T.astype(jnp.bfloat16)                     # [HW, C] bf16 (1 xpose / batch)
        qv = jnp.dot(h_t, wqv_ref[...],
                     preferred_element_type=jnp.float32) + bqv_ref[...]   # [HW, 2C]
        q_s[...] = qv[:, :C].astype(jnp.bfloat16)              # already scaled by C**-0.5
        v_s[...] = qv[:, C:].astype(jnp.bfloat16)
        kk = jnp.dot(wkt_ref[...], h_chw.astype(jnp.bfloat16),
                     preferred_element_type=jnp.float32) + bk_ref[...]    # [C, HW]
        k_s[...] = kk.astype(jnp.bfloat16)                     # K stored pre-transposed

    # ---- Phase 2 (every step): attention for one query tile + out-proj + residual ----
    start = pl.multiple_of(i * tq, tq)
    q_t = q_s[pl.ds(start, tq), :]                             # [tq, C] bf16
    s = jnp.dot(q_t, k_s[...], preferred_element_type=jnp.float32)        # [tq, HW] f32
    m = jnp.max(s, axis=-1, keepdims=True)
    p = jnp.exp(s - m)
    l = jnp.sum(p, axis=-1, keepdims=True)
    h = jnp.dot(p.astype(jnp.bfloat16), v_s[...],
                preferred_element_type=jnp.float32)            # [tq, C] (unnormalized)
    h = h * pl.reciprocal(l, approx=True)                      # deferred softmax normalization
    out = jnp.dot(h.astype(jnp.bfloat16), wp_ref[...],
                  preferred_element_type=jnp.float32) + bp_ref[...]       # output projection
    out = out + xt_s[pl.ds(start, tq), :]                      # residual add (token-major, f32)
    o_ref[0] = out.T                                           # write NCHW-native [C, tq] tile


# ----------------------------- wrapper -----------------------------

def attn_block(x, params, *, num_groups=32, eps=1e-5):
    """AttnBlock forward. x: [B, C, H, W] (NCHW, like PyTorch)."""
    B, C, H, W = x.shape
    assert C % num_groups == 0, "GroupNorm(32, C) requires C % 32 == 0"
    HW = H * W
    cg = C // num_groups

    # Adaptive query-tile size: single tile per batch when the image is small.
    if HW <= 512 or HW % 128 != 0:
        tq = HW
    elif HW % 512 == 0:
        tq = 512
    elif HW % 256 == 0:
        tq = 256
    else:
        tq = 128
    n_qt = HW // tq

    scale = float(C) ** (-0.5)
    x_chw = x.reshape(B, C, HW).astype(jnp.float32)            # free view of NCHW

    gamma = params["gn_g"].reshape(C, 1).astype(jnp.float32)
    beta = params["gn_b"].reshape(C, 1).astype(jnp.float32)
    gidx = jnp.arange(C) // cg
    gmat = (gidx[:, None] == gidx[None, :]).astype(jnp.float32)            # [C, C] block-diag
    wqv = jnp.concatenate([params["wq"] * scale, params["wv"]],
                          axis=1).astype(jnp.bfloat16)                     # [C, 2C]
    bqv = jnp.concatenate([params["bq"] * scale,
                           params["bv"]]).reshape(1, 2 * C).astype(jnp.float32)
    wkt = params["wk"].T.astype(jnp.bfloat16)                              # [Cout, Cin]
    bk = params["bk"].reshape(C, 1).astype(jnp.float32)
    wp = params["wp"].astype(jnp.bfloat16)
    bp = params["bp"].reshape(1, C).astype(jnp.float32)

    # Explicit VMEM budget (blocks + scratch + intermediates, with headroom).
    est = (2 * C * HW * 4          # x slab (double-buffered)
           + HW * C * 4            # residual scratch (f32)
           + 3 * HW * C * 2        # q/k/v scratch (bf16)
           + 4 * C * tq * 4        # output tiles
           + 2 * tq * HW * 4       # logits / exp intermediates
           + 8 * C * C * 2         # weights
           + (2 << 20))
    vmem_limit = int(min(96 * 2 ** 20, max(32 * 2 ** 20, 2 * est)))

    kern = functools.partial(_attn_block_kernel, eps=eps,
                             inv_n=1.0 / (cg * HW), C=C, tq=tq)
    out = pl.pallas_call(
        kern,
        out_shape=jax.ShapeDtypeStruct((B, C, HW), jnp.float32),
        grid=(B, n_qt),
        in_specs=[
            pl.BlockSpec((1, C, HW), lambda b, i: (b, 0, 0)),   # x (whole image, fetched once/b)
            pl.BlockSpec((C, 1), lambda b, i: (0, 0)),          # gamma
            pl.BlockSpec((C, 1), lambda b, i: (0, 0)),          # beta
            pl.BlockSpec((C, C), lambda b, i: (0, 0)),          # group-aggregation matrix
            pl.BlockSpec((C, 2 * C), lambda b, i: (0, 0)),      # [Wq*scale | Wv]
            pl.BlockSpec((1, 2 * C), lambda b, i: (0, 0)),      # [bq*scale | bv]
            pl.BlockSpec((C, C), lambda b, i: (0, 0)),          # Wk^T
            pl.BlockSpec((C, 1), lambda b, i: (0, 0)),          # bk
            pl.BlockSpec((C, C), lambda b, i: (0, 0)),          # Wproj
            pl.BlockSpec((1, C), lambda b, i: (0, 0)),          # bproj
        ],
        out_specs=pl.BlockSpec((1, C, tq), lambda b, i: (b, 0, i)),
        scratch_shapes=[
            pltpu.VMEM((HW, C), jnp.float32),    # x token-major (exact f32 residual)
            pltpu.VMEM((HW, C), jnp.bfloat16),   # q (pre-scaled)
            pltpu.VMEM((C, HW), jnp.bfloat16),   # k (pre-transposed)
            pltpu.VMEM((HW, C), jnp.bfloat16),   # v
        ],
        compiler_params=pltpu.CompilerParams(
            dimension_semantics=("parallel", "arbitrary"),
            vmem_limit_bytes=vmem_limit),
    )(x_chw, gamma, beta, gmat, wqv, bqv, wkt, bk, wp, bp)

    return out.reshape(B, C, H, W)


# ----------------------------- pure-JAX f32 reference -----------------------------

def _ref_attn_block(x, params, num_groups=32, eps=1e-5):
    B, C, H, W = x.shape
    HW = H * W
    cg = C // num_groups
    xg = x.reshape(B, num_groups, cg * H * W)
    mean = jnp.mean(xg, axis=-1, keepdims=True)
    var = jnp.mean(xg * xg, axis=-1, keepdims=True) - mean * mean
    hn = ((xg - mean) / jnp.sqrt(var + eps)).reshape(B, C, H, W)
    h = hn * params["gn_g"].reshape(1, C, 1, 1) + params["gn_b"].reshape(1, C, 1, 1)
    ht = h.reshape(B, C, HW).transpose(0, 2, 1)                         # [B, HW, C]
    q = ht @ params["wq"] + params["bq"]
    k = ht @ params["wk"] + params["bk"]
    v = ht @ params["wv"] + params["bv"]
    w = jnp.einsum("bqc,bkc->bqk", q, k) * (float(C) ** (-0.5))
    w = jax.nn.softmax(w, axis=-1)
    hout = jnp.einsum("bqk,bkc->bqc", w, v) @ params["wp"] + params["bp"]
    return x + hout.transpose(0, 2, 1).reshape(B, C, H, W)


# ----------------------------- deterministic parameter init -----------------------------

def init_params(key, C):
    ks = jax.random.split(key, 8)
    bound = 1.0 / math.sqrt(C)   # Conv2d(1x1) default-style uniform init

    def w(kk):
        return jax.random.uniform(kk, (C, C), jnp.float32, -bound, bound)  # [Cin, Cout]

    def b(kk):
        return jax.random.uniform(kk, (C,), jnp.float32, -bound, bound)

    return {
        "gn_g": jnp.ones((C,), jnp.float32),
        "gn_b": jnp.zeros((C,), jnp.float32),
        "wq": w(ks[0]), "bq": b(ks[1]),
        "wk": w(ks[2]), "bk": b(ks[3]),
        "wv": w(ks[4]), "bv": b(ks[5]),
        "wp": w(ks[6]), "bp": b(ks[7]),
    }


# ----------------------------- main -----------------------------

if __name__ == "__main__":
    B, C, H, W = 2, 128, 16, 16     # in_ch must be divisible by 32 (GroupNorm(32, in_ch))

    key = jax.random.PRNGKey(0)
    kx, kp = jax.random.split(key)
    x = jax.random.normal(kx, (B, C, H, W), jnp.float32)
    params = init_params(kp, C)

    fwd = jax.jit(attn_block)
    out = jax.block_until_ready(fwd(x, params))

    assert out.shape == (B, C, H, W)
    assert bool(jnp.all(jnp.isfinite(out)))
    ref = _ref_attn_block(x, params)
    err = float(jnp.max(jnp.abs(out - ref)))
    assert err < 1e-1, f"max abs error vs f32 reference too large: {err}"
    print("KERNEL_OK")
</pallas_src>

<mosaic_0001>
module attributes {stable_mosaic.version = 11 : i64} {
  func.func @_attn_block_kernel(%arg0: i32, %arg1: i32, %arg2: memref<1x128x256xf32, #tpu.memory_space<vmem>>, %arg3: memref<128x1xf32, #tpu.memory_space<vmem>>, %arg4: memref<128x1xf32, #tpu.memory_space<vmem>>, %arg5: memref<128x128xf32, #tpu.memory_space<vmem>>, %arg6: memref<128x256xbf16, #tpu.memory_space<vmem>>, %arg7: memref<1x256xf32, #tpu.memory_space<vmem>>, %arg8: memref<128x128xbf16, #tpu.memory_space<vmem>>, %arg9: memref<128x1xf32, #tpu.memory_space<vmem>>, %arg10: memref<128x128xbf16, #tpu.memory_space<vmem>>, %arg11: memref<1x128xf32, #tpu.memory_space<vmem>>, %arg12: memref<1x128x256xf32, #tpu.memory_space<vmem>>, %arg13: memref<256x128xf32, #tpu.memory_space<vmem>>, %arg14: memref<256x128xbf16, #tpu.memory_space<vmem>>, %arg15: memref<128x256xbf16, #tpu.memory_space<vmem>>, %arg16: memref<256x128xbf16, #tpu.memory_space<vmem>>) attributes {dimension_semantics = [#tpu.dimension_semantics<parallel>, #tpu.dimension_semantics<arbitrary>], iteration_bounds = array<i64: 2, 1>, scalar_prefetch = 0 : i64, scratch_operands = 4 : i64, tpu.core_type = #tpu.core_type<tc>, window_params = [{transform_indices = @transform_0, window_bounds = array<i64: 1, 128, 256>}, {pipeline_mode = #tpu.pipeline_mode<synchronous>, transform_indices = @transform_1, window_bounds = array<i64: 128, 1>}, {pipeline_mode = #tpu.pipeline_mode<synchronous>, transform_indices = @transform_2, window_bounds = array<i64: 128, 1>}, {pipeline_mode = #tpu.pipeline_mode<synchronous>, transform_indices = @transform_3, window_bounds = array<i64: 128, 128>}, {pipeline_mode = #tpu.pipeline_mode<synchronous>, transform_indices = @transform_4, window_bounds = array<i64: 128, 256>}, {pipeline_mode = #tpu.pipeline_mode<synchronous>, transform_indices = @transform_5, window_bounds = array<i64: 1, 256>}, {pipeline_mode = #tpu.pipeline_mode<synchronous>, transform_indices = @transform_6, window_bounds = array<i64: 128, 128>}, {pipeline_mode = #tpu.pipeline_mode<synchronous>, transform_indices = @transform_7, window_bounds = array<i64: 128, 1>}, {pipeline_mode = #tpu.pipeline_mode<synchronous>, transform_indices = @transform_8, window_bounds = array<i64: 128, 128>}, {pipeline_mode = #tpu.pipeline_mode<synchronous>, transform_indices = @transform_9, window_bounds = array<i64: 1, 128>}, {transform_indices = @transform_10, window_bounds = array<i64: 1, 128, 256>}]} {
    %c0_i32 = arith.constant 0 : i32
    %0 = arith.cmpi eq, %arg1, %c0_i32 : i32
    %1 = arith.extui %0 : i1 to i32
    %c0_i32_0 = arith.constant 0 : i32
    %2 = arith.cmpi ne, %1, %c0_i32_0 : i32
    scf.if %2 {
      %c0_17 = arith.constant 0 : index
      %c0_18 = arith.constant 0 : index
      %c0_19 = arith.constant 0 : index
      %35 = vector.load %arg2[%c0_17, %c0_18, %c0_19] : memref<1x128x256xf32, #tpu.memory_space<vmem>>, vector<1x128x256xf32>
      %36 = vector.shape_cast %35 : vector<1x128x256xf32> to vector<128x256xf32>
      %cst_20 = arith.constant dense<0.000000e+00> : vector<128xf32>
      %37 = vector.multi_reduction <add>, %36, %cst_20 [1] : vector<128x256xf32> to vector<128xf32>
      %38 = vector.shape_cast %37 : vector<128xf32> to vector<128x1xf32>
      %39 = arith.mulf %36, %36 : vector<128x256xf32>
      %cst_21 = arith.constant dense<0.000000e+00> : vector<128xf32>
      %40 = vector.multi_reduction <add>, %39, %cst_21 [1] : vector<128x256xf32> to vector<128xf32>
      %41 = vector.shape_cast %40 : vector<128xf32> to vector<128x1xf32>
      %42 = tpu.concatenate %38, %41 in 1 : vector<128x1xf32>, vector<128x1xf32> -> vector<128x2xf32>
      %c0_22 = arith.constant 0 : index
      %c0_23 = arith.constant 0 : index
      %43 = vector.load %arg5[%c0_22, %c0_23] : memref<128x128xf32, #tpu.memory_space<vmem>>, vector<128x128xf32>
      %cst_24 = arith.constant dense<0.000000e+00> : vector<128x2xf32>
      %44 = tpu.matmul %43, %42, %cst_24 {dimension_numbers = #tpu.dot_dimension_numbers<[1], [0], [0], [1], [0, 0, 1, 1], [], []>} : vector<128x128xf32>, vector<128x2xf32>, vector<128x2xf32> -> vector<128x2xf32>
      %45 = vector.extract_strided_slice %44 {offsets = [0, 0], sizes = [128, 1], strides = [1, 1]} : vector<128x2xf32> to vector<128x1xf32>
      %cst_25 = arith.constant 9.765625E-4 : f32
      %46 = vector.broadcast %cst_25 : f32 to vector<128x1xf32>
      %47 = arith.mulf %45, %46 : vector<128x1xf32>
      %48 = vector.extract_strided_slice %44 {offsets = [0, 1], sizes = [128, 1], strides = [1, 1]} : vector<128x2xf32> to vector<128x1xf32>
      %cst_26 = arith.constant 9.765625E-4 : f32
      %49 = vector.broadcast %cst_26 : f32 to vector<128x1xf32>
      %50 = arith.mulf %48, %49 : vector<128x1xf32>
      %51 = arith.mulf %47, %47 : vector<128x1xf32>
      %52 = arith.subf %50, %51 : vector<128x1xf32>
      %cst_27 = arith.constant 0.000000e+00 : f32
      %53 = vector.broadcast %cst_27 : f32 to vector<128x1xf32>
      %54 = arith.maximumf %52, %53 : vector<128x1xf32>
      %55 = vector.broadcast %47 : vector<128x1xf32> to vector<128x256xf32>
      %56 = arith.subf %36, %55 : vector<128x256xf32>
      %cst_28 = arith.constant 9.99999974E-6 : f32
      %57 = vector.broadcast %cst_28 : f32 to vector<128x1xf32>
      %58 = arith.addf %54, %57 : vector<128x1xf32>
      %59 = math.rsqrt %58 : vector<128x1xf32>
      %60 = vector.broadcast %59 : vector<128x1xf32> to vector<128x256xf32>
      %61 = arith.mulf %56, %60 : vector<128x256xf32>
      %c0_29 = arith.constant 0 : index
      %c0_30 = arith.constant 0 : index
      %62 = vector.load %arg3[%c0_29, %c0_30] : memref<128x1xf32, #tpu.memory_space<vmem>>, vector<128x1xf32>
      %63 = vector.broadcast %62 : vector<128x1xf32> to vector<128x256xf32>
      %64 = arith.mulf %61, %63 : vector<128x256xf32>
      %c0_31 = arith.constant 0 : index
      %c0_32 = arith.constant 0 : index
      %65 = vector.load %arg4[%c0_31, %c0_32] : memref<128x1xf32, #tpu.memory_space<vmem>>, vector<128x1xf32>
      %66 = vector.broadcast %65 : vector<128x1xf32> to vector<128x256xf32>
      %67 = arith.addf %64, %66 : vector<128x256xf32>
      %68 = tpu.transpose %36, [1, 0] : vector<128x256xf32> -> vector<256x128xf32>
      %c0_33 = arith.constant 0 : index
      %c0_34 = arith.constant 0 : index
      %69 = vector.load %arg13[%c0_33, %c0_34] : memref<256x128xf32, #tpu.memory_space<vmem>>, vector<256x128xf32>
      tpu.vector_store %arg13[%c0_33, %c0_34], %68 {strides = array<i32>} : memref<256x128xf32, #tpu.memory_space<vmem>>, vector<256x128xf32>,
      %70 = tpu.transpose %67, [1, 0] : vector<128x256xf32> -> vector<256x128xf32>
      %71 = arith.truncf %70 : vector<256x128xf32> to vector<256x128xbf16>
      %c0_35 = arith.constant 0 : index
      %c0_36 = arith.constant 0 : index
      %72 = vector.load %arg6[%c0_35, %c0_36] : memref<128x256xbf16, #tpu.memory_space<vmem>>, vector<128x256xbf16>
      %cst_37 = arith.constant dense<0.000000e+00> : vector<256x256xf32>
      %73 = tpu.matmul %71, %72, %cst_37 {dimension_numbers = #tpu.dot_dimension_numbers<[1], [0], [0], [1], [0, 0, 1, 1], [], []>} : vector<256x128xbf16>, vector<128x256xbf16>, vector<256x256xf32> -> vector<256x256xf32>
      %c0_38 = arith.constant 0 : index
      %c0_39 = arith.constant 0 : index
      %74 = vector.load %arg7[%c0_38, %c0_39] : memref<1x256xf32, #tpu.memory_space<vmem>>, vector<1x256xf32>
      %75 = vector.broadcast %74 : vector<1x256xf32> to vector<256x256xf32>
      %76 = arith.addf %73, %75 : vector<256x256xf32>
      %77 = vector.extract_strided_slice %76 {offsets = [0, 0], sizes = [256, 128], strides = [1, 1]} : vector<256x256xf32> to vector<256x128xf32>
      %78 = arith.truncf %77 : vector<256x128xf32> to vector<256x128xbf16>
      %c0_40 = arith.constant 0 : index
      %c0_41 = arith.constant 0 : index
      %79 = vector.load %arg14[%c0_40, %c0_41] : memref<256x128xbf16, #tpu.memory_space<vmem>>, vector<256x128xbf16>
      tpu.vector_store %arg14[%c0_40, %c0_41], %78 {strides = array<i32>} : memref<256x128xbf16, #tpu.memory_space<vmem>>, vector<256x128xbf16>,
      %80 = vector.extract_strided_slice %76 {offsets = [0, 128], sizes = [256, 128], strides = [1, 1]} : vector<256x256xf32> to vector<256x128xf32>
      %81 = arith.truncf %80 : vector<256x128xf32> to vector<256x128xbf16>
      %c0_42 = arith.constant 0 : index
      %c0_43 = arith.constant 0 : index
      %82 = vector.load %arg16[%c0_42, %c0_43] : memref<256x128xbf16, #tpu.memory_space<vmem>>, vector<256x128xbf16>
      tpu.vector_store %arg16[%c0_42, %c0_43], %81 {strides = array<i32>} : memref<256x128xbf16, #tpu.memory_space<vmem>>, vector<256x128xbf16>,
      %c0_44 = arith.constant 0 : index
      %c0_45 = arith.constant 0 : index
      %83 = vector.load %arg8[%c0_44, %c0_45] : memref<128x128xbf16, #tpu.memory_space<vmem>>, vector<128x128xbf16>
      %84 = arith.truncf %67 : vector<128x256xf32> to vector<128x256xbf16>
      %cst_46 = arith.constant dense<0.000000e+00> : vector<128x256xf32>
      %85 = tpu.matmul %83, %84, %cst_46 {dimension_numbers = #tpu.dot_dimension_numbers<[1], [0], [0], [1], [0, 0, 1, 1], [], []>} : vector<128x128xbf16>, vector<128x256xbf16>, vector<128x256xf32> -> vector<128x256xf32>
      %c0_47 = arith.constant 0 : index
      %c0_48 = arith.constant 0 : index
      %86 = vector.load %arg9[%c0_47, %c0_48] : memref<128x1xf32, #tpu.memory_space<vmem>>, vector<128x1xf32>
      %87 = vector.broadcast %86 : vector<128x1xf32> to vector<128x256xf32>
      %88 = arith.addf %85, %87 : vector<128x256xf32>
      %89 = arith.truncf %88 : vector<128x256xf32> to vector<128x256xbf16>
      %c0_49 = arith.constant 0 : index
      %c0_50 = arith.constant 0 : index
      %90 = vector.load %arg15[%c0_49, %c0_50] : memref<128x256xbf16, #tpu.memory_space<vmem>>, vector<128x256xbf16>
      tpu.vector_store %arg15[%c0_49, %c0_50], %89 {strides = array<i32>} : memref<128x256xbf16, #tpu.memory_space<vmem>>, vector<128x256xbf16>,
    } else {
    }
    %c256_i32 = arith.constant 256 : i32
    %3 = arith.muli %arg1, %c256_i32 : i32
    %4 = tpu.assume_multiple %3, 256 : i32
    %5 = arith.index_cast %4 : i32 to index
    %c0 = arith.constant 0 : index
    %6 = vector.load %arg14[%5, %c0] : memref<256x128xbf16, #tpu.memory_space<vmem>>, vector<256x128xbf16>
    %c0_1 = arith.constant 0 : index
    %c0_2 = arith.constant 0 : index
    %7 = vector.load %arg15[%c0_1, %c0_2] : memref<128x256xbf16, #tpu.memory_space<vmem>>, vector<128x256xbf16>
    %cst = arith.constant dense<0.000000e+00> : vector<256x256xf32>
    %8 = tpu.matmul %6, %7, %cst {dimension_numbers = #tpu.dot_dimension_numbers<[1], [0], [0], [1], [0, 0, 1, 1], [], []>} : vector<256x128xbf16>, vector<128x256xbf16>, vector<256x256xf32> -> vector<256x256xf32>
    %cst_3 = arith.constant dense<0xFF800000> : vector<256xf32>
    %9 = vector.multi_reduction <maximumf>, %8, %cst_3 [1] : vector<256x256xf32> to vector<256xf32>
    %10 = vector.shape_cast %9 : vector<256xf32> to vector<256x1xf32>
    %11 = vector.broadcast %10 : vector<256x1xf32> to vector<256x256xf32>
    %12 = arith.subf %8, %11 : vector<256x256xf32>
    %13 = math.exp %12 : vector<256x256xf32>
    %cst_4 = arith.constant dense<0.000000e+00> : vector<256xf32>
    %14 = vector.multi_reduction <add>, %13, %cst_4 [1] : vector<256x256xf32> to vector<256xf32>
    %15 = vector.shape_cast %14 : vector<256xf32> to vector<256x1xf32>
    %16 = arith.truncf %13 : vector<256x256xf32> to vector<256x256xbf16>
    %c0_5 = arith.constant 0 : index
    %c0_6 = arith.constant 0 : index
    %17 = vector.load %arg16[%c0_5, %c0_6] : memref<256x128xbf16, #tpu.memory_space<vmem>>, vector<256x128xbf16>
    %cst_7 = arith.constant dense<0.000000e+00> : vector<256x128xf32>
    %18 = tpu.matmul %16, %17, %cst_7 {dimension_numbers = #tpu.dot_dimension_numbers<[1], [0], [0], [1], [0, 0, 1, 1], [], []>} : vector<256x256xbf16>, vector<256x128xbf16>, vector<256x128xf32> -> vector<256x128xf32>
    %19 = tpu.reciprocal %15 {approx = true} : vector<256x1xf32> -> vector<256x1xf32>
    %20 = vector.broadcast %19 : vector<256x1xf32> to vector<256x128xf32>
    %21 = arith.mulf %18, %20 : vector<256x128xf32>
    %22 = arith.truncf %21 : vector<256x128xf32> to vector<256x128xbf16>
    %c0_8 = arith.constant 0 : index
    %c0_9 = arith.constant 0 : index
    %23 = vector.load %arg10[%c0_8, %c0_9] : memref<128x128xbf16, #tpu.memory_space<vmem>>, vector<128x128xbf16>
    %cst_10 = arith.constant dense<0.000000e+00> : vector<256x128xf32>
    %24 = tpu.matmul %22, %23, %cst_10 {dimension_numbers = #tpu.dot_dimension_numbers<[1], [0], [0], [1], [0, 0, 1, 1], [], []>} : vector<256x128xbf16>, vector<128x128xbf16>, vector<256x128xf32> -> vector<256x128xf32>
    %c0_11 = arith.constant 0 : index
    %c0_12 = arith.constant 0 : index
    %25 = vector.load %arg11[%c0_11, %c0_12] : memref<1x128xf32, #tpu.memory_space<vmem>>, vector<1x128xf32>
    %26 = vector.broadcast %25 : vector<1x128xf32> to vector<256x128xf32>
    %27 = arith.addf %24, %26 : vector<256x128xf32>
    %28 = arith.index_cast %4 : i32 to index
    %c0_13 = arith.constant 0 : index
    %29 = vector.load %arg13[%28, %c0_13] : memref<256x128xf32, #tpu.memory_space<vmem>>, vector<256x128xf32>
    %30 = arith.addf %27, %29 : vector<256x128xf32>
    %31 = tpu.transpose %30, [1, 0] : vector<256x128xf32> -> vector<128x256xf32>
    %c0_14 = arith.constant 0 : index
    %c0_15 = arith.constant 0 : index
    %c0_16 = arith.constant 0 : index
    %32 = vector.load %arg12[%c0_14, %c0_15, %c0_16] : memref<1x128x256xf32, #tpu.memory_space<vmem>>, vector<1x128x256xf32>
    %33 = vector.shape_cast %32 : vector<1x128x256xf32> to vector<128x256xf32>
    %34 = vector.shape_cast %31 : vector<128x256xf32> to vector<1x128x256xf32>
    tpu.vector_store %arg12[%c0_14, %c0_15, %c0_16], %34 {strides = array<i32>} : memref<1x128x256xf32, #tpu.memory_space<vmem>>, vector<1x128x256xf32>,
    return
  }
  func.func @transform_0(%arg0: i32, %arg1: i32) -> (i32, i32, i32) {
    %c0_i32 = arith.constant 0 : i32
    %c0_i32_0 = arith.constant 0 : i32
    %c0_i32_1 = arith.constant 0 : i32
    return %arg0, %c0_i32, %c0_i32_0 : i32, i32, i32
  }
  func.func @transform_1(%arg0: i32, %arg1: i32) -> (i32, i32) {
    %c0_i32 = arith.constant 0 : i32
    %c0_i32_0 = arith.constant 0 : i32
    %c0_i32_1 = arith.constant 0 : i32
    return %c0_i32, %c0_i32_0 : i32, i32
  }
  func.func @transform_2(%arg0: i32, %arg1: i32) -> (i32, i32) {
    %c0_i32 = arith.constant 0 : i32
    %c0_i32_0 = arith.constant 0 : i32
    %c0_i32_1 = arith.constant 0 : i32
    return %c0_i32, %c0_i32_0 : i32, i32
  }
  func.func @transform_3(%arg0: i32, %arg1: i32) -> (i32, i32) {
    %c0_i32 = arith.constant 0 : i32
    %c0_i32_0 = arith.constant 0 : i32
    %c0_i32_1 = arith.constant 0 : i32
    return %c0_i32, %c0_i32_0 : i32, i32
  }
  func.func @transform_4(%arg0: i32, %arg1: i32) -> (i32, i32) {
    %c0_i32 = arith.constant 0 : i32
    %c0_i32_0 = arith.constant 0 : i32
    %c0_i32_1 = arith.constant 0 : i32
    return %c0_i32, %c0_i32_0 : i32, i32
  }
  func.func @transform_5(%arg0: i32, %arg1: i32) -> (i32, i32) {
    %c0_i32 = arith.constant 0 : i32
    %c0_i32_0 = arith.constant 0 : i32
    %c0_i32_1 = arith.constant 0 : i32
    return %c0_i32, %c0_i32_0 : i32, i32
  }
  func.func @transform_6(%arg0: i32, %arg1: i32) -> (i32, i32) {
    %c0_i32 = arith.constant 0 : i32
    %c0_i32_0 = arith.constant 0 : i32
    %c0_i32_1 = arith.constant 0 : i32
    return %c0_i32, %c0_i32_0 : i32, i32
  }
  func.func @transform_7(%arg0: i32, %arg1: i32) -> (i32, i32) {
    %c0_i32 = arith.constant 0 : i32
    %c0_i32_0 = arith.constant 0 : i32
    %c0_i32_1 = arith.constant 0 : i32
    return %c0_i32, %c0_i32_0 : i32, i32
  }
  func.func @transform_8(%arg0: i32, %arg1: i32) -> (i32, i32) {
    %c0_i32 = arith.constant 0 : i32
    %c0_i32_0 = arith.constant 0 : i32
    %c0_i32_1 = arith.constant 0 : i32
    return %c0_i32, %c0_i32_0 : i32, i32
  }
  func.func @transform_9(%arg0: i32, %arg1: i32) -> (i32, i32) {
    %c0_i32 = arith.constant 0 : i32
    %c0_i32_0 = arith.constant 0 : i32
    %c0_i32_1 = arith.constant 0 : i32
    return %c0_i32, %c0_i32_0 : i32, i32
  }
  func.func @transform_10(%arg0: i32, %arg1: i32) -> (i32, i32, i32) {
    %c0_i32 = arith.constant 0 : i32
    %c0_i32_0 = arith.constant 0 : i32
    return %arg0, %c0_i32, %arg1 : i32, i32, i32
  }
}

</mosaic_0001>

<llo_original>
// kernel: attn_block.1
$region0: #{attn_block.1}
  #allocation0 [shape = 'u32[]', space=smem, size = 0x4, offset = 0x4, fixed_abs, tag = 'smem constant byte address 0x4 - core index']
  #allocation1 [shape = 'u32[144,128]{1,0:T(1,128)}', space=vmem, size = 0x12000, scoped, tag = 'internal scratch']
  #allocation2 [shape = 'f32[256,128]{1,0:T(8,128)}', space=vmem, size = 0x20000, scoped, tag = 'scratch operand']
  #allocation3 [shape = 'bf16[256,128]{1,0:T(8,128)(2,1)}', space=vmem, size = 0x10000, scoped, tag = 'scratch operand']
  #allocation4 [shape = 'bf16[128,256]{1,0:T(8,128)(2,1)}', space=vmem, size = 0x10000, scoped, tag = 'scratch operand']
  #allocation5 [shape = 'bf16[256,128]{1,0:T(8,128)(2,1)}', space=vmem, size = 0x10000, scoped, tag = 'scratch operand']
  %s0 = inlined_call_operand.vmem [shape: f32[2,128,256], index: 0, kind: input, shape index: {}]
  %s1 = inlined_call_operand.vmem [shape: f32[128,1], index: 1, kind: input, shape index: {}]
  %s2 = inlined_call_operand.vmem [shape: f32[128,1], index: 2, kind: input, shape index: {}]
  %s3 = inlined_call_operand.vmem [shape: f32[128,128], index: 3, kind: input, shape index: {}]
  %s4 = inlined_call_operand.vmem [shape: bf16[128,256], index: 4, kind: input, shape index: {}]
  %s5 = inlined_call_operand.vmem [shape: f32[1,256], index: 5, kind: input, shape index: {}]
  %s6 = inlined_call_operand.vmem [shape: bf16[128,128], index: 6, kind: input, shape index: {}]
  %s7 = inlined_call_operand.vmem [shape: f32[128,1], index: 7, kind: input, shape index: {}]
  %s8 = inlined_call_operand.vmem [shape: bf16[128,128], index: 8, kind: input, shape index: {}]
  %s9 = inlined_call_operand.vmem [shape: f32[1,128], index: 9, kind: input, shape index: {}]
  %s10 = inlined_call_operand.vmem [shape: f32[2,128,256], index: 10, kind: output, shape index: {}]
  %s11 = sld [smem:[#allocation0]]
  $region77: #{attn_block.1} parent=0
    _
  %s13 = ssub.s32 1, %s11
  %s14 = scalar_select 0, %s13, %s11
  loop: start=0, step=1, limit=4
  $region2: #{attn_block.1} parent=0 // loop_pre_header
    _
  $region3: #{attn_block.1} parent=0 // loop_header
    %s16 = sphi 0, %s20
    %p17 = scmp.ge.s32.totalorder %s16, 4
    %s23 = sphi 0, %s35
    %s24 = sphi 0, %s31
    %s25 = sphi 0, %s23
    %s26 = sphi 0, %s24
    %s27 = sphi 0, %s25
    %s28 = sphi 0, %s26
    %s38 = sphi 0, %s40
    %s41 = sphi 0, %s38
    %s42 = sphi 0, %s41
    %s58 = sphi 0, %s42
    %s62 = sphi 0, %s62
    %s64 = sphi 0, %s62
    %s65 = sphi 0, %s64
    %s79 = sphi 0, %s65
    %s83 = sphi 0, %s83
    %s85 = sphi 0, %s83
    %s86 = sphi 0, %s85
    %s100 = sphi 0, %s86
    %s104 = sphi 0, %s104
    %s106 = sphi 0, %s104
    %s107 = sphi 0, %s106
    %s121 = sphi 0, %s107
    %s125 = sphi 0, %s125
    %s127 = sphi 0, %s125
    %s128 = sphi 0, %s127
    %s142 = sphi 0, %s128
    %s146 = sphi 0, %s146
    %s148 = sphi 0, %s146
    %s149 = sphi 0, %s148
    %s163 = sphi 0, %s149
    %s167 = sphi 0, %s167
    %s169 = sphi 0, %s167
    %s170 = sphi 0, %s169
    %s184 = sphi 0, %s170
    %s188 = sphi 0, %s188
    %s190 = sphi 0, %s188
    %s191 = sphi 0, %s190
    %s205 = sphi 0, %s191
    %s209 = sphi 0, %s209
    %s211 = sphi 0, %s209
    %s212 = sphi 0, %s211
    %s226 = sphi 0, %s212
    %s230 = sphi 0, %s230
    %s232 = sphi 0, %s230
    %s233 = sphi 0, %s232
    %s247 = sphi 0, %s233
    %s255 = sphi 0, %s257
    %s258 = sphi 0, %s255
    %s259 = sphi 0, %s258
    %s275 = sphi 0, %s259
  $region4: #{attn_block.1} parent=0 // loop_header_branch
    %19 = sbr.rel (%p17) target = $region8
  $region5: #{attn_block.1} parent=0 // loop_body
    %s21 = ssub.s32 %s16, 1
    %s22 = ssub.s32 %s16, 2
    %s29 = sadd.s32 1, %s24
    %p30 = scmp.ge.s32.totalorder %s29, 1
    %s31 = scalar_select %p30, 0, %s29
    %s32 = sadd.s32 1, %s23
    %s33 = scalar_select %p30, %s32, %s23
    %p34 = scmp.ge.s32.totalorder %s33, 2
    %s35 = scalar_select %p34, 0, %s33
    %s36 = ssub.s32 %s23, %s35
    %p37 = scmp.eq.s32.totalorder %s36, 0
    %s39 = sadd.s32 %s38, 1
    %s40 = scalar_select %p37, %s38, %s39
    %p43 = pneg %p37
    %p44 = scmp.eq.s32.totalorder %s16, 1
    %p45 = por %p43, %p44
    %p46 = scmp.ne.s32.totalorder %s38, %s41
    %p47 = scmp.eq.s32.totalorder %s16, 0
    %p48 = por %p46, %p47
    %p49 = scmp.ne.s32.totalorder %s38, %s41
    %p50 = scmp.eq.s32.totalorder %s21, 1
    %p51 = por %p49, %p50
    %p52 = scmp.ne.s32.totalorder %s41, %s42
    %p53 = scmp.eq.s32.totalorder %s21, 0
    %p54 = por %p52, %p53
    %p55 = scmp.ne.s32.totalorder %s41, %s42
    %p56 = scmp.eq.s32.totalorder %s22, 1
    %p57 = por %p55, %p56
    %p59 = scmp.ne.s32.totalorder %s42, %s58
    %p60 = scmp.eq.s32.totalorder %s22, 0
    %p61 = por %p59, %p60
    %s63 = sadd.s32 %s62, 1
    %p66 = scmp.eq.s32.totalorder %s16, 1
    %p67 = scmp.ne.s32.totalorder %s62, %s64
    %p68 = scmp.eq.s32.totalorder %s16, 0
    %p69 = por %p67, %p68
    %p70 = scmp.ne.s32.totalorder %s62, %s64
    %p71 = scmp.eq.s32.totalorder %s21, 1
    %p72 = por %p70, %p71
    %p73 = scmp.ne.s32.totalorder %s64, %s65
    %p74 = scmp.eq.s32.totalorder %s21, 0
    %p75 = por %p73, %p74
    %p76 = scmp.ne.s32.totalorder %s64, %s65
    %p77 = scmp.eq.s32.totalorder %s22, 1
    %p78 = por %p76, %p77
    %p80 = scmp.ne.s32.totalorder %s65, %s79
    %p81 = scmp.eq.s32.totalorder %s22, 0
    %p82 = por %p80, %p81
    %s84 = sadd.s32 %s83, 1
    %p87 = scmp.eq.s32.totalorder %s16, 1
    %p88 = scmp.ne.s32.totalorder %s83, %s85
    %p89 = scmp.eq.s32.totalorder %s16, 0
    %p90 = por %p88, %p89
    %p91 = scmp.ne.s32.totalorder %s83, %s85
    %p92 = scmp.eq.s32.totalorder %s21, 1
    %p93 = por %p91, %p92
    %p94 = scmp.ne.s32.totalorder %s85, %s86
    %p95 = scmp.eq.s32.totalorder %s21, 0
    %p96 = por %p94, %p95
    %p97 = scmp.ne.s32.totalorder %s85, %s86
    %p98 = scmp.eq.s32.totalorder %s22, 1
    %p99 = por %p97, %p98
    %p101 = scmp.ne.s32.totalorder %s86, %s100
    %p102 = scmp.eq.s32.totalorder %s22, 0
    %p103 = por %p101, %p102
    %s105 = sadd.s32 %s104, 1
    %p108 = scmp.eq.s32.totalorder %s16, 1
    %p109 = scmp.ne.s32.totalorder %s104, %s106
    %p110 = scmp.eq.s32.totalorder %s16, 0
    %p111 = por %p109, %p110
    %p112 = scmp.ne.s32.totalorder %s104, %s106
    %p113 = scmp.eq.s32.totalorder %s21, 1
    %p114 = por %p112, %p113
    %p115 = scmp.ne.s32.totalorder %s106, %s107
    %p116 = scmp.eq.s32.totalorder %s21, 0
    %p117 = por %p115, %p116
    %p118 = scmp.ne.s32.totalorder %s106, %s107
    %p119 = scmp.eq.s32.totalorder %s22, 1
    %p120 = por %p118, %p119
    %p122 = scmp.ne.s32.totalorder %s107, %s121
    %p123 = scmp.eq.s32.totalorder %s22, 0
    %p124 = por %p122, %p123
    %s126 = sadd.s32 %s125, 1
    %p129 = scmp.eq.s32.totalorder %s16, 1
    %p130 = scmp.ne.s32.totalorder %s125, %s127
    %p131 = scmp.eq.s32.totalorder %s16, 0
    %p132 = por %p130, %p131
    %p133 = scmp.ne.s32.totalorder %s125, %s127
    %p134 = scmp.eq.s32.totalorder %s21, 1
    %p135 = por %p133, %p134
    %p136 = scmp.ne.s32.totalorder %s127, %s128
    %p137 = scmp.eq.s32.totalorder %s21, 0
    %p138 = por %p136, %p137
    %p139 = scmp.ne.s32.totalorder %s127, %s128
    %p140 = scmp.eq.s32.totalorder %s22, 1
    %p141 = por %p139, %p140
    %p143 = scmp.ne.s32.totalorder %s128, %s142
    %p144 = scmp.eq.s32.totalorder %s22, 0
    %p145 = por %p143, %p144
    %s147 = sadd.s32 %s146, 1
    %p150 = scmp.eq.s32.totalorder %s16, 1
    %p151 = scmp.ne.s32.totalorder %s146, %s148
    %p152 = scmp.eq.s32.totalorder %s16, 0
    %p153 = por %p151, %p152
    %p154 = scmp.ne.s32.totalorder %s146, %s148
    %p155 = scmp.eq.s32.totalorder %s21, 1
    %p156 = por %p154, %p155
    %p157 = scmp.ne.s32.totalorder %s148, %s149
    %p158 = scmp.eq.s32.totalorder %s21, 0
    %p159 = por %p157, %p158
    %p160 = scmp.ne.s32.totalorder %s148, %s149
    %p161 = scmp.eq.s32.totalorder %s22, 1
    %p162 = por %p160, %p161
    %p164 = scmp.ne.s32.totalorder %s149, %s163
    %p165 = scmp.eq.s32.totalorder %s22, 0
    %p166 = por %p164, %p165
    %s168 = sadd.s32 %s167, 1
    %p171 = scmp.eq.s32.totalorder %s16, 1
    %p172 = scmp.ne.s32.totalorder %s167, %s169
    %p173 = scmp.eq.s32.totalorder %s16, 0
    %p174 = por %p172, %p173
    %p175 = scmp.ne.s32.totalorder %s167, %s169
    %p176 = scmp.eq.s32.totalorder %s21, 1
    %p177 = por %p175, %p176
    %p178 = scmp.ne.s32.totalorder %s169, %s170
    %p179 = scmp.eq.s32.totalorder %s21, 0
    %p180 = por %p178, %p179
    %p181 = scmp.ne.s32.totalorder %s169, %s170
    %p182 = scmp.eq.s32.totalorder %s22, 1
    %p183 = por %p181, %p182
    %p185 = scmp.ne.s32.totalorder %s170, %s184
    %p186 = scmp.eq.s32.totalorder %s22, 0
    %p187 = por %p185, %p186
    %s189 = sadd.s32 %s188, 1
    %p192 = scmp.eq.s32.totalorder %s16, 1
    %p193 = scmp.ne.s32.totalorder %s188, %s190
    %p194 = scmp.eq.s32.totalorder %s16, 0
    %p195 = por %p193, %p194
    %p196 = scmp.ne.s32.totalorder %s188, %s190
    %p197 = scmp.eq.s32.totalorder %s21, 1
    %p198 = por %p196, %p197
    %p199 = scmp.ne.s32.totalorder %s190, %s191
    %p200 = scmp.eq.s32.totalorder %s21, 0
    %p201 = por %p199, %p200
    %p202 = scmp.ne.s32.totalorder %s190, %s191
    %p203 = scmp.eq.s32.totalorder %s22, 1
    %p204 = por %p202, %p203
    %p206 = scmp.ne.s32.totalorder %s191, %s205
    %p207 = scmp.eq.s32.totalorder %s22, 0
    %p208 = por %p206, %p207
    %s210 = sadd.s32 %s209, 1
    %p213 = scmp.eq.s32.totalorder %s16, 1
    %p214 = scmp.ne.s32.totalorder %s209, %s211
    %p215 = scmp.eq.s32.totalorder %s16, 0
    %p216 = por %p214, %p215
    %p217 = scmp.ne.s32.totalorder %s209, %s211
    %p218 = scmp.eq.s32.totalorder %s21, 1
    %p219 = por %p217, %p218
    %p220 = scmp.ne.s32.totalorder %s211, %s212
    %p221 = scmp.eq.s32.totalorder %s21, 0
    %p222 = por %p220, %p221
    %p223 = scmp.ne.s32.totalorder %s211, %s212
    %p224 = scmp.eq.s32.totalorder %s22, 1
    %p225 = por %p223, %p224
    %p227 = scmp.ne.s32.totalorder %s212, %s226
    %p228 = scmp.eq.s32.totalorder %s22, 0
    %p229 = por %p227, %p228
    %s231 = sadd.s32 %s230, 1
    %p234 = scmp.eq.s32.totalorder %s16, 1
    %p235 = scmp.ne.s32.totalorder %s230, %s232
    %p236 = scmp.eq.s32.totalorder %s16, 0
    %p237 = por %p235, %p236
    %p238 = scmp.ne.s32.totalorder %s230, %s232
    %p239 = scmp.eq.s32.totalorder %s21, 1
    %p240 = por %p238, %p239
    %p241 = scmp.ne.s32.totalorder %s232, %s233
    %p242 = scmp.eq.s32.totalorder %s21, 0
    %p243 = por %p241, %p242
    %p244 = scmp.ne.s32.totalorder %s232, %s233
    %p245 = scmp.eq.s32.totalorder %s22, 1
    %p246 = por %p244, %p245
    %p248 = scmp.ne.s32.totalorder %s233, %s247
    %p249 = scmp.eq.s32.totalorder %s22, 0
    %p250 = por %p248, %p249
    %s251 = ssub.s32 %s23, %s35
    %s252 = ssub.s32 %s24, %s31
    %s253 = sor.u32 %s251, %s252
    %p254 = scmp.eq.s32.totalorder %s253, 0
    %s256 = sadd.s32 %s255, 1
    %s257 = scalar_select %p254, %s255, %s256
    %p260 = pneg %p254
    %p261 = scmp.eq.s32.totalorder %s16, 1
    %p262 = por %p260, %p261
    %p263 = scmp.ne.s32.totalorder %s255, %s258
    %p264 = scmp.eq.s32.totalorder %s16, 0
    %p265 = por %p263, %p264
    %p266 = scmp.ne.s32.totalorder %s255, %s258
    %p267 = scmp.eq.s32.totalorder %s21, 1
    %p268 = por %p266, %p267
    %p269 = scmp.ne.s32.totalorder %s258, %s259
    %p270 = scmp.eq.s32.totalorder %s21, 0
    %p271 = por %p269, %p270
    %p272 = scmp.ne.s32.totalorder %s258, %s259
    %p273 = scmp.eq.s32.totalorder %s22, 1
    %p274 = por %p272, %p273
    %p276 = scmp.ne.s32.totalorder %s259, %s275
    %p277 = scmp.eq.s32.totalorder %s22, 0
    %p278 = por %p276, %p277
    %p279 = scmp.le.s32.totalorder 1, %s16
    %p280 = scmp.lt.s32.totalorder %s16, 3
    %p281 = pnand %p279, %p280
    %p282 = pneg %p281
    // Predicated region
    $region9: #{attn_block.1} parent=5 // pred_check
      _
    $region10: #{attn_block.1} parent=5 // pred_check_branch
      %284 = sbr.rel (%p281) target = $region12
    $region11: #{attn_block.1} parent=5 // pred_region
      %s285 = ssub.s32 %s16, 1
      // Predicated region
      $region13: #{attn_block.1} parent=11 // pred_check
        %p286 = pneg %p75
      $region14: #{attn_block.1} parent=11 // pred_check_branch
        %288 = sbr.rel (%p286) target = $region16
      $region15: #{attn_block.1} parent=11 // pred_region
        _
      $region16: #{attn_block.1} parent=11 // pred_fallthru
        _
      // Predicated region
      $region17: #{attn_block.1} parent=11 // pred_check
        %p289 = pneg %p96
      $region18: #{attn_block.1} parent=11 // pred_check_branch
        %291 = sbr.rel (%p289) target = $region20
      $region19: #{attn_block.1} parent=11 // pred_region
        _
      $region20: #{attn_block.1} parent=11 // pred_fallthru
        _
      // Predicated region
      $region21: #{attn_block.1} parent=11 // pred_check
        %p292 = pneg %p117
      $region22: #{attn_block.1} parent=11 // pred_check_branch
        %294 = sbr.rel (%p292) target = $region24
      $region23: #{attn_block.1} parent=11 // pred_region
        _
      $region24: #{attn_block.1} parent=11 // pred_fallthru
        _
      // Predicated region
      $region25: #{attn_block.1} parent=11 // pred_check
        %p295 = pneg %p138
      $region26: #{attn_block.1} parent=11 // pred_check_branch
        %297 = sbr.rel (%p295) target = $region28
      $region27: #{attn_block.1} parent=11 // pred_region
        _
      $region28: #{attn_block.1} parent=11 // pred_fallthru
        _
      // Predicated region
      $region29: #{attn_block.1} parent=11 // pred_check
        %p298 = pneg %p159
      $region30: #{attn_block.1} parent=11 // pred_check_branch
        %300 = sbr.rel (%p298) target = $region32
      $region31: #{attn_block.1} parent=11 // pred_region
        _
      $region32: #{attn_block.1} parent=11 // pred_fallthru
        _
      // Predicated region
      $region33: #{attn_block.1} parent=11 // pred_check
        %p301 = pneg %p180
      $region34: #{attn_block.1} parent=11 // pred_check_branch
        %303 = sbr.rel (%p301) target = $region36
      $region35: #{attn_block.1} parent=11 // pred_region
        _
      $region36: #{attn_block.1} parent=11 // pred_fallthru
        _
      // Predicated region
      $region37: #{attn_block.1} parent=11 // pred_check
        %p304 = pneg %p201
      $region38: #{attn_block.1} parent=11 // pred_check_branch
        %306 = sbr.rel (%p304) target = $region40
      $region39: #{attn_block.1} parent=11 // pred_region
        _
      $region40: #{attn_block.1} parent=11 // pred_fallthru
        _
      // Predicated region
      $region41: #{attn_block.1} parent=11 // pred_check
        %p307 = pneg %p222
      $region42: #{attn_block.1} parent=11 // pred_check_branch
        %309 = sbr.rel (%p307) target = $region44
      $region43: #{attn_block.1} parent=11 // pred_region
        _
      $region44: #{attn_block.1} parent=11 // pred_fallthru
        _
      // Predicated region
      $region45: #{attn_block.1} parent=11 // pred_check
        %p310 = pneg %p243
      $region46: #{attn_block.1} parent=11 // pred_check_branch
        %312 = sbr.rel (%p310) target = $region48
      $region47: #{attn_block.1} parent=11 // pred_region
        _
      $region48: #{attn_block.1} parent=11 // pred_fallthru
        _
    $region12: #{attn_block.1} parent=5 // pred_fallthru
      _
    %p313 = scmp.lt.s32.totalorder %s16, 2
    // Predicated region
    $region49: #{attn_block.1} parent=5 // pred_check
      %p314 = pneg %p313
    $region50: #{attn_block.1} parent=5 // pred_check_branch
      %316 = sbr.rel (%p314) target = $region52
    $region51: #{attn_block.1} parent=5 // pred_region
      // Predicated region
      $region53: #{attn_block.1} parent=51 // pred_check
        %p317 = pneg %p48
      $region54: #{attn_block.1} parent=51 // pred_check_branch
        %319 = sbr.rel (%p317) target = $region56
      $region55: #{attn_block.1} parent=51 // pred_region
        %p320 = scmp.lt.s32.totalorder %s23, 1
        %s321 = scalar_select %p320, %s23, 1
        %s322 = smul.addr %s321, 32
        %s323 = smul.addr %s322, 8
        %s324 = scalar_lea.vmem %s0, %s323
      $region56: #{attn_block.1} parent=51 // pred_fallthru
        _
    $region52: #{attn_block.1} parent=5 // pred_fallthru
      _
    %p325 = scmp.le.s32.totalorder 1, %s16
    %p326 = scmp.lt.s32.totalorder %s16, 3
    %p327 = pnand %p325, %p326
    %p328 = pneg %p327
    // Predicated region
    $region57: #{attn_block.1} parent=5 // pred_check
      _
    $region58: #{attn_block.1} parent=5 // pred_check_branch
      %330 = sbr.rel (%p327) target = $region60
    $region59: #{attn_block.1} parent=5 // pred_region
      %s331 = ssub.s32 %s16, 1
      %p332 = scmp.lt.s32.totalorder %s25, 1
      %s333 = scalar_select %p332, %s25, 1
      %s334 = smul.addr %s333, 32
      %s335 = smul.addr %s334, 8
      %s336 = scalar_lea.vmem %s0, %s335
      %p337 = pneg %p54
      %p338 = pneg %p51
      %p339 = pneg %p75
      %p340 = pneg %p72
      %p341 = pneg %p96
      %p342 = pneg %p93
      %p343 = pneg %p117
      %p344 = pneg %p114
      %p345 = pneg %p138
      %p346 = pneg %p135
      %p347 = pneg %p159
      %p348 = pneg %p156
      %p349 = pneg %p180
      %p350 = pneg %p177
      %p351 = pneg %p201
      %p352 = pneg %p198
      %p353 = pneg %p222
      %p354 = pneg %p219
      %p355 = pneg %p243
      %p356 = pneg %p240
      %p357 = pneg %p271
      %p358 = pneg %p268
      %s359 = smul.u32 2, %s26
      %p360 = scmp.lt.s32.totalorder %s25, 1
      %s361 = scalar_select %p360, %s25, 1
      %p362 = scmp.lt.s32.totalorder %s359, 1
      %s363 = scalar_select %p362, %s359, 1
      %s364 = smul.addr %s361, 32
      %s365 = sadd.s32 %s363, %s364
      %s366 = smul.addr %s365, 8
      %s367 = scalar_lea.vmem %s10, %s366
      %p368 = scmp.lt.s32.totalorder %s25, 1
      %s369 = scalar_select %p368, %s25, 1
      %s370 = smul.addr %s369, 32
      %s371 = smul.addr %s370, 8
      %s372 = scalar_lea.vmem %s0, %s371
      %s373 = smul.u32 2, %s26
      %p374 = scmp.lt.s32.totalorder %s25, 1
      %s375 = scalar_select %p374, %s25, 1
      %p376 = scmp.lt.s32.totalorder %s373, 1
      %s377 = scalar_select %p376, %s373, 1
      %s378 = smul.addr %s375, 32
      %s379 = sadd.s32 %s377, %s378
      %s380 = smul.addr %s379, 8
      %s381 = scalar_lea.vmem %s10, %s380
      %s382 = smul.u32 2, %s26
      %p384 = scmp.eq.s32.totalorder %s26, 0
      // Predicated region
      $region61: #{attn_block.1} parent=59 // pred_check
        %p385 = pneg %p384
      $region62: #{attn_block.1} parent=59 // pred_check_branch
        %387 = sbr.rel (%p385) target = $region64
      $region63: #{attn_block.1} parent=59 // pred_region
        %v388 = vld [vmem:[%s372] sm:$0xff]
        %v389 = vld [vmem:[%s372 + $0x8] sm:$0xff]
        %v390 = vld [vmem:[%s372 + $0x10] sm:$0xff]
        %v391 = vld [vmem:[%s372 + $0x18] sm:$0xff]
        %v392 = vld [vmem:[%s372 + $0x20] sm:$0xff]
        %v393 = vld [vmem:[%s372 + $0x28] sm:$0xff]
        %v394 = vld [vmem:[%s372 + $0x30] sm:$0xff]
        %v395 = vld [vmem:[%s372 + $0x38] sm:$0xff]
        %v396 = vld [vmem:[%s372 + $0x40] sm:$0xff]
        %v397 = vld [vmem:[%s372 + $0x48] sm:$0xff]
        %v398 = vld [vmem:[%s372 + $0x50] sm:$0xff]
        %v399 = vld [vmem:[%s372 + $0x58] sm:$0xff]
        %v400 = vld [vmem:[%s372 + $0x60] sm:$0xff]
        %v401 = vld [vmem:[%s372 + $0x68] sm:$0xff]
        %v402 = vld [vmem:[%s372 + $0x70] sm:$0xff]
        %v403 = vld [vmem:[%s372 + $0x78] sm:$0xff]
        %v404 = vld [vmem:[%s372 + $0x80] sm:$0xff]
        %v405 = vld [vmem:[%s372 + $0x88] sm:$0xff]
        %v406 = vld [vmem:[%s372 + $0x90] sm:$0xff]
        %v407 = vld [vmem:[%s372 + $0x98] sm:$0xff]
        %v408 = vld [vmem:[%s372 + $0xa0] sm:$0xff]
        %v409 = vld [vmem:[%s372 + $0xa8] sm:$0xff]
        %v410 = vld [vmem:[%s372 + $0xb0] sm:$0xff]
        %v411 = vld [vmem:[%s372 + $0xb8] sm:$0xff]
        %v412 = vld [vmem:[%s372 + $0xc0] sm:$0xff]
        %v413 = vld [vmem:[%s372 + $0xc8] sm:$0xff]
        %v414 = vld [vmem:[%s372 + $0xd0] sm:$0xff]
        %v415 = vld [vmem:[%s372 + $0xd8] sm:$0xff]
        %v416 = vld [vmem:[%s372 + $0xe0] sm:$0xff]
        %v417 = vld [vmem:[%s372 + $0xe8] sm:$0xff]
        %v418 = vld [vmem:[%s372 + $0xf0] sm:$0xff]
        %v419 = vld [vmem:[%s372 + $0xf8] sm:$0xff]
        %v420 = vadd.f32 %v388, %v389
        %421 = vadd.xlane.f32.xlu0 %v420
        %v422 = vpop.xlane.xlu0 %421
        %v423 = vadd.f32 %v390, %v391
        %424 = vadd.xlane.f32.xlu0 %v423
        %v425 = vpop.xlane.xlu0 %424
        %v426 = vadd.f32 %v392, %v393
        %427 = vadd.xlane.f32.xlu0 %v426
        %v428 = vpop.xlane.xlu0 %427
        %v429 = vadd.f32 %v394, %v395
        %430 = vadd.xlane.f32.xlu0 %v429
        %v431 = vpop.xlane.xlu0 %430
        %v432 = vadd.f32 %v396, %v397
        %433 = vadd.xlane.f32.xlu0 %v432
        %v434 = vpop.xlane.xlu0 %433
        %v435 = vadd.f32 %v398, %v399
        %436 = vadd.xlane.f32.xlu0 %v435
        %v437 = vpop.xlane.xlu0 %436
        %v438 = vadd.f32 %v400, %v401
        %439 = vadd.xlane.f32.xlu0 %v438
        %v440 = vpop.xlane.xlu0 %439
        %v441 = vadd.f32 %v402, %v403
        %442 = vadd.xlane.f32.xlu0 %v441
        %v443 = vpop.xlane.xlu0 %442
        %v444 = vadd.f32 %v404, %v405
        %445 = vadd.xlane.f32.xlu0 %v444
        %v446 = vpop.xlane.xlu0 %445
        %v447 = vadd.f32 %v406, %v407
        %448 = vadd.xlane.f32.xlu0 %v447
        %v449 = vpop.xlane.xlu0 %448
        %v450 = vadd.f32 %v408, %v409
        %451 = vadd.xlane.f32.xlu0 %v450
        %v452 = vpop.xlane.xlu0 %451
        %v453 = vadd.f32 %v410, %v411
        %454 = vadd.xlane.f32.xlu0 %v453
        %v455 = vpop.xlane.xlu0 %454
        %v456 = vadd.f32 %v412, %v413
        %457 = vadd.xlane.f32.xlu0 %v456
        %v458 = vpop.xlane.xlu0 %457
        %v459 = vadd.f32 %v414, %v415
        %460 = vadd.xlane.f32.xlu0 %v459
        %v461 = vpop.xlane.xlu0 %460
        %v462 = vadd.f32 %v416, %v417
        %463 = vadd.xlane.f32.xlu0 %v462
        %v464 = vpop.xlane.xlu0 %463
        %v465 = vadd.f32 %v418, %v419
        %466 = vadd.xlane.f32.xlu0 %v465
        %v467 = vpop.xlane.xlu0 %466
        %v468 = vmul.f32 %v388, %v388
        %v469 = vmul.f32 %v389, %v389
        %v470 = vmul.f32 %v390, %v390
        %v471 = vmul.f32 %v391, %v391
        %v472 = vmul.f32 %v392, %v392
        %v473 = vmul.f32 %v393, %v393
        %v474 = vmul.f32 %v394, %v394
        %v475 = vmul.f32 %v395, %v395
        %v476 = vmul.f32 %v396, %v396
        %v477 = vmul.f32 %v397, %v397
        %v478 = vmul.f32 %v398, %v398
        %v479 = vmul.f32 %v399, %v399
        %v480 = vmul.f32 %v400, %v400
        %v481 = vmul.f32 %v401, %v401
        %v482 = vmul.f32 %v402, %v402
        %v483 = vmul.f32 %v403, %v403
        %v484 = vmul.f32 %v404, %v404
        %v485 = vmul.f32 %v405, %v405
        %v486 = vmul.f32 %v406, %v406
        %v487 = vmul.f32 %v407, %v407
        %v488 = vmul.f32 %v408, %v408
        %v489 = vmul.f32 %v409, %v409
        %v490 = vmul.f32 %v410, %v410
        %v491 = vmul.f32 %v411, %v411
        %v492 = vmul.f32 %v412, %v412
        %v493 = vmul.f32 %v413, %v413
        %v494 = vmul.f32 %v414, %v414
        %v495 = vmul.f32 %v415, %v415
        %v496 = vmul.f32 %v416, %v416
        %v497 = vmul.f32 %v417, %v417
        %v498 = vmul.f32 %v418, %v418
        %v499 = vmul.f32 %v419, %v419
        %v500 = vadd.f32 %v468, %v469
        %501 = vadd.xlane.f32.xlu0 %v500
        %v502 = vpop.xlane.xlu0 %501
        %v503 = vadd.f32 %v470, %v471
        %504 = vadd.xlane.f32.xlu0 %v503
        %v505 = vpop.xlane.xlu0 %504
        %v506 = vadd.f32 %v472, %v473
        %507 = vadd.xlane.f32.xlu0 %v506
        %v508 = vpop.xlane.xlu0 %507
        %v509 = vadd.f32 %v474, %v475
        %510 = vadd.xlane.f32.xlu0 %v509
        %v511 = vpop.xlane.xlu0 %510
        %v512 = vadd.f32 %v476, %v477
        %513 = vadd.xlane.f32.xlu0 %v512
        %v514 = vpop.xlane.xlu0 %513
        %v515 = vadd.f32 %v478, %v479
        %516 = vadd.xlane.f32.xlu0 %v515
        %v517 = vpop.xlane.xlu0 %516
        %v518 = vadd.f32 %v480, %v481
        %519 = vadd.xlane.f32.xlu0 %v518
        %v520 = vpop.xlane.xlu0 %519
        %v521 = vadd.f32 %v482, %v483
        %522 = vadd.xlane.f32.xlu0 %v521
        %v523 = vpop.xlane.xlu0 %522
        %v524 = vadd.f32 %v484, %v485
        %525 = vadd.xlane.f32.xlu0 %v524
        %v526 = vpop.xlane.xlu0 %525
        %v527 = vadd.f32 %v486, %v487
        %528 = vadd.xlane.f32.xlu0 %v527
        %v529 = vpop.xlane.xlu0 %528
        %v530 = vadd.f32 %v488, %v489
        %531 = vadd.xlane.f32.xlu0 %v530
        %v532 = vpop.xlane.xlu0 %531
        %v533 = vadd.f32 %v490, %v491
        %534 = vadd.xlane.f32.xlu0 %v533
        %v535 = vpop.xlane.xlu0 %534
        %v536 = vadd.f32 %v492, %v493
        %537 = vadd.xlane.f32.xlu0 %v536
        %v538 = vpop.xlane.xlu0 %537
        %v539 = vadd.f32 %v494, %v495
        %540 = vadd.xlane.f32.xlu0 %v539
        %v541 = vpop.xlane.xlu0 %540
        %v542 = vadd.f32 %v496, %v497
        %543 = vadd.xlane.f32.xlu0 %v542
        %v544 = vpop.xlane.xlu0 %543
        %v545 = vadd.f32 %v498, %v499
        %546 = vadd.xlane.f32.xlu0 %v545
        %v547 = vpop.xlane.xlu0 %546
        %vm548 = vcmask 7168
        %v549 = vsel %vm548, %v422, %v502
        %v550 = vsel %vm548, %v425, %v505
        %v551 = vsel %vm548, %v428, %v508
        %v552 = vsel %vm548, %v431, %v511
        %v553 = vsel %vm548, %v434, %v514
        %v554 = vsel %vm548, %v437, %v517
        %v555 = vsel %vm548, %v440, %v520
        %v556 = vsel %vm548, %v443, %v523
        %v557 = vsel %vm548, %v446, %v526
        %v558 = vsel %vm548, %v449, %v529
        %v559 = vsel %vm548, %v452, %v532
        %v560 = vsel %vm548, %v455, %v535
        %v561 = vsel %vm548, %v458, %v538
        %v562 = vsel %vm548, %v461, %v541
        %v563 = vsel %vm548, %v464, %v544
        %v564 = vsel %vm548, %v467, %v547
        %v565 = vld [vmem:[%s3] sm:$0xff]
        %v566 = vld [vmem:[%s3 + $0x8] sm:$0xff]
        %v567 = vld [vmem:[%s3 + $0x10] sm:$0xff]
        %v568 = vld [vmem:[%s3 + $0x18] sm:$0xff]
        %v569 = vld [vmem:[%s3 + $0x20] sm:$0xff]
        %v570 = vld [vmem:[%s3 + $0x28] sm:$0xff]
        %v571 = vld [vmem:[%s3 + $0x30] sm:$0xff]
        %v572 = vld [vmem:[%s3 + $0x38] sm:$0xff]
        %v573 = vld [vmem:[%s3 + $0x40] sm:$0xff]
        %v574 = vld [vmem:[%s3 + $0x48] sm:$0xff]
        %v575 = vld [vmem:[%s3 + $0x50] sm:$0xff]
        %v576 = vld [vmem:[%s3 + $0x58] sm:$0xff]
        %v577 = vld [vmem:[%s3 + $0x60] sm:$0xff]
        %v578 = vld [vmem:[%s3 + $0x68] sm:$0xff]
        %v579 = vld [vmem:[%s3 + $0x70] sm:$0xff]
        %v580 = vld [vmem:[%s3 + $0x78] sm:$0xff]
        %581 = vmatprep.subr.mxu0 0.0
        %582 = vmatpush1.msra.mxu0 %v564
        %583 = vmatprep.subr.mxu0 0.0
        %584 = vmatpush1.msra.mxu0 %v563
        %585 = vmatprep.subr.mxu0 0.0
        %586 = vmatpush1.msra.mxu0 %v562
        %587 = vmatprep.subr.mxu0 0.0
        %588 = vmatpush1.msra.mxu0 %v561
        %589 = vmatprep.subr.mxu0 0.0
        %590 = vmatpush1.msra.mxu0 %v560
        %591 = vmatprep.subr.mxu0 0.0
        %592 = vmatpush1.msra.mxu0 %v559
        %593 = vmatprep.subr.mxu0 0.0
        %594 = vmatpush1.msra.mxu0 %v558
        %595 = vmatprep.subr.mxu0 0.0
        %596 = vmatpush1.msra.mxu0 %v557
        %597 = vmatprep.subr.mxu0 0.0
        %598 = vmatpush1.msra.mxu0 %v556
        %599 = vmatprep.subr.mxu0 0.0
        %600 = vmatpush1.msra.mxu0 %v555
        %601 = vmatprep.subr.mxu0 0.0
        %602 = vmatpush1.msra.mxu0 %v554
        %603 = vmatprep.subr.mxu0 0.0
        %604 = vmatpush1.msra.mxu0 %v553
        %605 = vmatprep.subr.mxu0 0.0
        %606 = vmatpush1.msra.mxu0 %v552
        %607 = vmatprep.subr.mxu0 0.0
        %608 = vmatpush1.msra.mxu0 %v551
        %609 = vmatprep.subr.mxu0 0.0
        %610 = vmatpush1.msra.mxu0 %v550
        %611 = vmatprep.subr.mxu0 0.0
        %612 = vmatpush1.msra.mxu0 %v549
        %613 = vmatprep.subr.mxu0 0.0
        %614 = vmatpush2.msra.mxu0 0.0
        %615 = vmatprep.subr.mxu0 0.0
        %616 = vmatpush2.msra.mxu0 0.0
        %617 = vmatprep.subr.mxu0 0.0
        %618 = vmatpush2.msra.mxu0 0.0
        %619 = vmatprep.subr.mxu0 0.0
        %620 = vmatpush2.msra.mxu0 0.0
        %621 = vmatprep.subr.mxu0 0.0
        %622 = vmatpush2.msra.mxu0 0.0
        %623 = vmatprep.subr.mxu0 0.0
        %624 = vmatpush2.msra.mxu0 0.0
        %625 = vmatprep.subr.mxu0 0.0
        %626 = vmatpush2.msra.mxu0 0.0
        %627 = vmatprep.subr.mxu0 0.0
        %628 = vmatpush2.msra.mxu0 0.0
        %629 = vmatprep.subr.mxu0 0.0
        %630 = vmatpush2.msra.mxu0 0.0
        %631 = vmatprep.subr.mxu0 0.0
        %632 = vmatpush2.msra.mxu0 0.0
        %633 = vmatprep.subr.mxu0 0.0
        %634 = vmatpush2.msra.mxu0 0.0
        %635 = vmatprep.subr.mxu0 0.0
        %636 = vmatpush2.msra.mxu0 0.0
        %637 = vmatprep.subr.mxu0 0.0
        %638 = vmatpush2.msra.mxu0 0.0
        %639 = vmatprep.subr.mxu0 0.0
        %640 = vmatpush2.msra.mxu0 0.0
        %641 = vmatprep.subr.mxu0 0.0
        %642 = vmatpush2.msra.mxu0 0.0
        %643 = vmatprep.subr.mxu0 0.0
        %644 = vmatpush2.msra.mxu0 0.0
        %645 = vmatprep.mubr.f32.mxu0 0.0
        %646 = vmatmul.mubr.f32.gmra.mxu0 %v565
        %v647 = vpop.f32.mrf.mxu0
        %v648 = vadd.f32 0.0, %v647
        %v649 = vpop.f32.mrf.mxu0
        %650 = vmatprep.mubr.f32.mxu0 0.0
        %651 = vmatmul.mubr.f32.gmra.mxu0 %v566
        %v652 = vpop.f32.mrf.mxu0
        %v653 = vadd.f32 0.0, %v652
        %v654 = vpop.f32.mrf.mxu0
        %655 = vmatprep.mubr.f32.mxu0 0.0
        %656 = vmatmul.mubr.f32.gmra.mxu0 %v567
        %v657 = vpop.f32.mrf.mxu0
        %v658 = vadd.f32 0.0, %v657
        %v659 = vpop.f32.mrf.mxu0
        %660 = vmatprep.mubr.f32.mxu0 0.0
        %661 = vmatmul.mubr.f32.gmra.mxu0 %v568
        %v662 = vpop.f32.mrf.mxu0
        %v663 = vadd.f32 0.0, %v662
        %v664 = vpop.f32.mrf.mxu0
        %665 = vmatprep.mubr.f32.mxu0 0.0
        %666 = vmatmul.mubr.f32.gmra.mxu0 %v569
        %v667 = vpop.f32.mrf.mxu0
        %v668 = vadd.f32 0.0, %v667
        %v669 = vpop.f32.mrf.mxu0
        %670 = vmatprep.mubr.f32.mxu0 0.0
        %671 = vmatmul.mubr.f32.gmra.mxu0 %v570
        %v672 = vpop.f32.mrf.mxu0
        %v673 = vadd.f32 0.0, %v672
        %v674 = vpop.f32.mrf.mxu0
        %675 = vmatprep.mubr.f32.mxu0 0.0
        %676 = vmatmul.mubr.f32.gmra.mxu0 %v571
        %v677 = vpop.f32.mrf.mxu0
        %v678 = vadd.f32 0.0, %v677
        %v679 = vpop.f32.mrf.mxu0
        %680 = vmatprep.mubr.f32.mxu0 0.0
        %681 = vmatmul.mubr.f32.gmra.mxu0 %v572
        %v682 = vpop.f32.mrf.mxu0
        %v683 = vadd.f32 0.0, %v682
        %v684 = vpop.f32.mrf.mxu0
        %685 = vmatprep.mubr.f32.mxu0 0.0
        %686 = vmatmul.mubr.f32.gmra.mxu0 %v573
        %v687 = vpop.f32.mrf.mxu0
        %v688 = vadd.f32 0.0, %v687
        %v689 = vpop.f32.mrf.mxu0
        %690 = vmatprep.mubr.f32.mxu0 0.0
        %691 = vmatmul.mubr.f32.gmra.mxu0 %v574
        %v692 = vpop.f32.mrf.mxu0
        %v693 = vadd.f32 0.0, %v692
        %v694 = vpop.f32.mrf.mxu0
        %695 = vmatprep.mubr.f32.mxu0 0.0
        %696 = vmatmul.mubr.f32.gmra.mxu0 %v575
        %v697 = vpop.f32.mrf.mxu0
        %v698 = vadd.f32 0.0, %v697
        %v699 = vpop.f32.mrf.mxu0
        %700 = vmatprep.mubr.f32.mxu0 0.0
        %701 = vmatmul.mubr.f32.gmra.mxu0 %v576
        %v702 = vpop.f32.mrf.mxu0
        %v703 = vadd.f32 0.0, %v702
        %v704 = vpop.f32.mrf.mxu0
        %705 = vmatprep.mubr.f32.mxu0 0.0
        %706 = vmatmul.mubr.f32.gmra.mxu0 %v577
        %v707 = vpop.f32.mrf.mxu0
        %v708 = vadd.f32 0.0, %v707
        %v709 = vpop.f32.mrf.mxu0
        %710 = vmatprep.mubr.f32.mxu0 0.0
        %711 = vmatmul.mubr.f32.gmra.mxu0 %v578
        %v712 = vpop.f32.mrf.mxu0
        %v713 = vadd.f32 0.0, %v712
        %v714 = vpop.f32.mrf.mxu0
        %715 = vmatprep.mubr.f32.mxu0 0.0
        %716 = vmatmul.mubr.f32.gmra.mxu0 %v579
        %v717 = vpop.f32.mrf.mxu0
        %v718 = vadd.f32 0.0, %v717
        %v719 = vpop.f32.mrf.mxu0
        %720 = vmatprep.mubr.f32.mxu0 0.0
        %721 = vmatmul.mubr.f32.gmra.mxu0 %v580
        %v722 = vpop.f32.mrf.mxu0
        %v723 = vadd.f32 0.0, %v722
        %v724 = vpop.f32.mrf.mxu0
        %725 = vdwg.mxu0
        %v726 = vmul.f32 %v648, 0.0009765625
        %v727 = vmul.f32 %v653, 0.0009765625
        %v728 = vmul.f32 %v658, 0.0009765625
        %v729 = vmul.f32 %v663, 0.0009765625
        %v730 = vmul.f32 %v668, 0.0009765625
        %v731 = vmul.f32 %v673, 0.0009765625
        %v732 = vmul.f32 %v678, 0.0009765625
        %v733 = vmul.f32 %v683, 0.0009765625
        %v734 = vmul.f32 %v688, 0.0009765625
        %v735 = vmul.f32 %v693, 0.0009765625
        %v736 = vmul.f32 %v698, 0.0009765625
        %v737 = vmul.f32 %v703, 0.0009765625
        %v738 = vmul.f32 %v708, 0.0009765625
        %v739 = vmul.f32 %v713, 0.0009765625
        %v740 = vmul.f32 %v718, 0.0009765625
        %v741 = vmul.f32 %v723, 0.0009765625
        %v742 = vmul.f32 %v726, %v726
        %v743 = vmul.f32 %v727, %v727
        %v744 = vmul.f32 %v728, %v728
        %v745 = vmul.f32 %v729, %v729
        %v746 = vmul.f32 %v730, %v730
        %v747 = vmul.f32 %v731, %v731
        %v748 = vmul.f32 %v732, %v732
        %v749 = vmul.f32 %v733, %v733
        %v750 = vmul.f32 %v734, %v734
        %v751 = vmul.f32 %v735, %v735
        %v752 = vmul.f32 %v736, %v736
        %v753 = vmul.f32 %v737, %v737
        %v754 = vmul.f32 %v738, %v738
        %v755 = vmul.f32 %v739, %v739
        %v756 = vmul.f32 %v740, %v740
        %v757 = vmul.f32 %v741, %v741
        %774 = vrot.lane.b32.xlu0 %v742, 1
        %v775 = vpop.permute.xlu0 %774
        %776 = vrot.lane.b32.xlu0 %v743, 1
        %v777 = vpop.permute.xlu0 %776
        %778 = vrot.lane.b32.xlu0 %v744, 1
        %v779 = vpop.permute.xlu0 %778
        %780 = vrot.lane.b32.xlu0 %v745, 1
        %v781 = vpop.permute.xlu0 %780
        %782 = vrot.lane.b32.xlu0 %v746, 1
        %v783 = vpop.permute.xlu0 %782
        %784 = vrot.lane.b32.xlu0 %v747, 1
        %v785 = vpop.permute.xlu0 %784
        %786 = vrot.lane.b32.xlu0 %v748, 1
        %v787 = vpop.permute.xlu0 %786
        %788 = vrot.lane.b32.xlu0 %v749, 1
        %v789 = vpop.permute.xlu0 %788
        %790 = vrot.lane.b32.xlu0 %v750, 1
        %v791 = vpop.permute.xlu0 %790
        %792 = vrot.lane.b32.xlu0 %v751, 1
        %v793 = vpop.permute.xlu0 %792
        %794 = vrot.lane.b32.xlu0 %v752, 1
        %v795 = vpop.permute.xlu0 %794
        %796 = vrot.lane.b32.xlu0 %v753, 1
        %v797 = vpop.permute.xlu0 %796
        %798 = vrot.lane.b32.xlu0 %v754, 1
        %v799 = vpop.permute.xlu0 %798
        %800 = vrot.lane.b32.xlu0 %v755, 1
        %v801 = vpop.permute.xlu0 %800
        %802 = vrot.lane.b32.xlu0 %v756, 1
        %v803 = vpop.permute.xlu0 %802
        %804 = vrot.lane.b32.xlu0 %v757, 1
        %v805 = vpop.permute.xlu0 %804
        %v822 = vsub.f32 %v726, %v775
        %v823 = vsub.f32 %v727, %v777
        %v824 = vsub.f32 %v728, %v779
        %v825 = vsub.f32 %v729, %v781
        %v826 = vsub.f32 %v730, %v783
        %v827 = vsub.f32 %v731, %v785
        %v828 = vsub.f32 %v732, %v787
        %v829 = vsub.f32 %v733, %v789
        %v830 = vsub.f32 %v734, %v791
        %v831 = vsub.f32 %v735, %v793
        %v832 = vsub.f32 %v736, %v795
        %v833 = vsub.f32 %v737, %v797
        %v834 = vsub.f32 %v738, %v799
        %v835 = vsub.f32 %v739, %v801
        %v836 = vsub.f32 %v740, %v803
        %v837 = vsub.f32 %v741, %v805
        %v838 = vmax.f32 %v822, 0.0
        %v839 = vmax.f32 %v823, 0.0
        %v840 = vmax.f32 %v824, 0.0
        %v841 = vmax.f32 %v825, 0.0
        %v842 = vmax.f32 %v826, 0.0
        %v843 = vmax.f32 %v827, 0.0
        %v844 = vmax.f32 %v828, 0.0
        %v845 = vmax.f32 %v829, 0.0
        %v846 = vmax.f32 %v830, 0.0
        %v847 = vmax.f32 %v831, 0.0
        %v848 = vmax.f32 %v832, 0.0
        %v849 = vmax.f32 %v833, 0.0
        %v850 = vmax.f32 %v834, 0.0
        %v851 = vmax.f32 %v835, 0.0
        %v852 = vmax.f32 %v836, 0.0
        %v853 = vmax.f32 %v837, 0.0
        %855 = vset.pattern.permute.xlu0 0
        %856 = vperm.xlu0 %855, %v726
        %v857 = vpop.permute.xlu0 %856
        %860 = vset.pattern.permute.xlu0 0
        %861 = vperm.xlu0 %860, %v727
        %v862 = vpop.permute.xlu0 %861
        %865 = vset.pattern.permute.xlu0 0
        %866 = vperm.xlu0 %865, %v728
        %v867 = vpop.permute.xlu0 %866
        %870 = vset.pattern.permute.xlu0 0
        %871 = vperm.xlu0 %870, %v729
        %v872 = vpop.permute.xlu0 %871
        %875 = vset.pattern.permute.xlu0 0
        %876 = vperm.xlu0 %875, %v730
        %v877 = vpop.permute.xlu0 %876
        %880 = vset.pattern.permute.xlu0 0
        %881 = vperm.xlu0 %880, %v731
        %v882 = vpop.permute.xlu0 %881
        %885 = vset.pattern.permute.xlu0 0
        %886 = vperm.xlu0 %885, %v732
        %v887 = vpop.permute.xlu0 %886
        %890 = vset.pattern.permute.xlu0 0
        %891 = vperm.xlu0 %890, %v733
        %v892 = vpop.permute.xlu0 %891
        %895 = vset.pattern.permute.xlu0 0
        %896 = vperm.xlu0 %895, %v734
        %v897 = vpop.permute.xlu0 %896
        %900 = vset.pattern.permute.xlu0 0
        %901 = vperm.xlu0 %900, %v735
        %v902 = vpop.permute.xlu0 %901
        %905 = vset.pattern.permute.xlu0 0
        %906 = vperm.xlu0 %905, %v736
        %v907 = vpop.permute.xlu0 %906
        %910 = vset.pattern.permute.xlu0 0
        %911 = vperm.xlu0 %910, %v737
        %v912 = vpop.permute.xlu0 %911
        %915 = vset.pattern.permute.xlu0 0
        %916 = vperm.xlu0 %915, %v738
        %v917 = vpop.permute.xlu0 %916
        %920 = vset.pattern.permute.xlu0 0
        %921 = vperm.xlu0 %920, %v739
        %v922 = vpop.permute.xlu0 %921
        %925 = vset.pattern.permute.xlu0 0
        %926 = vperm.xlu0 %925, %v740
        %v927 = vpop.permute.xlu0 %926
        %930 = vset.pattern.permute.xlu0 0
        %931 = vperm.xlu0 %930, %v741
        %v932 = vpop.permute.xlu0 %931
        %v934 = vsub.f32 %v388, %v857
        %v935 = vsub.f32 %v389, %v857
        %v936 = vsub.f32 %v390, %v862
        %v937 = vsub.f32 %v391, %v862
        %v938 = vsub.f32 %v392, %v867
        %v939 = vsub.f32 %v393, %v867
        %v940 = vsub.f32 %v394, %v872
        %v941 = vsub.f32 %v395, %v872
        %v942 = vsub.f32 %v396, %v877
        %v943 = vsub.f32 %v397, %v877
        %v944 = vsub.f32 %v398, %v882
        %v945 = vsub.f32 %v399, %v882
        %v946 = vsub.f32 %v400, %v887
        %v947 = vsub.f32 %v401, %v887
        %v948 = vsub.f32 %v402, %v892
        %v949 = vsub.f32 %v403, %v892
        %v950 = vsub.f32 %v404, %v897
        %v951 = vsub.f32 %v405, %v897
        %v952 = vsub.f32 %v406, %v902
        %v953 = vsub.f32 %v407, %v902
        %v954 = vsub.f32 %v408, %v907
        %v955 = vsub.f32 %v409, %v907
        %v956 = vsub.f32 %v410, %v912
        %v957 = vsub.f32 %v411, %v912
        %v958 = vsub.f32 %v412, %v917
        %v959 = vsub.f32 %v413, %v917
        %v960 = vsub.f32 %v414, %v922
        %v961 = vsub.f32 %v415, %v922
        %v962 = vsub.f32 %v416, %v927
        %v963 = vsub.f32 %v417, %v927
        %v964 = vsub.f32 %v418, %v932
        %v965 = vsub.f32 %v419, %v932
        %v966 = vadd.f32 %v838, 1e-05
        %v967 = vadd.f32 %v839, 1e-05
        %v968 = vadd.f32 %v840, 1e-05
        %v969 = vadd.f32 %v841, 1e-05
        %v970 = vadd.f32 %v842, 1e-05
        %v971 = vadd.f32 %v843, 1e-05
        %v972 = vadd.f32 %v844, 1e-05
        %v973 = vadd.f32 %v845, 1e-05
        %v974 = vadd.f32 %v846, 1e-05
        %v975 = vadd.f32 %v847, 1e-05
        %v976 = vadd.f32 %v848, 1e-05
        %v977 = vadd.f32 %v849, 1e-05
        %v978 = vadd.f32 %v850, 1e-05
        %v979 = vadd.f32 %v851, 1e-05
        %v980 = vadd.f32 %v852, 1e-05
        %v981 = vadd.f32 %v853, 1e-05
        %v982 = vrsqrt.pop %v966
        %v983 = vrsqrt.pop %v967
        %v984 = vrsqrt.pop %v968
        %v985 = vrsqrt.pop %v969
        %v986 = vrsqrt.pop %v970
        %v987 = vrsqrt.pop %v971
        %v988 = vrsqrt.pop %v972
        %v989 = vrsqrt.pop %v973
        %v990 = vrsqrt.pop %v974
        %v991 = vrsqrt.pop %v975
        %v992 = vrsqrt.pop %v976
        %v993 = vrsqrt.pop %v977
        %v994 = vrsqrt.pop %v978
        %v995 = vrsqrt.pop %v979
        %v996 = vrsqrt.pop %v980
        %v997 = vrsqrt.pop %v981
        %999 = vset.pattern.permute.xlu0 1
        %1000 = vperm.xlu0 %999, %v982
        %v1001 = vpop.permute.xlu0 %1000
        %1004 = vset.pattern.permute.xlu0 1
        %1005 = vperm.xlu0 %1004, %v983
        %v1006 = vpop.permute.xlu0 %1005
        %1009 = vset.pattern.permute.xlu0 1
        %1010 = vperm.xlu0 %1009, %v984
        %v1011 = vpop.permute.xlu0 %1010
        %1014 = vset.pattern.permute.xlu0 1
        %1015 = vperm.xlu0 %1014, %v985
        %v1016 = vpop.permute.xlu0 %1015
        %1019 = vset.pattern.permute.xlu0 1
        %1020 = vperm.xlu0 %1019, %v986
        %v1021 = vpop.permute.xlu0 %1020
        %1024 = vset.pattern.permute.xlu0 1
        %1025 = vperm.xlu0 %1024, %v987
        %v1026 = vpop.permute.xlu0 %1025
        %1029 = vset.pattern.permute.xlu0 1
        %1030 = vperm.xlu0 %1029, %v988
        %v1031 = vpop.permute.xlu0 %1030
        %1034 = vset.pattern.permute.xlu0 1
        %1035 = vperm.xlu0 %1034, %v989
        %v1036 = vpop.permute.xlu0 %1035
        %1039 = vset.pattern.permute.xlu0 1
        %1040 = vperm.xlu0 %1039, %v990
        %v1041 = vpop.permute.xlu0 %1040
        %1044 = vset.pattern.permute.xlu0 1
        %1045 = vperm.xlu0 %1044, %v991
        %v1046 = vpop.permute.xlu0 %1045
        %1049 = vset.pattern.permute.xlu0 1
        %1050 = vperm.xlu0 %1049, %v992
        %v1051 = vpop.permute.xlu0 %1050
        %1054 = vset.pattern.permute.xlu0 1
        %1055 = vperm.xlu0 %1054, %v993
        %v1056 = vpop.permute.xlu0 %1055
        %1059 = vset.pattern.permute.xlu0 1
        %1060 = vperm.xlu0 %1059, %v994
        %v1061 = vpop.permute.xlu0 %1060
        %1064 = vset.pattern.permute.xlu0 1
        %1065 = vperm.xlu0 %1064, %v995
        %v1066 = vpop.permute.xlu0 %1065
        %1069 = vset.pattern.permute.xlu0 1
        %1070 = vperm.xlu0 %1069, %v996
        %v1071 = vpop.permute.xlu0 %1070
        %1074 = vset.pattern.permute.xlu0 1
        %1075 = vperm.xlu0 %1074, %v997
        %v1076 = vpop.permute.xlu0 %1075
        %v1078 = vmul.f32 %v934, %v1001
        %v1079 = vmul.f32 %v935, %v1001
        %v1080 = vmul.f32 %v936, %v1006
        %v1081 = vmul.f32 %v937, %v1006
        %v1082 = vmul.f32 %v938, %v1011
        %v1083 = vmul.f32 %v939, %v1011
        %v1084 = vmul.f32 %v940, %v1016
        %v1085 = vmul.f32 %v941, %v1016
        %v1086 = vmul.f32 %v942, %v1021
        %v1087 = vmul.f32 %v943, %v1021
        %v1088 = vmul.f32 %v944, %v1026
        %v1089 = vmul.f32 %v945, %v1026
        %v1090 = vmul.f32 %v946, %v1031
        %v1091 = vmul.f32 %v947, %v1031
        %v1092 = vmul.f32 %v948, %v1036
        %v1093 = vmul.f32 %v949, %v1036
        %v1094 = vmul.f32 %v950, %v1041
        %v1095 = vmul.f32 %v951, %v1041
        %v1096 = vmul.f32 %v952, %v1046
        %v1097 = vmul.f32 %v953, %v1046
        %v1098 = vmul.f32 %v954, %v1051
        %v1099 = vmul.f32 %v955, %v1051
        %v1100 = vmul.f32 %v956, %v1056
        %v1101 = vmul.f32 %v957, %v1056
        %v1102 = vmul.f32 %v958, %v1061
        %v1103 = vmul.f32 %v959, %v1061
        %v1104 = vmul.f32 %v960, %v1066
        %v1105 = vmul.f32 %v961, %v1066
        %v1106 = vmul.f32 %v962, %v1071
        %v1107 = vmul.f32 %v963, %v1071
        %v1108 = vmul.f32 %v964, %v1076
        %v1109 = vmul.f32 %v965, %v1076
        %v1110 = vld [vmem:[%s1] sm:$0xff]
        %v1111 = vld [vmem:[%s1 + $0x8] sm:$0xff]
        %v1112 = vld [vmem:[%s1 + $0x10] sm:$0xff]
        %v1113 = vld [vmem:[%s1 + $0x18] sm:$0xff]
        %v1114 = vld [vmem:[%s1 + $0x20] sm:$0xff]
        %v1115 = vld [vmem:[%s1 + $0x28] sm:$0xff]
        %v1116 = vld [vmem:[%s1 + $0x30] sm:$0xff]
        %v1117 = vld [vmem:[%s1 + $0x38] sm:$0xff]
        %v1118 = vld [vmem:[%s1 + $0x40] sm:$0xff]
        %v1119 = vld [vmem:[%s1 + $0x48] sm:$0xff]
        %v1120 = vld [vmem:[%s1 + $0x50] sm:$0xff]
        %v1121 = vld [vmem:[%s1 + $0x58] sm:$0xff]
        %v1122 = vld [vmem:[%s1 + $0x60] sm:$0xff]
        %v1123 = vld [vmem:[%s1 + $0x68] sm:$0xff]
        %v1124 = vld [vmem:[%s1 + $0x70] sm:$0xff]
        %v1125 = vld [vmem:[%s1 + $0x78] sm:$0xff]
        %1127 = vset.pattern.permute.xlu0 0
        %1128 = vperm.xlu0 %1127, %v1110
        %v1129 = vpop.permute.xlu0 %1128
        %1132 = vset.pattern.permute.xlu0 0
        %1133 = vperm.xlu0 %1132, %v1111
        %v1134 = vpop.permute.xlu0 %1133
        %1137 = vset.pattern.permute.xlu0 0
        %1138 = vperm.xlu0 %1137, %v1112
        %v1139 = vpop.permute.xlu0 %1138
        %1142 = vset.pattern.permute.xlu0 0
        %1143 = vperm.xlu0 %1142, %v1113
        %v1144 = vpop.permute.xlu0 %1143
        %1147 = vset.pattern.permute.xlu0 0
        %1148 = vperm.xlu0 %1147, %v1114
        %v1149 = vpop.permute.xlu0 %1148
        %1152 = vset.pattern.permute.xlu0 0
        %1153 = vperm.xlu0 %1152, %v1115
        %v1154 = vpop.permute.xlu0 %1153
        %1157 = vset.pattern.permute.xlu0 0
        %1158 = vperm.xlu0 %1157, %v1116
        %v1159 = vpop.permute.xlu0 %1158
        %1162 = vset.pattern.permute.xlu0 0
        %1163 = vperm.xlu0 %1162, %v1117
        %v1164 = vpop.permute.xlu0 %1163
        %1167 = vset.pattern.permute.xlu0 0
        %1168 = vperm.xlu0 %1167, %v1118
        %v1169 = vpop.permute.xlu0 %1168
        %1172 = vset.pattern.permute.xlu0 0
        %1173 = vperm.xlu0 %1172, %v1119
        %v1174 = vpop.permute.xlu0 %1173
        %1177 = vset.pattern.permute.xlu0 0
        %1178 = vperm.xlu0 %1177, %v1120
        %v1179 = vpop.permute.xlu0 %1178
        %1182 = vset.pattern.permute.xlu0 0
        %1183 = vperm.xlu0 %1182, %v1121
        %v1184 = vpop.permute.xlu0 %1183
        %1187 = vset.pattern.permute.xlu0 0
        %1188 = vperm.xlu0 %1187, %v1122
        %v1189 = vpop.permute.xlu0 %1188
        %1192 = vset.pattern.permute.xlu0 0
        %1193 = vperm.xlu0 %1192, %v1123
        %v1194 = vpop.permute.xlu0 %1193
        %1197 = vset.pattern.permute.xlu0 0
        %1198 = vperm.xlu0 %1197, %v1124
        %v1199 = vpop.permute.xlu0 %1198
        %1202 = vset.pattern.permute.xlu0 0
        %1203 = vperm.xlu0 %1202, %v1125
        %v1204 = vpop.permute.xlu0 %1203
        %v1206 = vmul.f32 %v1078, %v1129
        %v1207 = vmul.f32 %v1079, %v1129
        %v1208 = vmul.f32 %v1080, %v1134
        %v1209 = vmul.f32 %v1081, %v1134
        %v1210 = vmul.f32 %v1082, %v1139
        %v1211 = vmul.f32 %v1083, %v1139
        %v1212 = vmul.f32 %v1084, %v1144
        %v1213 = vmul.f32 %v1085, %v1144
        %v1214 = vmul.f32 %v1086, %v1149
        %v1215 = vmul.f32 %v1087, %v1149
        %v1216 = vmul.f32 %v1088, %v1154
        %v1217 = vmul.f32 %v1089, %v1154
        %v1218 = vmul.f32 %v1090, %v1159
        %v1219 = vmul.f32 %v1091, %v1159
        %v1220 = vmul.f32 %v1092, %v1164
        %v1221 = vmul.f32 %v1093, %v1164
        %v1222 = vmul.f32 %v1094, %v1169
        %v1223 = vmul.f32 %v1095, %v1169
        %v1224 = vmul.f32 %v1096, %v1174
        %v1225 = vmul.f32 %v1097, %v1174
        %v1226 = vmul.f32 %v1098, %v1179
        %v1227 = vmul.f32 %v1099, %v1179
        %v1228 = vmul.f32 %v1100, %v1184
        %v1229 = vmul.f32 %v1101, %v1184
        %v1230 = vmul.f32 %v1102, %v1189
        %v1231 = vmul.f32 %v1103, %v1189
        %v1232 = vmul.f32 %v1104, %v1194
        %v1233 = vmul.f32 %v1105, %v1194
        %v1234 = vmul.f32 %v1106, %v1199
        %v1235 = vmul.f32 %v1107, %v1199
        %v1236 = vmul.f32 %v1108, %v1204
        %v1237 = vmul.f32 %v1109, %v1204
        %v1238 = vld [vmem:[%s2] sm:$0xff]
        %v1239 = vld [vmem:[%s2 + $0x8] sm:$0xff]
        %v1240 = vld [vmem:[%s2 + $0x10] sm:$0xff]
        %v1241 = vld [vmem:[%s2 + $0x18] sm:$0xff]
        %v1242 = vld [vmem:[%s2 + $0x20] sm:$0xff]
        %v1243 = vld [vmem:[%s2 + $0x28] sm:$0xff]
        %v1244 = vld [vmem:[%s2 + $0x30] sm:$0xff]
        %v1245 = vld [vmem:[%s2 + $0x38] sm:$0xff]
        %v1246 = vld [vmem:[%s2 + $0x40] sm:$0xff]
        %v1247 = vld [vmem:[%s2 + $0x48] sm:$0xff]
        %v1248 = vld [vmem:[%s2 + $0x50] sm:$0xff]
        %v1249 = vld [vmem:[%s2 + $0x58] sm:$0xff]
        %v1250 = vld [vmem:[%s2 + $0x60] sm:$0xff]
        %v1251 = vld [vmem:[%s2 + $0x68] sm:$0xff]
        %v1252 = vld [vmem:[%s2 + $0x70] sm:$0xff]
        %v1253 = vld [vmem:[%s2 + $0x78] sm:$0xff]
        %1255 = vset.pattern.permute.xlu0 0
        %1256 = vperm.xlu0 %1255, %v1238
        %v1257 = vpop.permute.xlu0 %1256
        %1260 = vset.pattern.permute.xlu0 0
        %1261 = vperm.xlu0 %1260, %v1239
        %v1262 = vpop.permute.xlu0 %1261
        %1265 = vset.pattern.permute.xlu0 0
        %1266 = vperm.xlu0 %1265, %v1240
        %v1267 = vpop.permute.xlu0 %1266
        %1270 = vset.pattern.permute.xlu0 0
        %1271 = vperm.xlu0 %1270, %v1241
        %v1272 = vpop.permute.xlu0 %1271
        %1275 = vset.pattern.permute.xlu0 0
        %1276 = vperm.xlu0 %1275, %v1242
        %v1277 = vpop.permute.xlu0 %1276
        %1280 = vset.pattern.permute.xlu0 0
        %1281 = vperm.xlu0 %1280, %v1243
        %v1282 = vpop.permute.xlu0 %1281
        %1285 = vset.pattern.permute.xlu0 0
        %1286 = vperm.xlu0 %1285, %v1244
        %v1287 = vpop.permute.xlu0 %1286
        %1290 = vset.pattern.permute.xlu0 0
        %1291 = vperm.xlu0 %1290, %v1245
        %v1292 = vpop.permute.xlu0 %1291
        %1295 = vset.pattern.permute.xlu0 0
        %1296 = vperm.xlu0 %1295, %v1246
        %v1297 = vpop.permute.xlu0 %1296
        %1300 = vset.pattern.permute.xlu0 0
        %1301 = vperm.xlu0 %1300, %v1247
        %v1302 = vpop.permute.xlu0 %1301
        %1305 = vset.pattern.permute.xlu0 0
        %1306 = vperm.xlu0 %1305, %v1248
        %v1307 = vpop.permute.xlu0 %1306
        %1310 = vset.pattern.permute.xlu0 0
        %1311 = vperm.xlu0 %1310, %v1249
        %v1312 = vpop.permute.xlu0 %1311
        %1315 = vset.pattern.permute.xlu0 0
        %1316 = vperm.xlu0 %1315, %v1250
        %v1317 = vpop.permute.xlu0 %1316
        %1320 = vset.pattern.permute.xlu0 0
        %1321 = vperm.xlu0 %1320, %v1251
        %v1322 = vpop.permute.xlu0 %1321
        %1325 = vset.pattern.permute.xlu0 0
        %1326 = vperm.xlu0 %1325, %v1252
        %v1327 = vpop.permute.xlu0 %1326
        %1330 = vset.pattern.permute.xlu0 0
        %1331 = vperm.xlu0 %1330, %v1253
        %v1332 = vpop.permute.xlu0 %1331
        %v1334 = vadd.f32 %v1206, %v1257
        %v1335 = vadd.f32 %v1207, %v1257
        %v1336 = vadd.f32 %v1208, %v1262
        %v1337 = vadd.f32 %v1209, %v1262
        %v1338 = vadd.f32 %v1210, %v1267
        %v1339 = vadd.f32 %v1211, %v1267
        %v1340 = vadd.f32 %v1212, %v1272
        %v1341 = vadd.f32 %v1213, %v1272
        %v1342 = vadd.f32 %v1214, %v1277
        %v1343 = vadd.f32 %v1215, %v1277
        %v1344 = vadd.f32 %v1216, %v1282
        %v1345 = vadd.f32 %v1217, %v1282
        %v1346 = vadd.f32 %v1218, %v1287
        %v1347 = vadd.f32 %v1219, %v1287
        %v1348 = vadd.f32 %v1220, %v1292
        %v1349 = vadd.f32 %v1221, %v1292
        %v1350 = vadd.f32 %v1222, %v1297
        %v1351 = vadd.f32 %v1223, %v1297
        %v1352 = vadd.f32 %v1224, %v1302
        %v1353 = vadd.f32 %v1225, %v1302
        %v1354 = vadd.f32 %v1226, %v1307
        %v1355 = vadd.f32 %v1227, %v1307
        %v1356 = vadd.f32 %v1228, %v1312
        %v1357 = vadd.f32 %v1229, %v1312
        %v1358 = vadd.f32 %v1230, %v1317
        %v1359 = vadd.f32 %v1231, %v1317
        %v1360 = vadd.f32 %v1232, %v1322
        %v1361 = vadd.f32 %v1233, %v1322
        %v1362 = vadd.f32 %v1234, %v1327
        %v1363 = vadd.f32 %v1235, %v1327
        %v1364 = vadd.f32 %v1236, %v1332
        %v1365 = vadd.f32 %v1237, %v1332
        %1366 = vxpose.xlu0.b32.start [1/16] %v388, 128
        %1367 = vxpose.xlu0.b32.cont [2/16] %v390, 128
        %1368 = vxpose.xlu0.b32.cont [3/16] %v392, 128
        %1369 = vxpose.xlu0.b32.cont [4/16] %v394, 128
        %1370 = vxpose.xlu0.b32.cont [5/16] %v396, 128
        %1371 = vxpose.xlu0.b32.cont [6/16] %v398, 128
        %1372 = vxpose.xlu0.b32.cont [7/16] %v400, 128
        %1373 = vxpose.xlu0.b32.cont [8/16] %v402, 128
        %1374 = vxpose.xlu0.b32.cont [9/16] %v404, 128
        %1375 = vxpose.xlu0.b32.cont [10/16] %v406, 128
        %1376 = vxpose.xlu0.b32.cont [11/16] %v408, 128
        %1377 = vxpose.xlu0.b32.cont [12/16] %v410, 128
        %1378 = vxpose.xlu0.b32.cont [13/16] %v412, 128
        %1379 = vxpose.xlu0.b32.cont [14/16] %v414, 128
        %1380 = vxpose.xlu0.b32.cont [15/16] %v416, 128
        %1381 = vxpose.xlu0.b32.end [16/16] %v418, 128
        %v1382 = vpop.trf.xlu0
        %v1383 = vpop.trf.xlu0
        %v1384 = vpop.trf.xlu0
        %v1385 = vpop.trf.xlu0
        %v1386 = vpop.trf.xlu0
        %v1387 = vpop.trf.xlu0
        %v1388 = vpop.trf.xlu0
        %v1389 = vpop.trf.xlu0
        %v1390 = vpop.trf.xlu0
        %v1391 = vpop.trf.xlu0
        %v1392 = vpop.trf.xlu0
        %v1393 = vpop.trf.xlu0
        %v1394 = vpop.trf.xlu0
        %v1395 = vpop.trf.xlu0
        %v1396 = vpop.trf.xlu0
        %v1397 = vpop.trf.xlu0
        %1398 = vxpose.xlu0.b32.start [1/16] %v389, 128
        %1399 = vxpose.xlu0.b32.cont [2/16] %v391, 128
        %1400 = vxpose.xlu0.b32.cont [3/16] %v393, 128
        %1401 = vxpose.xlu0.b32.cont [4/16] %v395, 128
        %1402 = vxpose.xlu0.b32.cont [5/16] %v397, 128
        %1403 = vxpose.xlu0.b32.cont [6/16] %v399, 128
        %1404 = vxpose.xlu0.b32.cont [7/16] %v401, 128
        %1405 = vxpose.xlu0.b32.cont [8/16] %v403, 128
        %1406 = vxpose.xlu0.b32.cont [9/16] %v405, 128
        %1407 = vxpose.xlu0.b32.cont [10/16] %v407, 128
        %1408 = vxpose.xlu0.b32.cont [11/16] %v409, 128
        %1409 = vxpose.xlu0.b32.cont [12/16] %v411, 128
        %1410 = vxpose.xlu0.b32.cont [13/16] %v413, 128
        %1411 = vxpose.xlu0.b32.cont [14/16] %v415, 128
        %1412 = vxpose.xlu0.b32.cont [15/16] %v417, 128
        %1413 = vxpose.xlu0.b32.end [16/16] %v419, 128
        %v1414 = vpop.trf.xlu0
        %v1415 = vpop.trf.xlu0
        %v1416 = vpop.trf.xlu0
        %v1417 = vpop.trf.xlu0
        %v1418 = vpop.trf.xlu0
        %v1419 = vpop.trf.xlu0
        %v1420 = vpop.trf.xlu0
        %v1421 = vpop.trf.xlu0
        %v1422 = vpop.trf.xlu0
        %v1423 = vpop.trf.xlu0
        %v1424 = vpop.trf.xlu0
        %v1425 = vpop.trf.xlu0
        %v1426 = vpop.trf.xlu0
        %v1427 = vpop.trf.xlu0
        %v1428 = vpop.trf.xlu0
        %v1429 = vpop.trf.xlu0
        %1430 = vst [vmem:[#allocation2] sm:$0xff] %v1382
        %1431 = vst [vmem:[#allocation2 + $0x8] sm:$0xff] %v1383
        %1432 = vst [vmem:[#allocation2 + $0x10] sm:$0xff] %v1384
        %1433 = vst [vmem:[#allocation2 + $0x18] sm:$0xff] %v1385
        %1434 = vst [vmem:[#allocation2 + $0x20] sm:$0xff] %v1386
        %1435 = vst [vmem:[#allocation2 + $0x28] sm:$0xff] %v1387
        %1436 = vst [vmem:[#allocation2 + $0x30] sm:$0xff] %v1388
        %1437 = vst [vmem:[#allocation2 + $0x38] sm:$0xff] %v1389
        %1438 = vst [vmem:[#allocation2 + $0x40] sm:$0xff] %v1390
        %1439 = vst [vmem:[#allocation2 + $0x48] sm:$0xff] %v1391
        %1440 = vst [vmem:[#allocation2 + $0x50] sm:$0xff] %v1392
        %1441 = vst [vmem:[#allocation2 + $0x58] sm:$0xff] %v1393
        %1442 = vst [vmem:[#allocation2 + $0x60] sm:$0xff] %v1394
        %1443 = vst [vmem:[#allocation2 + $0x68] sm:$0xff] %v1395
        %1444 = vst [vmem:[#allocation2 + $0x70] sm:$0xff] %v1396
        %1445 = vst [vmem:[#allocation2 + $0x78] sm:$0xff] %v1397
        %1446 = vst [vmem:[#allocation2 + $0x80] sm:$0xff] %v1414
        %1447 = vst [vmem:[#allocation2 + $0x88] sm:$0xff] %v1415
        %1448 = vst [vmem:[#allocation2 + $0x90] sm:$0xff] %v1416
        %1449 = vst [vmem:[#allocation2 + $0x98] sm:$0xff] %v1417
        %1450 = vst [vmem:[#allocation2 + $0xa0] sm:$0xff] %v1418
        %1451 = vst [vmem:[#allocation2 + $0xa8] sm:$0xff] %v1419
        %1452 = vst [vmem:[#allocation2 + $0xb0] sm:$0xff] %v1420
        %1453 = vst [vmem:[#allocation2 + $0xb8] sm:$0xff] %v1421
        %1454 = vst [vmem:[#allocation2 + $0xc0] sm:$0xff] %v1422
        %1455 = vst [vmem:[#allocation2 + $0xc8] sm:$0xff] %v1423
        %1456 = vst [vmem:[#allocation2 + $0xd0] sm:$0xff] %v1424
        %1457 = vst [vmem:[#allocation2 + $0xd8] sm:$0xff] %v1425
        %1458 = vst [vmem:[#allocation2 + $0xe0] sm:$0xff] %v1426
        %1459 = vst [vmem:[#allocation2 + $0xe8] sm:$0xff] %v1427
        %1460 = vst [vmem:[#allocation2 + $0xf0] sm:$0xff] %v1428
        %1461 = vst [vmem:[#allocation2 + $0xf8] sm:$0xff] %v1429
        %1462 = vxpose.xlu0.b32.start [1/16] %v1334, 128
        %1463 = vxpose.xlu0.b32.cont [2/16] %v1336, 128
        %1464 = vxpose.xlu0.b32.cont [3/16] %v1338, 128
        %1465 = vxpose.xlu0.b32.cont [4/16] %v1340, 128
        %1466 = vxpose.xlu0.b32.cont [5/16] %v1342, 128
        %1467 = vxpose.xlu0.b32.cont [6/16] %v1344, 128
        %1468 = vxpose.xlu0.b32.cont [7/16] %v1346, 128
        %1469 = vxpose.xlu0.b32.cont [8/16] %v1348, 128
        %1470 = vxpose.xlu0.b32.cont [9/16] %v1350, 128
        %1471 = vxpose.xlu0.b32.cont [10/16] %v1352, 128
        %1472 = vxpose.xlu0.b32.cont [11/16] %v1354, 128
        %1473 = vxpose.xlu0.b32.cont [12/16] %v1356, 128
        %1474 = vxpose.xlu0.b32.cont [13/16] %v1358, 128
        %1475 = vxpose.xlu0.b32.cont [14/16] %v1360, 128
        %1476 = vxpose.xlu0.b32.cont [15/16] %v1362, 128
        %1477 = vxpose.xlu0.b32.end [16/16] %v1364, 128
        %v1478 = vpop.trf.xlu0
        %v1479 = vpop.trf.xlu0
        %v1480 = vpop.trf.xlu0
        %v1481 = vpop.trf.xlu0
        %v1482 = vpop.trf.xlu0
        %v1483 = vpop.trf.xlu0
        %v1484 = vpop.trf.xlu0
        %v1485 = vpop.trf.xlu0
        %v1486 = vpop.trf.xlu0
        %v1487 = vpop.trf.xlu0
        %v1488 = vpop.trf.xlu0
        %v1489 = vpop.trf.xlu0
        %v1490 = vpop.trf.xlu0
        %v1491 = vpop.trf.xlu0
        %v1492 = vpop.trf.xlu0
        %v1493 = vpop.trf.xlu0
        %1494 = vxpose.xlu0.b32.start [1/16] %v1335, 128
        %1495 = vxpose.xlu0.b32.cont [2/16] %v1337, 128
        %1496 = vxpose.xlu0.b32.cont [3/16] %v1339, 128
        %1497 = vxpose.xlu0.b32.cont [4/16] %v1341, 128
        %1498 = vxpose.xlu0.b32.cont [5/16] %v1343, 128
        %1499 = vxpose.xlu0.b32.cont [6/16] %v1345, 128
        %1500 = vxpose.xlu0.b32.cont [7/16] %v1347, 128
        %1501 = vxpose.xlu0.b32.cont [8/16] %v1349, 128
        %1502 = vxpose.xlu0.b32.cont [9/16] %v1351, 128
        %1503 = vxpose.xlu0.b32.cont [10/16] %v1353, 128
        %1504 = vxpose.xlu0.b32.cont [11/16] %v1355, 128
        %1505 = vxpose.xlu0.b32.cont [12/16] %v1357, 128
        %1506 = vxpose.xlu0.b32.cont [13/16] %v1359, 128
        %1507 = vxpose.xlu0.b32.cont [14/16] %v1361, 128
        %1508 = vxpose.xlu0.b32.cont [15/16] %v1363, 128
        %1509 = vxpose.xlu0.b32.end [16/16] %v1365, 128
        %v1510 = vpop.trf.xlu0
        %v1511 = vpop.trf.xlu0
        %v1512 = vpop.trf.xlu0
        %v1513 = vpop.trf.xlu0
        %v1514 = vpop.trf.xlu0
        %v1515 = vpop.trf.xlu0
        %v1516 = vpop.trf.xlu0
        %v1517 = vpop.trf.xlu0
        %v1518 = vpop.trf.xlu0
        %v1519 = vpop.trf.xlu0
        %v1520 = vpop.trf.xlu0
        %v1521 = vpop.trf.xlu0
        %v1522 = vpop.trf.xlu0
        %v1523 = vpop.trf.xlu0
        %v1524 = vpop.trf.xlu0
        %v1525 = vpop.trf.xlu0
        %v1526 = vpack.c.bf16 %v1479, %v1478
        %v1527 = vpack.c.bf16 %v1481, %v1480
        %v1528 = vpack.c.bf16 %v1483, %v1482
        %v1529 = vpack.c.bf16 %v1485, %v1484
        %v1530 = vpack.c.bf16 %v1487, %v1486
        %v1531 = vpack.c.bf16 %v1489, %v1488
        %v1532 = vpack.c.bf16 %v1491, %v1490
        %v1533 = vpack.c.bf16 %v1493, %v1492
        %v1534 = vpack.c.bf16 %v1511, %v1510
        %v1535 = vpack.c.bf16 %v1513, %v1512
        %v1536 = vpack.c.bf16 %v1515, %v1514
        %v1537 = vpack.c.bf16 %v1517, %v1516
        %v1538 = vpack.c.bf16 %v1519, %v1518
        %v1539 = vpack.c.bf16 %v1521, %v1520
        %v1540 = vpack.c.bf16 %v1523, %v1522
        %v1541 = vpack.c.bf16 %v1525, %v1524
        %v1542 = vld [vmem:[%s4] sm:$0xff]
        %v1543 = vld [vmem:[%s4 + $0x8] sm:$0xff]
        %v1544 = vld [vmem:[%s4 + $0x10] sm:$0xff]
        %v1545 = vld [vmem:[%s4 + $0x18] sm:$0xff]
        %v1546 = vld [vmem:[%s4 + $0x20] sm:$0xff]
        %v1547 = vld [vmem:[%s4 + $0x28] sm:$0xff]
        %v1548 = vld [vmem:[%s4 + $0x30] sm:$0xff]
        %v1549 = vld [vmem:[%s4 + $0x38] sm:$0xff]
        %v1550 = vld [vmem:[%s4 + $0x40] sm:$0xff]
        %v1551 = vld [vmem:[%s4 + $0x48] sm:$0xff]
        %v1552 = vld [vmem:[%s4 + $0x50] sm:$0xff]
        %v1553 = vld [vmem:[%s4 + $0x58] sm:$0xff]
        %v1554 = vld [vmem:[%s4 + $0x60] sm:$0xff]
        %v1555 = vld [vmem:[%s4 + $0x68] sm:$0xff]
        %v1556 = vld [vmem:[%s4 + $0x70] sm:$0xff]
        %v1557 = vld [vmem:[%s4 + $0x78] sm:$0xff]
        %v1558 = vld [vmem:[%s5] sm:$0x3]
        %v1560 = vlaneseq
        %v1561 = vshrl.u32 %v1560, 7
        %v1562 = vsub.s32 0, %v1561
        %v1563 = vrot.slane %v1558, %v1562
        %v1564 = vlaneseq
        %v1565 = vshrl.u32 %v1564, 7
        %v1566 = vsub.s32 1, %v1565
        %v1567 = vrot.slane %v1558, %v1566
        %v1586 = vunpack.c.l.b16 %v1542
        %v1587 = vunpack.c.h.b16 %v1542
        %v1588 = vunpack.c.l.b16 %v1543
        %v1589 = vunpack.c.h.b16 %v1543
        %v1590 = vunpack.c.l.b16 %v1544
        %v1591 = vunpack.c.h.b16 %v1544
        %v1592 = vunpack.c.l.b16 %v1545
        %v1593 = vunpack.c.h.b16 %v1545
        %v1594 = vunpack.c.l.b16 %v1546
        %v1595 = vunpack.c.h.b16 %v1546
        %v1596 = vunpack.c.l.b16 %v1547
        %v1597 = vunpack.c.h.b16 %v1547
        %v1598 = vunpack.c.l.b16 %v1548
        %v1599 = vunpack.c.h.b16 %v1548
        %v1600 = vunpack.c.l.b16 %v1549
        %v1601 = vunpack.c.h.b16 %v1549
        %v1602 = vunpack.c.l.b16 %v1550
        %v1603 = vunpack.c.h.b16 %v1550
        %v1604 = vunpack.c.l.b16 %v1551
        %v1605 = vunpack.c.h.b16 %v1551
        %v1606 = vunpack.c.l.b16 %v1552
        %v1607 = vunpack.c.h.b16 %v1552
        %v1608 = vunpack.c.l.b16 %v1553
        %v1609 = vunpack.c.h.b16 %v1553
        %v1610 = vunpack.c.l.b16 %v1554
        %v1611 = vunpack.c.h.b16 %v1554
        %v1612 = vunpack.c.l.b16 %v1555
        %v1613 = vunpack.c.h.b16 %v1555
        %v1614 = vunpack.c.l.b16 %v1556
        %v1615 = vunpack.c.h.b16 %v1556
        %v1616 = vunpack.c.l.b16 %v1557
        %v1617 = vunpack.c.h.b16 %v1557
        %v1618 = vpack.c.b16 %v1588, %v1586
        %v1619 = vpack.c.b16 %v1589, %v1587
        %v1620 = vpack.c.b16 %v1592, %v1590
        %v1621 = vpack.c.b16 %v1593, %v1591
        %v1622 = vpack.c.b16 %v1596, %v1594
        %v1623 = vpack.c.b16 %v1597, %v1595
        %v1624 = vpack.c.b16 %v1600, %v1598
        %v1625 = vpack.c.b16 %v1601, %v1599
        %v1626 = vpack.c.b16 %v1604, %v1602
        %v1627 = vpack.c.b16 %v1605, %v1603
        %v1628 = vpack.c.b16 %v1608, %v1606
        %v1629 = vpack.c.b16 %v1609, %v1607
        %v1630 = vpack.c.b16 %v1612, %v1610
        %v1631 = vpack.c.b16 %v1613, %v1611
        %v1632 = vpack.c.b16 %v1616, %v1614
        %v1633 = vpack.c.b16 %v1617, %v1615
        %1650 = vmatprep.subr.bf16.mxu0 %v1633
        %1651 = vmatpush1.bf16.msra.mxu0 %v1632
        %1652 = vmatprep.subr.bf16.mxu0 %v1631
        %1653 = vmatpush1.bf16.msra.mxu0 %v1630
        %1654 = vmatprep.subr.bf16.mxu0 %v1629
        %1655 = vmatpush1.bf16.msra.mxu0 %v1628
        %1656 = vmatprep.subr.bf16.mxu0 %v1627
        %1657 = vmatpush1.bf16.msra.mxu0 %v1626
        %1658 = vmatprep.subr.bf16.mxu0 %v1625
        %1659 = vmatpush1.bf16.msra.mxu0 %v1624
        %1660 = vmatprep.subr.bf16.mxu0 %v1623
        %1661 = vmatpush1.bf16.msra.mxu0 %v1622
        %1662 = vmatprep.subr.bf16.mxu0 %v1621
        %1663 = vmatpush1.bf16.msra.mxu0 %v1620
        %1664 = vmatprep.subr.bf16.mxu0 %v1619
        %1665 = vmatpush1.bf16.msra.mxu0 %v1618
        %1666 = vmatprep.subr.bf16.mxu0 0
        %1667 = vmatpush2.bf16.msra.mxu0 0
        %1668 = vmatprep.subr.bf16.mxu0 0
        %1669 = vmatpush2.bf16.msra.mxu0 0
        %1670 = vmatprep.subr.bf16.mxu0 0
        %1671 = vmatpush2.bf16.msra.mxu0 0
        %1672 = vmatprep.subr.bf16.mxu0 0
        %1673 = vmatpush2.bf16.msra.mxu0 0
        %1674 = vmatprep.subr.bf16.mxu0 0
        %1675 = vmatpush2.bf16.msra.mxu0 0
        %1676 = vmatprep.subr.bf16.mxu0 0
        %1677 = vmatpush2.bf16.msra.mxu0 0
        %1678 = vmatprep.subr.bf16.mxu0 0
        %1679 = vmatpush2.bf16.msra.mxu0 0
        %1680 = vmatprep.subr.bf16.mxu0 0
        %1681 = vmatpush2.bf16.msra.mxu0 0
        %1682 = vmatprep.mubr.bf16.mxu0 0
        %1683 = vmatmul.mubr.bf16.gmra.mxu0 %v1526
        %v1684 = vpop.f32.mrf.mxu0
        %v1685 = vadd.f32 %v1563, %v1684
        %v1686 = vpop.f32.mrf.mxu0
        %v1687 = vadd.f32 %v1567, %v1686
        %v1688 = vpop.f32.mrf.mxu0
        %v1689 = vadd.f32 %v1563, %v1688
        %v1690 = vpop.f32.mrf.mxu0
        %v1691 = vadd.f32 %v1567, %v1690
        %1692 = vmatprep.mubr.bf16.mxu0 0
        %1693 = vmatmul.mubr.bf16.gmra.mxu0 %v1527
        %v1694 = vpop.f32.mrf.mxu0
        %v1695 = vadd.f32 %v1563, %v1694
        %v1696 = vpop.f32.mrf.mxu0
        %v1697 = vadd.f32 %v1567, %v1696
        %v1698 = vpop.f32.mrf.mxu0
        %v1699 = vadd.f32 %v1563, %v1698
        %v1700 = vpop.f32.mrf.mxu0
        %v1701 = vadd.f32 %v1567, %v1700
        %1702 = vmatprep.mubr.bf16.mxu0 0
        %1703 = vmatmul.mubr.bf16.gmra.mxu0 %v1528
        %v1704 = vpop.f32.mrf.mxu0
        %v1705 = vadd.f32 %v1563, %v1704
        %v1706 = vpop.f32.mrf.mxu0
        %v1707 = vadd.f32 %v1567, %v1706
        %v1708 = vpop.f32.mrf.mxu0
        %v1709 = vadd.f32 %v1563, %v1708
        %v1710 = vpop.f32.mrf.mxu0
        %v1711 = vadd.f32 %v1567, %v1710
        %1712 = vmatprep.mubr.bf16.mxu0 0
        %1713 = vmatmul.mubr.bf16.gmra.mxu0 %v1529
        %v1714 = vpop.f32.mrf.mxu0
        %v1715 = vadd.f32 %v1563, %v1714
        %v1716 = vpop.f32.mrf.mxu0
        %v1717 = vadd.f32 %v1567, %v1716
        %v1718 = vpop.f32.mrf.mxu0
        %v1719 = vadd.f32 %v1563, %v1718
        %v1720 = vpop.f32.mrf.mxu0
        %v1721 = vadd.f32 %v1567, %v1720
        %1722 = vmatprep.mubr.bf16.mxu0 0
        %1723 = vmatmul.mubr.bf16.gmra.mxu0 %v1530
        %v1724 = vpop.f32.mrf.mxu0
        %v1725 = vadd.f32 %v1563, %v1724
        %v1726 = vpop.f32.mrf.mxu0
        %v1727 = vadd.f32 %v1567, %v1726
        %v1728 = vpop.f32.mrf.mxu0
        %v1729 = vadd.f32 %v1563, %v1728
        %v1730 = vpop.f32.mrf.mxu0
        %v1731 = vadd.f32 %v1567, %v1730
        %1732 = vmatprep.mubr.bf16.mxu0 0
        %1733 = vmatmul.mubr.bf16.gmra.mxu0 %v1531
        %v1734 = vpop.f32.mrf.mxu0
        %v1735 = vadd.f32 %v1563, %v1734
        %v1736 = vpop.f32.mrf.mxu0
        %v1737 = vadd.f32 %v1567, %v1736
        %v1738 = vpop.f32.mrf.mxu0
        %v1739 = vadd.f32 %v1563, %v1738
        %v1740 = vpop.f32.mrf.mxu0
        %v1741 = vadd.f32 %v1567, %v1740
        %1742 = vmatprep.mubr.bf16.mxu0 0
        %1743 = vmatmul.mubr.bf16.gmra.mxu0 %v1532
        %v1744 = vpop.f32.mrf.mxu0
        %v1745 = vadd.f32 %v1563, %v1744
        %v1746 = vpop.f32.mrf.mxu0
        %v1747 = vadd.f32 %v1567, %v1746
        %v1748 = vpop.f32.mrf.mxu0
        %v1749 = vadd.f32 %v1563, %v1748
        %v1750 = vpop.f32.mrf.mxu0
        %v1751 = vadd.f32 %v1567, %v1750
        %1752 = vmatprep.mubr.bf16.mxu0 0
        %1753 = vmatmul.mubr.bf16.gmra.mxu0 %v1533
        %v1754 = vpop.f32.mrf.mxu0
        %v1755 = vadd.f32 %v1563, %v1754
        %v1756 = vpop.f32.mrf.mxu0
        %v1757 = vadd.f32 %v1567, %v1756
        %v1758 = vpop.f32.mrf.mxu0
        %v1759 = vadd.f32 %v1563, %v1758
        %v1760 = vpop.f32.mrf.mxu0
        %v1761 = vadd.f32 %v1567, %v1760
        %1762 = vmatprep.mubr.bf16.mxu0 0
        %1763 = vmatmul.mubr.bf16.gmra.mxu0 %v1534
        %v1764 = vpop.f32.mrf.mxu0
        %v1765 = vadd.f32 %v1563, %v1764
        %v1766 = vpop.f32.mrf.mxu0
        %v1767 = vadd.f32 %v1567, %v1766
        %v1768 = vpop.f32.mrf.mxu0
        %v1769 = vadd.f32 %v1563, %v1768
        %v1770 = vpop.f32.mrf.mxu0
        %v1771 = vadd.f32 %v1567, %v1770
        %1772 = vmatprep.mubr.bf16.mxu0 0
        %1773 = vmatmul.mubr.bf16.gmra.mxu0 %v1535
        %v1774 = vpop.f32.mrf.mxu0
        %v1775 = vadd.f32 %v1563, %v1774
        %v1776 = vpop.f32.mrf.mxu0
        %v1777 = vadd.f32 %v1567, %v1776
        %v1778 = vpop.f32.mrf.mxu0
        %v1779 = vadd.f32 %v1563, %v1778
        %v1780 = vpop.f32.mrf.mxu0
        %v1781 = vadd.f32 %v1567, %v1780
        %1782 = vmatprep.mubr.bf16.mxu0 0
        %1783 = vmatmul.mubr.bf16.gmra.mxu0 %v1536
        %v1784 = vpop.f32.mrf.mxu0
        %v1785 = vadd.f32 %v1563, %v1784
        %v1786 = vpop.f32.mrf.mxu0
        %v1787 = vadd.f32 %v1567, %v1786
        %v1788 = vpop.f32.mrf.mxu0
        %v1789 = vadd.f32 %v1563, %v1788
        %v1790 = vpop.f32.mrf.mxu0
        %v1791 = vadd.f32 %v1567, %v1790
        %1792 = vmatprep.mubr.bf16.mxu0 0
        %1793 = vmatmul.mubr.bf16.gmra.mxu0 %v1537
        %v1794 = vpop.f32.mrf.mxu0
        %v1795 = vadd.f32 %v1563, %v1794
        %v1796 = vpop.f32.mrf.mxu0
        %v1797 = vadd.f32 %v1567, %v1796
        %v1798 = vpop.f32.mrf.mxu0
        %v1799 = vadd.f32 %v1563, %v1798
        %v1800 = vpop.f32.mrf.mxu0
        %v1801 = vadd.f32 %v1567, %v1800
        %1802 = vmatprep.mubr.bf16.mxu0 0
        %1803 = vmatmul.mubr.bf16.gmra.mxu0 %v1538
        %v1804 = vpop.f32.mrf.mxu0
        %v1805 = vadd.f32 %v1563, %v1804
        %v1806 = vpop.f32.mrf.mxu0
        %v1807 = vadd.f32 %v1567, %v1806
        %v1808 = vpop.f32.mrf.mxu0
        %v1809 = vadd.f32 %v1563, %v1808
        %v1810 = vpop.f32.mrf.mxu0
        %v1811 = vadd.f32 %v1567, %v1810
        %1812 = vmatprep.mubr.bf16.mxu0 0
        %1813 = vmatmul.mubr.bf16.gmra.mxu0 %v1539
        %v1814 = vpop.f32.mrf.mxu0
        %v1815 = vadd.f32 %v1563, %v1814
        %v1816 = vpop.f32.mrf.mxu0
        %v1817 = vadd.f32 %v1567, %v1816
        %v1818 = vpop.f32.mrf.mxu0
        %v1819 = vadd.f32 %v1563, %v1818
        %v1820 = vpop.f32.mrf.mxu0
        %v1821 = vadd.f32 %v1567, %v1820
        %1822 = vmatprep.mubr.bf16.mxu0 0
        %1823 = vmatmul.mubr.bf16.gmra.mxu0 %v1540
        %v1824 = vpop.f32.mrf.mxu0
        %v1825 = vadd.f32 %v1563, %v1824
        %v1826 = vpop.f32.mrf.mxu0
        %v1827 = vadd.f32 %v1567, %v1826
        %v1828 = vpop.f32.mrf.mxu0
        %v1829 = vadd.f32 %v1563, %v1828
        %v1830 = vpop.f32.mrf.mxu0
        %v1831 = vadd.f32 %v1567, %v1830
        %1832 = vmatprep.mubr.bf16.mxu0 0
        %1833 = vmatmul.mubr.bf16.gmra.mxu0 %v1541
        %v1834 = vpop.f32.mrf.mxu0
        %v1835 = vadd.f32 %v1563, %v1834
        %v1836 = vpop.f32.mrf.mxu0
        %v1837 = vadd.f32 %v1567, %v1836
        %v1838 = vpop.f32.mrf.mxu0
        %v1839 = vadd.f32 %v1563, %v1838
        %v1840 = vpop.f32.mrf.mxu0
        %v1841 = vadd.f32 %v1567, %v1840
        %1842 = vdwg.mxu0
        %v1843 = vpack.c.bf16 %v1689, %v1685
        %v1844 = vpack.c.bf16 %v1699, %v1695
        %v1845 = vpack.c.bf16 %v1709, %v1705
        %v1846 = vpack.c.bf16 %v1719, %v1715
        %v1847 = vpack.c.bf16 %v1729, %v1725
        %v1848 = vpack.c.bf16 %v1739, %v1735
        %v1849 = vpack.c.bf16 %v1749, %v1745
        %v1850 = vpack.c.bf16 %v1759, %v1755
        %v1851 = vpack.c.bf16 %v1769, %v1765
        %v1852 = vpack.c.bf16 %v1779, %v1775
        %v1853 = vpack.c.bf16 %v1789, %v1785
        %v1854 = vpack.c.bf16 %v1799, %v1795
        %v1855 = vpack.c.bf16 %v1809, %v1805
        %v1856 = vpack.c.bf16 %v1819, %v1815
        %v1857 = vpack.c.bf16 %v1829, %v1825
        %v1858 = vpack.c.bf16 %v1839, %v1835
        %v1875 = vunpack.c.l.b16 %v1843
        %v1876 = vunpack.c.h.b16 %v1843
        %v1877 = vunpack.c.l.b16 %v1844
        %v1878 = vunpack.c.h.b16 %v1844
        %v1879 = vunpack.c.l.b16 %v1845
        %v1880 = vunpack.c.h.b16 %v1845
        %v1881 = vunpack.c.l.b16 %v1846
        %v1882 = vunpack.c.h.b16 %v1846
        %v1883 = vunpack.c.l.b16 %v1847
        %v1884 = vunpack.c.h.b16 %v1847
        %v1885 = vunpack.c.l.b16 %v1848
        %v1886 = vunpack.c.h.b16 %v1848
        %v1887 = vunpack.c.l.b16 %v1849
        %v1888 = vunpack.c.h.b16 %v1849
        %v1889 = vunpack.c.l.b16 %v1850
        %v1890 = vunpack.c.h.b16 %v1850
        %v1891 = vunpack.c.l.b16 %v1851
        %v1892 = vunpack.c.h.b16 %v1851
        %v1893 = vunpack.c.l.b16 %v1852
        %v1894 = vunpack.c.h.b16 %v1852
        %v1895 = vunpack.c.l.b16 %v1853
        %v1896 = vunpack.c.h.b16 %v1853
        %v1897 = vunpack.c.l.b16 %v1854
        %v1898 = vunpack.c.h.b16 %v1854
        %v1899 = vunpack.c.l.b16 %v1855
        %v1900 = vunpack.c.h.b16 %v1855
        %v1901 = vunpack.c.l.b16 %v1856
        %v1902 = vunpack.c.h.b16 %v1856
        %v1903 = vunpack.c.l.b16 %v1857
        %v1904 = vunpack.c.h.b16 %v1857
        %v1905 = vunpack.c.l.b16 %v1858
        %v1906 = vunpack.c.h.b16 %v1858
        %v1907 = vpack.c.b16 %v1875, %v1875
        %v1908 = vpack.c.b16 %v1876, %v1876
        %v1909 = vpack.c.b16 %v1877, %v1877
        %v1910 = vpack.c.b16 %v1878, %v1878
        %v1911 = vpack.c.b16 %v1879, %v1879
        %v1912 = vpack.c.b16 %v1880, %v1880
        %v1913 = vpack.c.b16 %v1881, %v1881
        %v1914 = vpack.c.b16 %v1882, %v1882
        %v1915 = vpack.c.b16 %v1883, %v1883
        %v1916 = vpack.c.b16 %v1884, %v1884
        %v1917 = vpack.c.b16 %v1885, %v1885
        %v1918 = vpack.c.b16 %v1886, %v1886
        %v1919 = vpack.c.b16 %v1887, %v1887
        %v1920 = vpack.c.b16 %v1888, %v1888
        %v1921 = vpack.c.b16 %v1889, %v1889
        %v1922 = vpack.c.b16 %v1890, %v1890
        %v1923 = vpack.c.b16 %v1891, %v1891
        %v1924 = vpack.c.b16 %v1892, %v1892
        %v1925 = vpack.c.b16 %v1893, %v1893
        %v1926 = vpack.c.b16 %v1894, %v1894
        %v1927 = vpack.c.b16 %v1895, %v1895
        %v1928 = vpack.c.b16 %v1896, %v1896
        %v1929 = vpack.c.b16 %v1897, %v1897
        %v1930 = vpack.c.b16 %v1898, %v1898
        %v1931 = vpack.c.b16 %v1899, %v1899
        %v1932 = vpack.c.b16 %v1900, %v1900
        %v1933 = vpack.c.b16 %v1901, %v1901
        %v1934 = vpack.c.b16 %v1902, %v1902
        %v1935 = vpack.c.b16 %v1903, %v1903
        %v1936 = vpack.c.b16 %v1904, %v1904
        %v1937 = vpack.c.b16 %v1905, %v1905
        %v1938 = vpack.c.b16 %v1906, %v1906
        %1971 = vst [vmem:[#allocation3] sm:$0xf] %v1907
        %1972 = vst [vmem:[#allocation3 + $0x4] sm:$0xf] %v1908
        %1973 = vst [vmem:[#allocation3 + $0x8] sm:$0xf] %v1909
        %1974 = vst [vmem:[#allocation3 + $0xc] sm:$0xf] %v1910
        %1975 = vst [vmem:[#allocation3 + $0x10] sm:$0xf] %v1911
        %1976 = vst [vmem:[#allocation3 + $0x14] sm:$0xf] %v1912
        %1977 = vst [vmem:[#allocation3 + $0x18] sm:$0xf] %v1913
        %1978 = vst [vmem:[#allocation3 + $0x1c] sm:$0xf] %v1914
        %1979 = vst [vmem:[#allocation3 + $0x20] sm:$0xf] %v1915
        %1980 = vst [vmem:[#allocation3 + $0x24] sm:$0xf] %v1916
        %1981 = vst [vmem:[#allocation3 + $0x28] sm:$0xf] %v1917
        %1982 = vst [vmem:[#allocation3 + $0x2c] sm:$0xf] %v1918
        %1983 = vst [vmem:[#allocation3 + $0x30] sm:$0xf] %v1919
        %1984 = vst [vmem:[#allocation3 + $0x34] sm:$0xf] %v1920
        %1985 = vst [vmem:[#allocation3 + $0x38] sm:$0xf] %v1921
        %1986 = vst [vmem:[#allocation3 + $0x3c] sm:$0xf] %v1922
        %1987 = vst [vmem:[#allocation3 + $0x40] sm:$0xf] %v1923
        %1988 = vst [vmem:[#allocation3 + $0x44] sm:$0xf] %v1924
        %1989 = vst [vmem:[#allocation3 + $0x48] sm:$0xf] %v1925
        %1990 = vst [vmem:[#allocation3 + $0x4c] sm:$0xf] %v1926
        %1991 = vst [vmem:[#allocation3 + $0x50] sm:$0xf] %v1927
        %1992 = vst [vmem:[#allocation3 + $0x54] sm:$0xf] %v1928
        %1993 = vst [vmem:[#allocation3 + $0x58] sm:$0xf] %v1929
        %1994 = vst [vmem:[#allocation3 + $0x5c] sm:$0xf] %v1930
        %1995 = vst [vmem:[#allocation3 + $0x60] sm:$0xf] %v1931
        %1996 = vst [vmem:[#allocation3 + $0x64] sm:$0xf] %v1932
        %1997 = vst [vmem:[#allocation3 + $0x68] sm:$0xf] %v1933
        %1998 = vst [vmem:[#allocation3 + $0x6c] sm:$0xf] %v1934
        %1999 = vst [vmem:[#allocation3 + $0x70] sm:$0xf] %v1935
        %2000 = vst [vmem:[#allocation3 + $0x74] sm:$0xf] %v1936
        %2001 = vst [vmem:[#allocation3 + $0x78] sm:$0xf] %v1937
        %2002 = vst [vmem:[#allocation3 + $0x7c] sm:$0xf] %v1938
        %v2003 = vpack.c.bf16 %v1691, %v1687
        %v2004 = vpack.c.bf16 %v1701, %v1697
        %v2005 = vpack.c.bf16 %v1711, %v1707
        %v2006 = vpack.c.bf16 %v1721, %v1717
        %v2007 = vpack.c.bf16 %v1731, %v1727
        %v2008 = vpack.c.bf16 %v1741, %v1737
        %v2009 = vpack.c.bf16 %v1751, %v1747
        %v2010 = vpack.c.bf16 %v1761, %v1757
        %v2011 = vpack.c.bf16 %v1771, %v1767
        %v2012 = vpack.c.bf16 %v1781, %v1777
        %v2013 = vpack.c.bf16 %v1791, %v1787
        %v2014 = vpack.c.bf16 %v1801, %v1797
        %v2015 = vpack.c.bf16 %v1811, %v1807
        %v2016 = vpack.c.bf16 %v1821, %v1817
        %v2017 = vpack.c.bf16 %v1831, %v1827
        %v2018 = vpack.c.bf16 %v1841, %v1837
        %v2035 = vunpack.c.l.b16 %v2003
        %v2036 = vunpack.c.h.b16 %v2003
        %v2037 = vunpack.c.l.b16 %v2004
        %v2038 = vunpack.c.h.b16 %v2004
        %v2039 = vunpack.c.l.b16 %v2005
        %v2040 = vunpack.c.h.b16 %v2005
        %v2041 = vunpack.c.l.b16 %v2006
        %v2042 = vunpack.c.h.b16 %v2006
        %v2043 = vunpack.c.l.b16 %v2007
        %v2044 = vunpack.c.h.b16 %v2007
        %v2045 = vunpack.c.l.b16 %v2008
        %v2046 = vunpack.c.h.b16 %v2008
        %v2047 = vunpack.c.l.b16 %v2009
        %v2048 = vunpack.c.h.b16 %v2009
        %v2049 = vunpack.c.l.b16 %v2010
        %v2050 = vunpack.c.h.b16 %v2010
        %v2051 = vunpack.c.l.b16 %v2011
        %v2052 = vunpack.c.h.b16 %v2011
        %v2053 = vunpack.c.l.b16 %v2012
        %v2054 = vunpack.c.h.b16 %v2012
        %v2055 = vunpack.c.l.b16 %v2013
        %v2056 = vunpack.c.h.b16 %v2013
        %v2057 = vunpack.c.l.b16 %v2014
        %v2058 = vunpack.c.h.b16 %v2014
        %v2059 = vunpack.c.l.b16 %v2015
        %v2060 = vunpack.c.h.b16 %v2015
        %v2061 = vunpack.c.l.b16 %v2016
        %v2062 = vunpack.c.h.b16 %v2016
        %v2063 = vunpack.c.l.b16 %v2017
        %v2064 = vunpack.c.h.b16 %v2017
        %v2065 = vunpack.c.l.b16 %v2018
        %v2066 = vunpack.c.h.b16 %v2018
        %v2067 = vpack.c.b16 %v2035, %v2035
        %v2068 = vpack.c.b16 %v2036, %v2036
        %v2069 = vpack.c.b16 %v2037, %v2037
        %v2070 = vpack.c.b16 %v2038, %v2038
        %v2071 = vpack.c.b16 %v2039, %v2039
        %v2072 = vpack.c.b16 %v2040, %v2040
        %v2073 = vpack.c.b16 %v2041, %v2041
        %v2074 = vpack.c.b16 %v2042, %v2042
        %v2075 = vpack.c.b16 %v2043, %v2043
        %v2076 = vpack.c.b16 %v2044, %v2044
        %v2077 = vpack.c.b16 %v2045, %v2045
        %v2078 = vpack.c.b16 %v2046, %v2046
        %v2079 = vpack.c.b16 %v2047, %v2047
        %v2080 = vpack.c.b16 %v2048, %v2048
        %v2081 = vpack.c.b16 %v2049, %v2049
        %v2082 = vpack.c.b16 %v2050, %v2050
        %v2083 = vpack.c.b16 %v2051, %v2051
        %v2084 = vpack.c.b16 %v2052, %v2052
        %v2085 = vpack.c.b16 %v2053, %v2053
        %v2086 = vpack.c.b16 %v2054, %v2054
        %v2087 = vpack.c.b16 %v2055, %v2055
        %v2088 = vpack.c.b16 %v2056, %v2056
        %v2089 = vpack.c.b16 %v2057, %v2057
        %v2090 = vpack.c.b16 %v2058, %v2058
        %v2091 = vpack.c.b16 %v2059, %v2059
        %v2092 = vpack.c.b16 %v2060, %v2060
        %v2093 = vpack.c.b16 %v2061, %v2061
        %v2094 = vpack.c.b16 %v2062, %v2062
        %v2095 = vpack.c.b16 %v2063, %v2063
        %v2096 = vpack.c.b16 %v2064, %v2064
        %v2097 = vpack.c.b16 %v2065, %v2065
        %v2098 = vpack.c.b16 %v2066, %v2066
        %2131 = vst [vmem:[#allocation5] sm:$0xf] %v2067
        %2132 = vst [vmem:[#allocation5 + $0x4] sm:$0xf] %v2068
        %2133 = vst [vmem:[#allocation5 + $0x8] sm:$0xf] %v2069
        %2134 = vst [vmem:[#allocation5 + $0xc] sm:$0xf] %v2070
        %2135 = vst [vmem:[#allocation5 + $0x10] sm:$0xf] %v2071
        %2136 = vst [vmem:[#allocation5 + $0x14] sm:$0xf] %v2072
        %2137 = vst [vmem:[#allocation5 + $0x18] sm:$0xf] %v2073
        %2138 = vst [vmem:[#allocation5 + $0x1c] sm:$0xf] %v2074
        %2139 = vst [vmem:[#allocation5 + $0x20] sm:$0xf] %v2075
        %2140 = vst [vmem:[#allocation5 + $0x24] sm:$0xf] %v2076
        %2141 = vst [vmem:[#allocation5 + $0x28] sm:$0xf] %v2077
        %2142 = vst [vmem:[#allocation5 + $0x2c] sm:$0xf] %v2078
        %2143 = vst [vmem:[#allocation5 + $0x30] sm:$0xf] %v2079
        %2144 = vst [vmem:[#allocation5 + $0x34] sm:$0xf] %v2080
        %2145 = vst [vmem:[#allocation5 + $0x38] sm:$0xf] %v2081
        %2146 = vst [vmem:[#allocation5 + $0x3c] sm:$0xf] %v2082
        %2147 = vst [vmem:[#allocation5 + $0x40] sm:$0xf] %v2083
        %2148 = vst [vmem:[#allocation5 + $0x44] sm:$0xf] %v2084
        %2149 = vst [vmem:[#allocation5 + $0x48] sm:$0xf] %v2085
        %2150 = vst [vmem:[#allocation5 + $0x4c] sm:$0xf] %v2086
        %2151 = vst [vmem:[#allocation5 + $0x50] sm:$0xf] %v2087
        %2152 = vst [vmem:[#allocation5 + $0x54] sm:$0xf] %v2088
        %2153 = vst [vmem:[#allocation5 + $0x58] sm:$0xf] %v2089
        %2154 = vst [vmem:[#allocation5 + $0x5c] sm:$0xf] %v2090
        %2155 = vst [vmem:[#allocation5 + $0x60] sm:$0xf] %v2091
        %2156 = vst [vmem:[#allocation5 + $0x64] sm:$0xf] %v2092
        %2157 = vst [vmem:[#allocation5 + $0x68] sm:$0xf] %v2093
        %2158 = vst [vmem:[#allocation5 + $0x6c] sm:$0xf] %v2094
        %2159 = vst [vmem:[#allocation5 + $0x70] sm:$0xf] %v2095
        %2160 = vst [vmem:[#allocation5 + $0x74] sm:$0xf] %v2096
        %2161 = vst [vmem:[#allocation5 + $0x78] sm:$0xf] %v2097
        %2162 = vst [vmem:[#allocation5 + $0x7c] sm:$0xf] %v2098
        %v2163 = vld [vmem:[%s6] sm:$0xf]
        %v2164 = vld [vmem:[%s6 + $0x4] sm:$0xf]
        %v2165 = vld [vmem:[%s6 + $0x8] sm:$0xf]
        %v2166 = vld [vmem:[%s6 + $0xc] sm:$0xf]
        %v2167 = vld [vmem:[%s6 + $0x10] sm:$0xf]
        %v2168 = vld [vmem:[%s6 + $0x14] sm:$0xf]
        %v2169 = vld [vmem:[%s6 + $0x18] sm:$0xf]
        %v2170 = vld [vmem:[%s6 + $0x1c] sm:$0xf]
        %v2171 = vld [vmem:[%s6 + $0x20] sm:$0xf]
        %v2172 = vld [vmem:[%s6 + $0x24] sm:$0xf]
        %v2173 = vld [vmem:[%s6 + $0x28] sm:$0xf]
        %v2174 = vld [vmem:[%s6 + $0x2c] sm:$0xf]
        %v2175 = vld [vmem:[%s6 + $0x30] sm:$0xf]
        %v2176 = vld [vmem:[%s6 + $0x34] sm:$0xf]
        %v2177 = vld [vmem:[%s6 + $0x38] sm:$0xf]
        %v2178 = vld [vmem:[%s6 + $0x3c] sm:$0xf]
        %v2179 = vpack.c.bf16 %v1336, %v1334
        %v2180 = vpack.c.bf16 %v1337, %v1335
        %v2181 = vpack.c.bf16 %v1340, %v1338
        %v2182 = vpack.c.bf16 %v1341, %v1339
        %v2183 = vpack.c.bf16 %v1344, %v1342
        %v2184 = vpack.c.bf16 %v1345, %v1343
        %v2185 = vpack.c.bf16 %v1348, %v1346
        %v2186 = vpack.c.bf16 %v1349, %v1347
        %v2187 = vpack.c.bf16 %v1352, %v1350
        %v2188 = vpack.c.bf16 %v1353, %v1351
        %v2189 = vpack.c.bf16 %v1356, %v1354
        %v2190 = vpack.c.bf16 %v1357, %v1355
        %v2191 = vpack.c.bf16 %v1360, %v1358
        %v2192 = vpack.c.bf16 %v1361, %v1359
        %v2193 = vpack.c.bf16 %v1364, %v1362
        %v2194 = vpack.c.bf16 %v1365, %v1363
        %v2195 = vld [vmem:[%s7] sm:$0xff]
        %v2196 = vld [vmem:[%s7 + $0x8] sm:$0xff]
        %v2197 = vld [vmem:[%s7 + $0x10] sm:$0xff]
        %v2198 = vld [vmem:[%s7 + $0x18] sm:$0xff]
        %v2199 = vld [vmem:[%s7 + $0x20] sm:$0xff]
        %v2200 = vld [vmem:[%s7 + $0x28] sm:$0xff]
        %v2201 = vld [vmem:[%s7 + $0x30] sm:$0xff]
        %v2202 = vld [vmem:[%s7 + $0x38] sm:$0xff]
        %v2203 = vld [vmem:[%s7 + $0x40] sm:$0xff]
        %v2204 = vld [vmem:[%s7 + $0x48] sm:$0xff]
        %v2205 = vld [vmem:[%s7 + $0x50] sm:$0xff]
        %v2206 = vld [vmem:[%s7 + $0x58] sm:$0xff]
        %v2207 = vld [vmem:[%s7 + $0x60] sm:$0xff]
        %v2208 = vld [vmem:[%s7 + $0x68] sm:$0xff]
        %v2209 = vld [vmem:[%s7 + $0x70] sm:$0xff]
        %v2210 = vld [vmem:[%s7 + $0x78] sm:$0xff]
        %2212 = vset.pattern.permute.xlu0 0
        %2213 = vperm.xlu0 %2212, %v2195
        %v2214 = vpop.permute.xlu0 %2213
        %2217 = vset.pattern.permute.xlu0 0
        %2218 = vperm.xlu0 %2217, %v2196
        %v2219 = vpop.permute.xlu0 %2218
        %2222 = vset.pattern.permute.xlu0 0
        %2223 = vperm.xlu0 %2222, %v2197
        %v2224 = vpop.permute.xlu0 %2223
        %2227 = vset.pattern.permute.xlu0 0
        %2228 = vperm.xlu0 %2227, %v2198
        %v2229 = vpop.permute.xlu0 %2228
        %2232 = vset.pattern.permute.xlu0 0
        %2233 = vperm.xlu0 %2232, %v2199
        %v2234 = vpop.permute.xlu0 %2233
        %2237 = vset.pattern.permute.xlu0 0
        %2238 = vperm.xlu0 %2237, %v2200
        %v2239 = vpop.permute.xlu0 %2238
        %2242 = vset.pattern.permute.xlu0 0
        %2243 = vperm.xlu0 %2242, %v2201
        %v2244 = vpop.permute.xlu0 %2243
        %2247 = vset.pattern.permute.xlu0 0
        %2248 = vperm.xlu0 %2247, %v2202
        %v2249 = vpop.permute.xlu0 %2248
        %2252 = vset.pattern.permute.xlu0 0
        %2253 = vperm.xlu0 %2252, %v2203
        %v2254 = vpop.permute.xlu0 %2253
        %2257 = vset.pattern.permute.xlu0 0
        %2258 = vperm.xlu0 %2257, %v2204
        %v2259 = vpop.permute.xlu0 %2258
        %2262 = vset.pattern.permute.xlu0 0
        %2263 = vperm.xlu0 %2262, %v2205
        %v2264 = vpop.permute.xlu0 %2263
        %2267 = vset.pattern.permute.xlu0 0
        %2268 = vperm.xlu0 %2267, %v2206
        %v2269 = vpop.permute.xlu0 %2268
        %2272 = vset.pattern.permute.xlu0 0
        %2273 = vperm.xlu0 %2272, %v2207
        %v2274 = vpop.permute.xlu0 %2273
        %2277 = vset.pattern.permute.xlu0 0
        %2278 = vperm.xlu0 %2277, %v2208
        %v2279 = vpop.permute.xlu0 %2278
        %2282 = vset.pattern.permute.xlu0 0
        %2283 = vperm.xlu0 %2282, %v2209
        %v2284 = vpop.permute.xlu0 %2283
        %2287 = vset.pattern.permute.xlu0 0
        %2288 = vperm.xlu0 %2287, %v2210
        %v2289 = vpop.permute.xlu0 %2288
        %v2307 = vunpack.c.l.b16 %v2163
        %v2308 = vunpack.c.l.b16 %v2164
        %v2309 = vunpack.c.l.b16 %v2165
        %v2310 = vunpack.c.l.b16 %v2166
        %v2311 = vunpack.c.l.b16 %v2167
        %v2312 = vunpack.c.l.b16 %v2168
        %v2313 = vunpack.c.l.b16 %v2169
        %v2314 = vunpack.c.l.b16 %v2170
        %v2315 = vunpack.c.l.b16 %v2171
        %v2316 = vunpack.c.l.b16 %v2172
        %v2317 = vunpack.c.l.b16 %v2173
        %v2318 = vunpack.c.l.b16 %v2174
        %v2319 = vunpack.c.l.b16 %v2175
        %v2320 = vunpack.c.l.b16 %v2176
        %v2321 = vunpack.c.l.b16 %v2177
        %v2322 = vunpack.c.l.b16 %v2178
        %v2323 = vpack.c.b16 %v2308, %v2307
        %v2324 = vpack.c.b16 %v2310, %v2309
        %v2325 = vpack.c.b16 %v2312, %v2311
        %v2326 = vpack.c.b16 %v2314, %v2313
        %v2327 = vpack.c.b16 %v2316, %v2315
        %v2328 = vpack.c.b16 %v2318, %v2317
        %v2329 = vpack.c.b16 %v2320, %v2319
        %v2330 = vpack.c.b16 %v2322, %v2321
        %2339 = vmatprep.subr.bf16.mxu0 %v2194
        %2340 = vmatpush1.bf16.msra.mxu0 %v2193
        %2341 = vmatprep.subr.bf16.mxu0 %v2192
        %2342 = vmatpush1.bf16.msra.mxu0 %v2191
        %2343 = vmatprep.subr.bf16.mxu0 %v2190
        %2344 = vmatpush1.bf16.msra.mxu0 %v2189
        %2345 = vmatprep.subr.bf16.mxu0 %v2188
        %2346 = vmatpush1.bf16.msra.mxu0 %v2187
        %2347 = vmatprep.subr.bf16.mxu0 %v2186
        %2348 = vmatpush1.bf16.msra.mxu0 %v2185
        %2349 = vmatprep.subr.bf16.mxu0 %v2184
        %2350 = vmatpush1.bf16.msra.mxu0 %v2183
        %2351 = vmatprep.subr.bf16.mxu0 %v2182
        %2352 = vmatpush1.bf16.msra.mxu0 %v2181
        %2353 = vmatprep.subr.bf16.mxu0 %v2180
        %2354 = vmatpush1.bf16.msra.mxu0 %v2179
        %2355 = vmatprep.subr.bf16.mxu0 0
        %2356 = vmatpush2.bf16.msra.mxu0 0
        %2357 = vmatprep.subr.bf16.mxu0 0
        %2358 = vmatpush2.bf16.msra.mxu0 0
        %2359 = vmatprep.subr.bf16.mxu0 0
        %2360 = vmatpush2.bf16.msra.mxu0 0
        %2361 = vmatprep.subr.bf16.mxu0 0
        %2362 = vmatpush2.bf16.msra.mxu0 0
        %2363 = vmatprep.subr.bf16.mxu0 0
        %2364 = vmatpush2.bf16.msra.mxu0 0
        %2365 = vmatprep.subr.bf16.mxu0 0
        %2366 = vmatpush2.bf16.msra.mxu0 0
        %2367 = vmatprep.subr.bf16.mxu0 0
        %2368 = vmatpush2.bf16.msra.mxu0 0
        %2369 = vmatprep.subr.bf16.mxu0 0
        %2370 = vmatpush2.bf16.msra.mxu0 0
        %2371 = vmatprep.mubr.bf16.mxu0 0
        %2372 = vmatmul.mubr.bf16.gmra.mxu0 %v2323
        %v2373 = vpop.f32.mrf.mxu0
        %v2374 = vadd.f32 %v2214, %v2373
        %v2375 = vpop.f32.mrf.mxu0
        %v2376 = vadd.f32 %v2214, %v2375
        %v2377 = vpop.f32.mrf.mxu0
        %v2378 = vadd.f32 %v2219, %v2377
        %v2379 = vpop.f32.mrf.mxu0
        %v2380 = vadd.f32 %v2219, %v2379
        %2381 = vmatprep.mubr.bf16.mxu0 0
        %2382 = vmatmul.mubr.bf16.gmra.mxu0 %v2324
        %v2383 = vpop.f32.mrf.mxu0
        %v2384 = vadd.f32 %v2224, %v2383
        %v2385 = vpop.f32.mrf.mxu0
        %v2386 = vadd.f32 %v2224, %v2385
        %v2387 = vpop.f32.mrf.mxu0
        %v2388 = vadd.f32 %v2229, %v2387
        %v2389 = vpop.f32.mrf.mxu0
        %v2390 = vadd.f32 %v2229, %v2389
        %2391 = vmatprep.mubr.bf16.mxu0 0
        %2392 = vmatmul.mubr.bf16.gmra.mxu0 %v2325
        %v2393 = vpop.f32.mrf.mxu0
        %v2394 = vadd.f32 %v2234, %v2393
        %v2395 = vpop.f32.mrf.mxu0
        %v2396 = vadd.f32 %v2234, %v2395
        %v2397 = vpop.f32.mrf.mxu0
        %v2398 = vadd.f32 %v2239, %v2397
        %v2399 = vpop.f32.mrf.mxu0
        %v2400 = vadd.f32 %v2239, %v2399
        %2401 = vmatprep.mubr.bf16.mxu0 0
        %2402 = vmatmul.mubr.bf16.gmra.mxu0 %v2326
        %v2403 = vpop.f32.mrf.mxu0
        %v2404 = vadd.f32 %v2244, %v2403
        %v2405 = vpop.f32.mrf.mxu0
        %v2406 = vadd.f32 %v2244, %v2405
        %v2407 = vpop.f32.mrf.mxu0
        %v2408 = vadd.f32 %v2249, %v2407
        %v2409 = vpop.f32.mrf.mxu0
        %v2410 = vadd.f32 %v2249, %v2409
        %2411 = vmatprep.mubr.bf16.mxu0 0
        %2412 = vmatmul.mubr.bf16.gmra.mxu0 %v2327
        %v2413 = vpop.f32.mrf.mxu0
        %v2414 = vadd.f32 %v2254, %v2413
        %v2415 = vpop.f32.mrf.mxu0
        %v2416 = vadd.f32 %v2254, %v2415
        %v2417 = vpop.f32.mrf.mxu0
        %v2418 = vadd.f32 %v2259, %v2417
        %v2419 = vpop.f32.mrf.mxu0
        %v2420 = vadd.f32 %v2259, %v2419
        %2421 = vmatprep.mubr.bf16.mxu0 0
        %2422 = vmatmul.mubr.bf16.gmra.mxu0 %v2328
        %v2423 = vpop.f32.mrf.mxu0
        %v2424 = vadd.f32 %v2264, %v2423
        %v2425 = vpop.f32.mrf.mxu0
        %v2426 = vadd.f32 %v2264, %v2425
        %v2427 = vpop.f32.mrf.mxu0
        %v2428 = vadd.f32 %v2269, %v2427
        %v2429 = vpop.f32.mrf.mxu0
        %v2430 = vadd.f32 %v2269, %v2429
        %2431 = vmatprep.mubr.bf16.mxu0 0
        %2432 = vmatmul.mubr.bf16.gmra.mxu0 %v2329
        %v2433 = vpop.f32.mrf.mxu0
        %v2434 = vadd.f32 %v2274, %v2433
        %v2435 = vpop.f32.mrf.mxu0
        %v2436 = vadd.f32 %v2274, %v2435
        %v2437 = vpop.f32.mrf.mxu0
        %v2438 = vadd.f32 %v2279, %v2437
        %v2439 = vpop.f32.mrf.mxu0
        %v2440 = vadd.f32 %v2279, %v2439
        %2441 = vmatprep.mubr.bf16.mxu0 0
        %2442 = vmatmul.mubr.bf16.gmra.mxu0 %v2330
        %v2443 = vpop.f32.mrf.mxu0
        %v2444 = vadd.f32 %v2284, %v2443
        %v2445 = vpop.f32.mrf.mxu0
        %v2446 = vadd.f32 %v2284, %v2445
        %v2447 = vpop.f32.mrf.mxu0
        %v2448 = vadd.f32 %v2289, %v2447
        %v2449 = vpop.f32.mrf.mxu0
        %v2450 = vadd.f32 %v2289, %v2449
        %2451 = vdwg.mxu0
        %v2452 = vpack.c.bf16 %v2378, %v2374
        %v2453 = vpack.c.bf16 %v2380, %v2376
        %v2454 = vpack.c.bf16 %v2388, %v2384
        %v2455 = vpack.c.bf16 %v2390, %v2386
        %v2456 = vpack.c.bf16 %v2398, %v2394
        %v2457 = vpack.c.bf16 %v2400, %v2396
        %v2458 = vpack.c.bf16 %v2408, %v2404
        %v2459 = vpack.c.bf16 %v2410, %v2406
        %v2460 = vpack.c.bf16 %v2418, %v2414
        %v2461 = vpack.c.bf16 %v2420, %v2416
        %v2462 = vpack.c.bf16 %v2428, %v2424
        %v2463 = vpack.c.bf16 %v2430, %v2426
        %v2464 = vpack.c.bf16 %v2438, %v2434
        %v2465 = vpack.c.bf16 %v2440, %v2436
        %v2466 = vpack.c.bf16 %v2448, %v2444
        %v2467 = vpack.c.bf16 %v2450, %v2446
        %v2484 = vunpack.c.l.b16 %v2452
        %v2485 = vunpack.c.l.b16 %v2453
        %v2486 = vunpack.c.h.b16 %v2452
        %v2487 = vunpack.c.h.b16 %v2453
        %v2488 = vunpack.c.l.b16 %v2454
        %v2489 = vunpack.c.l.b16 %v2455
        %v2490 = vunpack.c.h.b16 %v2454
        %v2491 = vunpack.c.h.b16 %v2455
        %v2492 = vunpack.c.l.b16 %v2456
        %v2493 = vunpack.c.l.b16 %v2457
        %v2494 = vunpack.c.h.b16 %v2456
        %v2495 = vunpack.c.h.b16 %v2457
        %v2496 = vunpack.c.l.b16 %v2458
        %v2497 = vunpack.c.l.b16 %v2459
        %v2498 = vunpack.c.h.b16 %v2458
        %v2499 = vunpack.c.h.b16 %v2459
        %v2500 = vunpack.c.l.b16 %v2460
        %v2501 = vunpack.c.l.b16 %v2461
        %v2502 = vunpack.c.h.b16 %v2460
        %v2503 = vunpack.c.h.b16 %v2461
        %v2504 = vunpack.c.l.b16 %v2462
        %v2505 = vunpack.c.l.b16 %v2463
        %v2506 = vunpack.c.h.b16 %v2462
        %v2507 = vunpack.c.h.b16 %v2463
        %v2508 = vunpack.c.l.b16 %v2464
        %v2509 = vunpack.c.l.b16 %v2465
        %v2510 = vunpack.c.h.b16 %v2464
        %v2511 = vunpack.c.h.b16 %v2465
        %v2512 = vunpack.c.l.b16 %v2466
        %v2513 = vunpack.c.l.b16 %v2467
        %v2514 = vunpack.c.h.b16 %v2466
        %v2515 = vunpack.c.h.b16 %v2467
        %v2516 = vpack.c.b16 %v2485, %v2484
        %v2517 = vpack.c.b16 %v2487, %v2486
        %v2518 = vpack.c.b16 %v2489, %v2488
        %v2519 = vpack.c.b16 %v2491, %v2490
        %v2520 = vpack.c.b16 %v2493, %v2492
        %v2521 = vpack.c.b16 %v2495, %v2494
        %v2522 = vpack.c.b16 %v2497, %v2496
        %v2523 = vpack.c.b16 %v2499, %v2498
        %v2524 = vpack.c.b16 %v2501, %v2500
        %v2525 = vpack.c.b16 %v2503, %v2502
        %v2526 = vpack.c.b16 %v2505, %v2504
        %v2527 = vpack.c.b16 %v2507, %v2506
        %v2528 = vpack.c.b16 %v2509, %v2508
        %v2529 = vpack.c.b16 %v2511, %v2510
        %v2530 = vpack.c.b16 %v2513, %v2512
        %v2531 = vpack.c.b16 %v2515, %v2514
        %2548 = vst [vmem:[#allocation4] sm:$0xff] %v2516
        %2549 = vst [vmem:[#allocation4 + $0x8] sm:$0xff] %v2517
        %2550 = vst [vmem:[#allocation4 + $0x10] sm:$0xff] %v2518
        %2551 = vst [vmem:[#allocation4 + $0x18] sm:$0xff] %v2519
        %2552 = vst [vmem:[#allocation4 + $0x20] sm:$0xff] %v2520
        %2553 = vst [vmem:[#allocation4 + $0x28] sm:$0xff] %v2521
        %2554 = vst [vmem:[#allocation4 + $0x30] sm:$0xff] %v2522
        %2555 = vst [vmem:[#allocation4 + $0x38] sm:$0xff] %v2523
        %2556 = vst [vmem:[#allocation4 + $0x40] sm:$0xff] %v2524
        %2557 = vst [vmem:[#allocation4 + $0x48] sm:$0xff] %v2525
        %2558 = vst [vmem:[#allocation4 + $0x50] sm:$0xff] %v2526
        %2559 = vst [vmem:[#allocation4 + $0x58] sm:$0xff] %v2527
        %2560 = vst [vmem:[#allocation4 + $0x60] sm:$0xff] %v2528
        %2561 = vst [vmem:[#allocation4 + $0x68] sm:$0xff] %v2529
        %2562 = vst [vmem:[#allocation4 + $0x70] sm:$0xff] %v2530
        %2563 = vst [vmem:[#allocation4 + $0x78] sm:$0xff] %v2531
      $region64: #{attn_block.1} parent=59 // pred_fallthru
        _
      %s2564 = smul.u32 %s26, 256
      %s2565 = sshra.s32 %s2564, 3
      %s2566 = sand.u32 %s2564, 7
      %s2567 = smul.addr %s2565, 4
      %s2568 = scalar_lea.vmem [#allocation3], %s2567
      %v2569 = vld [vmem:[%s2568] sm:$0xf]
      %v2570 = vld [vmem:[%s2568 + $0x4] sm:$0xf]
      %v2571 = vld [vmem:[%s2568 + $0x8] sm:$0xf]
      %v2572 = vld [vmem:[%s2568 + $0xc] sm:$0xf]
      %v2573 = vld [vmem:[%s2568 + $0x10] sm:$0xf]
      %v2574 = vld [vmem:[%s2568 + $0x14] sm:$0xf]
      %v2575 = vld [vmem:[%s2568 + $0x18] sm:$0xf]
      %v2576 = vld [vmem:[%s2568 + $0x1c] sm:$0xf]
      %v2577 = vld [vmem:[%s2568 + $0x20] sm:$0xf]
      %v2578 = vld [vmem:[%s2568 + $0x24] sm:$0xf]
      %v2579 = vld [vmem:[%s2568 + $0x28] sm:$0xf]
      %v2580 = vld [vmem:[%s2568 + $0x2c] sm:$0xf]
      %v2581 = vld [vmem:[%s2568 + $0x30] sm:$0xf]
      %v2582 = vld [vmem:[%s2568 + $0x34] sm:$0xf]
      %v2583 = vld [vmem:[%s2568 + $0x38] sm:$0xf]
      %v2584 = vld [vmem:[%s2568 + $0x3c] sm:$0xf]
      %v2585 = vld [vmem:[%s2568 + $0x40] sm:$0xf]
      %v2586 = vld [vmem:[%s2568 + $0x44] sm:$0xf]
      %v2587 = vld [vmem:[%s2568 + $0x48] sm:$0xf]
      %v2588 = vld [vmem:[%s2568 + $0x4c] sm:$0xf]
      %v2589 = vld [vmem:[%s2568 + $0x50] sm:$0xf]
      %v2590 = vld [vmem:[%s2568 + $0x54] sm:$0xf]
      %v2591 = vld [vmem:[%s2568 + $0x58] sm:$0xf]
      %v2592 = vld [vmem:[%s2568 + $0x5c] sm:$0xf]
      %v2593 = vld [vmem:[%s2568 + $0x60] sm:$0xf]
      %v2594 = vld [vmem:[%s2568 + $0x64] sm:$0xf]
      %v2595 = vld [vmem:[%s2568 + $0x68] sm:$0xf]
      %v2596 = vld [vmem:[%s2568 + $0x6c] sm:$0xf]
      %v2597 = vld [vmem:[%s2568 + $0x70] sm:$0xf]
      %v2598 = vld [vmem:[%s2568 + $0x74] sm:$0xf]
      %v2599 = vld [vmem:[%s2568 + $0x78] sm:$0xf]
      %v2600 = vld [vmem:[%s2568 + $0x7c] sm:$0xf]
      %v2601 = vld [vmem:[#allocation4] sm:$0xff]
      %v2602 = vld [vmem:[#allocation4 + $0x8] sm:$0xff]
      %v2603 = vld [vmem:[#allocation4 + $0x10] sm:$0xff]
      %v2604 = vld [vmem:[#allocation4 + $0x18] sm:$0xff]
      %v2605 = vld [vmem:[#allocation4 + $0x20] sm:$0xff]
      %v2606 = vld [vmem:[#allocation4 + $0x28] sm:$0xff]
      %v2607 = vld [vmem:[#allocation4 + $0x30] sm:$0xff]
      %v2608 = vld [vmem:[#allocation4 + $0x38] sm:$0xff]
      %v2609 = vld [vmem:[#allocation4 + $0x40] sm:$0xff]
      %v2610 = vld [vmem:[#allocation4 + $0x48] sm:$0xff]
      %v2611 = vld [vmem:[#allocation4 + $0x50] sm:$0xff]
      %v2612 = vld [vmem:[#allocation4 + $0x58] sm:$0xff]
      %v2613 = vld [vmem:[#allocation4 + $0x60] sm:$0xff]
      %v2614 = vld [vmem:[#allocation4 + $0x68] sm:$0xff]
      %v2615 = vld [vmem:[#allocation4 + $0x70] sm:$0xff]
      %v2616 = vld [vmem:[#allocation4 + $0x78] sm:$0xff]
      %v2649 = vunpack.c.l.b16 %v2569
      %v2650 = vunpack.c.l.b16 %v2570
      %v2651 = vunpack.c.l.b16 %v2571
      %v2652 = vunpack.c.l.b16 %v2572
      %v2653 = vunpack.c.l.b16 %v2573
      %v2654 = vunpack.c.l.b16 %v2574
      %v2655 = vunpack.c.l.b16 %v2575
      %v2656 = vunpack.c.l.b16 %v2576
      %v2657 = vunpack.c.l.b16 %v2577
      %v2658 = vunpack.c.l.b16 %v2578
      %v2659 = vunpack.c.l.b16 %v2579
      %v2660 = vunpack.c.l.b16 %v2580
      %v2661 = vunpack.c.l.b16 %v2581
      %v2662 = vunpack.c.l.b16 %v2582
      %v2663 = vunpack.c.l.b16 %v2583
      %v2664 = vunpack.c.l.b16 %v2584
      %v2665 = vunpack.c.l.b16 %v2585
      %v2666 = vunpack.c.l.b16 %v2586
      %v2667 = vunpack.c.l.b16 %v2587
      %v2668 = vunpack.c.l.b16 %v2588
      %v2669 = vunpack.c.l.b16 %v2589
      %v2670 = vunpack.c.l.b16 %v2590
      %v2671 = vunpack.c.l.b16 %v2591
      %v2672 = vunpack.c.l.b16 %v2592
      %v2673 = vunpack.c.l.b16 %v2593
      %v2674 = vunpack.c.l.b16 %v2594
      %v2675 = vunpack.c.l.b16 %v2595
      %v2676 = vunpack.c.l.b16 %v2596
      %v2677 = vunpack.c.l.b16 %v2597
      %v2678 = vunpack.c.l.b16 %v2598
      %v2679 = vunpack.c.l.b16 %v2599
      %v2680 = vunpack.c.l.b16 %v2600
      %v2681 = vpack.c.b16 %v2650, %v2649
      %v2682 = vpack.c.b16 %v2652, %v2651
      %v2683 = vpack.c.b16 %v2654, %v2653
      %v2684 = vpack.c.b16 %v2656, %v2655
      %v2685 = vpack.c.b16 %v2658, %v2657
      %v2686 = vpack.c.b16 %v2660, %v2659
      %v2687 = vpack.c.b16 %v2662, %v2661
      %v2688 = vpack.c.b16 %v2664, %v2663
      %v2689 = vpack.c.b16 %v2666, %v2665
      %v2690 = vpack.c.b16 %v2668, %v2667
      %v2691 = vpack.c.b16 %v2670, %v2669
      %v2692 = vpack.c.b16 %v2672, %v2671
      %v2693 = vpack.c.b16 %v2674, %v2673
      %v2694 = vpack.c.b16 %v2676, %v2675
      %v2695 = vpack.c.b16 %v2678, %v2677
      %v2696 = vpack.c.b16 %v2680, %v2679
      %v2729 = vunpack.c.l.b16 %v2601
      %v2730 = vunpack.c.h.b16 %v2601
      %v2731 = vunpack.c.l.b16 %v2602
      %v2732 = vunpack.c.h.b16 %v2602
      %v2733 = vunpack.c.l.b16 %v2603
      %v2734 = vunpack.c.h.b16 %v2603
      %v2735 = vunpack.c.l.b16 %v2604
      %v2736 = vunpack.c.h.b16 %v2604
      %v2737 = vunpack.c.l.b16 %v2605
      %v2738 = vunpack.c.h.b16 %v2605
      %v2739 = vunpack.c.l.b16 %v2606
      %v2740 = vunpack.c.h.b16 %v2606
      %v2741 = vunpack.c.l.b16 %v2607
      %v2742 = vunpack.c.h.b16 %v2607
      %v2743 = vunpack.c.l.b16 %v2608
      %v2744 = vunpack.c.h.b16 %v2608
      %v2745 = vunpack.c.l.b16 %v2609
      %v2746 = vunpack.c.h.b16 %v2609
      %v2747 = vunpack.c.l.b16 %v2610
      %v2748 = vunpack.c.h.b16 %v2610
      %v2749 = vunpack.c.l.b16 %v2611
      %v2750 = vunpack.c.h.b16 %v2611
      %v2751 = vunpack.c.l.b16 %v2612
      %v2752 = vunpack.c.h.b16 %v2612
      %v2753 = vunpack.c.l.b16 %v2613
      %v2754 = vunpack.c.h.b16 %v2613
      %v2755 = vunpack.c.l.b16 %v2614
      %v2756 = vunpack.c.h.b16 %v2614
      %v2757 = vunpack.c.l.b16 %v2615
      %v2758 = vunpack.c.h.b16 %v2615
      %v2759 = vunpack.c.l.b16 %v2616
      %v2760 = vunpack.c.h.b16 %v2616
      %v2761 = vpack.c.b16 %v2731, %v2729
      %v2762 = vpack.c.b16 %v2732, %v2730
      %v2763 = vpack.c.b16 %v2735, %v2733
      %v2764 = vpack.c.b16 %v2736, %v2734
      %v2765 = vpack.c.b16 %v2739, %v2737
      %v2766 = vpack.c.b16 %v2740, %v2738
      %v2767 = vpack.c.b16 %v2743, %v2741
      %v2768 = vpack.c.b16 %v2744, %v2742
      %v2769 = vpack.c.b16 %v2747, %v2745
      %v2770 = vpack.c.b16 %v2748, %v2746
      %v2771 = vpack.c.b16 %v2751, %v2749
      %v2772 = vpack.c.b16 %v2752, %v2750
      %v2773 = vpack.c.b16 %v2755, %v2753
      %v2774 = vpack.c.b16 %v2756, %v2754
      %v2775 = vpack.c.b16 %v2759, %v2757
      %v2776 = vpack.c.b16 %v2760, %v2758
      %2793 = vmatprep.subr.bf16.mxu0 %v2776
      %2794 = vmatpush1.bf16.msra.mxu0 %v2775
      %2795 = vmatprep.subr.bf16.mxu0 %v2774
      %2796 = vmatpush1.bf16.msra.mxu0 %v2773
      %2797 = vmatprep.subr.bf16.mxu0 %v2772
      %2798 = vmatpush1.bf16.msra.mxu0 %v2771
      %2799 = vmatprep.subr.bf16.mxu0 %v2770
      %2800 = vmatpush1.bf16.msra.mxu0 %v2769
      %2801 = vmatprep.subr.bf16.mxu0 %v2768
      %2802 = vmatpush1.bf16.msra.mxu0 %v2767
      %2803 = vmatprep.subr.bf16.mxu0 %v2766
      %2804 = vmatpush1.bf16.msra.mxu0 %v2765
      %2805 = vmatprep.subr.bf16.mxu0 %v2764
      %2806 = vmatpush1.bf16.msra.mxu0 %v2763
      %2807 = vmatprep.subr.bf16.mxu0 %v2762
      %2808 = vmatpush1.bf16.msra.mxu0 %v2761
      %2809 = vmatprep.subr.bf16.mxu0 0
      %2810 = vmatpush2.bf16.msra.mxu0 0
      %2811 = vmatprep.subr.bf16.mxu0 0
      %2812 = vmatpush2.bf16.msra.mxu0 0
      %2813 = vmatprep.subr.bf16.mxu0 0
      %2814 = vmatpush2.bf16.msra.mxu0 0
      %2815 = vmatprep.subr.bf16.mxu0 0
      %2816 = vmatpush2.bf16.msra.mxu0 0
      %2817 = vmatprep.subr.bf16.mxu0 0
      %2818 = vmatpush2.bf16.msra.mxu0 0
      %2819 = vmatprep.subr.bf16.mxu0 0
      %2820 = vmatpush2.bf16.msra.mxu0 0
      %2821 = vmatprep.subr.bf16.mxu0 0
      %2822 = vmatpush2.bf16.msra.mxu0 0
      %2823 = vmatprep.subr.bf16.mxu0 0
      %2824 = vmatpush2.bf16.msra.mxu0 0
      %2825 = vmatprep.mubr.bf16.mxu0 0
      %2826 = vmatmul.mubr.bf16.gmra.mxu0 %v2681
      %v2827 = vpop.f32.mrf.mxu0
      %v2828 = vadd.f32 0.0, %v2827
      %v2829 = vpop.f32.mrf.mxu0
      %v2830 = vadd.f32 0.0, %v2829
      %v2831 = vpop.f32.mrf.mxu0
      %v2832 = vadd.f32 0.0, %v2831
      %v2833 = vpop.f32.mrf.mxu0
      %v2834 = vadd.f32 0.0, %v2833
      %2835 = vmatprep.mubr.bf16.mxu0 0
      %2836 = vmatmul.mubr.bf16.gmra.mxu0 %v2682
      %v2837 = vpop.f32.mrf.mxu0
      %v2838 = vadd.f32 0.0, %v2837
      %v2839 = vpop.f32.mrf.mxu0
      %v2840 = vadd.f32 0.0, %v2839
      %v2841 = vpop.f32.mrf.mxu0
      %v2842 = vadd.f32 0.0, %v2841
      %v2843 = vpop.f32.mrf.mxu0
      %v2844 = vadd.f32 0.0, %v2843
      %2845 = vmatprep.mubr.bf16.mxu0 0
      %2846 = vmatmul.mubr.bf16.gmra.mxu0 %v2683
      %v2847 = vpop.f32.mrf.mxu0
      %v2848 = vadd.f32 0.0, %v2847
      %v2849 = vpop.f32.mrf.mxu0
      %v2850 = vadd.f32 0.0, %v2849
      %v2851 = vpop.f32.mrf.mxu0
      %v2852 = vadd.f32 0.0, %v2851
      %v2853 = vpop.f32.mrf.mxu0
      %v2854 = vadd.f32 0.0, %v2853
      %2855 = vmatprep.mubr.bf16.mxu0 0
      %2856 = vmatmul.mubr.bf16.gmra.mxu0 %v2684
      %v2857 = vpop.f32.mrf.mxu0
      %v2858 = vadd.f32 0.0, %v2857
      %v2859 = vpop.f32.mrf.mxu0
      %v2860 = vadd.f32 0.0, %v2859
      %v2861 = vpop.f32.mrf.mxu0
      %v2862 = vadd.f32 0.0, %v2861
      %v2863 = vpop.f32.mrf.mxu0
      %v2864 = vadd.f32 0.0, %v2863
      %2865 = vmatprep.mubr.bf16.mxu0 0
      %2866 = vmatmul.mubr.bf16.gmra.mxu0 %v2685
      %v2867 = vpop.f32.mrf.mxu0
      %v2868 = vadd.f32 0.0, %v2867
      %v2869 = vpop.f32.mrf.mxu0
      %v2870 = vadd.f32 0.0, %v2869
      %v2871 = vpop.f32.mrf.mxu0
      %v2872 = vadd.f32 0.0, %v2871
      %v2873 = vpop.f32.mrf.mxu0
      %v2874 = vadd.f32 0.0, %v2873
      %2875 = vmatprep.mubr.bf16.mxu0 0
      %2876 = vmatmul.mubr.bf16.gmra.mxu0 %v2686
      %v2877 = vpop.f32.mrf.mxu0
      %v2878 = vadd.f32 0.0, %v2877
      %v2879 = vpop.f32.mrf.mxu0
      %v2880 = vadd.f32 0.0, %v2879
      %v2881 = vpop.f32.mrf.mxu0
      %v2882 = vadd.f32 0.0, %v2881
      %v2883 = vpop.f32.mrf.mxu0
      %v2884 = vadd.f32 0.0, %v2883
      %2885 = vmatprep.mubr.bf16.mxu0 0
      %2886 = vmatmul.mubr.bf16.gmra.mxu0 %v2687
      %v2887 = vpop.f32.mrf.mxu0
      %v2888 = vadd.f32 0.0, %v2887
      %v2889 = vpop.f32.mrf.mxu0
      %v2890 = vadd.f32 0.0, %v2889
      %v2891 = vpop.f32.mrf.mxu0
      %v2892 = vadd.f32 0.0, %v2891
      %v2893 = vpop.f32.mrf.mxu0
      %v2894 = vadd.f32 0.0, %v2893
      %2895 = vmatprep.mubr.bf16.mxu0 0
      %2896 = vmatmul.mubr.bf16.gmra.mxu0 %v2688
      %v2897 = vpop.f32.mrf.mxu0
      %v2898 = vadd.f32 0.0, %v2897
      %v2899 = vpop.f32.mrf.mxu0
      %v2900 = vadd.f32 0.0, %v2899
      %v2901 = vpop.f32.mrf.mxu0
      %v2902 = vadd.f32 0.0, %v2901
      %v2903 = vpop.f32.mrf.mxu0
      %v2904 = vadd.f32 0.0, %v2903
      %2905 = vmatprep.mubr.bf16.mxu0 0
      %2906 = vmatmul.mubr.bf16.gmra.mxu0 %v2689
      %v2907 = vpop.f32.mrf.mxu0
      %v2908 = vadd.f32 0.0, %v2907
      %v2909 = vpop.f32.mrf.mxu0
      %v2910 = vadd.f32 0.0, %v2909
      %v2911 = vpop.f32.mrf.mxu0
      %v2912 = vadd.f32 0.0, %v2911
      %v2913 = vpop.f32.mrf.mxu0
      %v2914 = vadd.f32 0.0, %v2913
      %2915 = vmatprep.mubr.bf16.mxu0 0
      %2916 = vmatmul.mubr.bf16.gmra.mxu0 %v2690
      %v2917 = vpop.f32.mrf.mxu0
      %v2918 = vadd.f32 0.0, %v2917
      %v2919 = vpop.f32.mrf.mxu0
      %v2920 = vadd.f32 0.0, %v2919
      %v2921 = vpop.f32.mrf.mxu0
      %v2922 = vadd.f32 0.0, %v2921
      %v2923 = vpop.f32.mrf.mxu0
      %v2924 = vadd.f32 0.0, %v2923
      %2925 = vmatprep.mubr.bf16.mxu0 0
      %2926 = vmatmul.mubr.bf16.gmra.mxu0 %v2691
      %v2927 = vpop.f32.mrf.mxu0
      %v2928 = vadd.f32 0.0, %v2927
      %v2929 = vpop.f32.mrf.mxu0
      %v2930 = vadd.f32 0.0, %v2929
      %v2931 = vpop.f32.mrf.mxu0
      %v2932 = vadd.f32 0.0, %v2931
      %v2933 = vpop.f32.mrf.mxu0
      %v2934 = vadd.f32 0.0, %v2933
      %2935 = vmatprep.mubr.bf16.mxu0 0
      %2936 = vmatmul.mubr.bf16.gmra.mxu0 %v2692
      %v2937 = vpop.f32.mrf.mxu0
      %v2938 = vadd.f32 0.0, %v2937
      %v2939 = vpop.f32.mrf.mxu0
      %v2940 = vadd.f32 0.0, %v2939
      %v2941 = vpop.f32.mrf.mxu0
      %v2942 = vadd.f32 0.0, %v2941
      %v2943 = vpop.f32.mrf.mxu0
      %v2944 = vadd.f32 0.0, %v2943
      %2945 = vmatprep.mubr.bf16.mxu0 0
      %2946 = vmatmul.mubr.bf16.gmra.mxu0 %v2693
      %v2947 = vpop.f32.mrf.mxu0
      %v2948 = vadd.f32 0.0, %v2947
      %v2949 = vpop.f32.mrf.mxu0
      %v2950 = vadd.f32 0.0, %v2949
      %v2951 = vpop.f32.mrf.mxu0
      %v2952 = vadd.f32 0.0, %v2951
      %v2953 = vpop.f32.mrf.mxu0
      %v2954 = vadd.f32 0.0, %v2953
      %2955 = vmatprep.mubr.bf16.mxu0 0
      %2956 = vmatmul.mubr.bf16.gmra.mxu0 %v2694
      %v2957 = vpop.f32.mrf.mxu0
      %v2958 = vadd.f32 0.0, %v2957
      %v2959 = vpop.f32.mrf.mxu0
      %v2960 = vadd.f32 0.0, %v2959
      %v2961 = vpop.f32.mrf.mxu0
      %v2962 = vadd.f32 0.0, %v2961
      %v2963 = vpop.f32.mrf.mxu0
      %v2964 = vadd.f32 0.0, %v2963
      %2965 = vmatprep.mubr.bf16.mxu0 0
      %2966 = vmatmul.mubr.bf16.gmra.mxu0 %v2695
      %v2967 = vpop.f32.mrf.mxu0
      %v2968 = vadd.f32 0.0, %v2967
      %v2969 = vpop.f32.mrf.mxu0
      %v2970 = vadd.f32 0.0, %v2969
      %v2971 = vpop.f32.mrf.mxu0
      %v2972 = vadd.f32 0.0, %v2971
      %v2973 = vpop.f32.mrf.mxu0
      %v2974 = vadd.f32 0.0, %v2973
      %2975 = vmatprep.mubr.bf16.mxu0 0
      %2976 = vmatmul.mubr.bf16.gmra.mxu0 %v2696
      %v2977 = vpop.f32.mrf.mxu0
      %v2978 = vadd.f32 0.0, %v2977
      %v2979 = vpop.f32.mrf.mxu0
      %v2980 = vadd.f32 0.0, %v2979
      %v2981 = vpop.f32.mrf.mxu0
      %v2982 = vadd.f32 0.0, %v2981
      %v2983 = vpop.f32.mrf.mxu0
      %v2984 = vadd.f32 0.0, %v2983
      %2985 = vdwg.mxu0
      %v2986 = vmax.f32 %v2828, %v2830
      %2987 = vmax.xlane.f32.xlu0 %v2986
      %v2988 = vpop.xlane.xlu0 %2987
      %v2989 = vmax.f32 %v2832, %v2834
      %2990 = vmax.xlane.f32.xlu0 %v2989
      %v2991 = vpop.xlane.xlu0 %2990
      %v2992 = vmax.f32 %v2838, %v2840
      %2993 = vmax.xlane.f32.xlu0 %v2992
      %v2994 = vpop.xlane.xlu0 %2993
      %v2995 = vmax.f32 %v2842, %v2844
      %2996 = vmax.xlane.f32.xlu0 %v2995
      %v2997 = vpop.xlane.xlu0 %2996
      %v2998 = vmax.f32 %v2848, %v2850
      %2999 = vmax.xlane.f32.xlu0 %v2998
      %v3000 = vpop.xlane.xlu0 %2999
      %v3001 = vmax.f32 %v2852, %v2854
      %3002 = vmax.xlane.f32.xlu0 %v3001
      %v3003 = vpop.xlane.xlu0 %3002
      %v3004 = vmax.f32 %v2858, %v2860
      %3005 = vmax.xlane.f32.xlu0 %v3004
      %v3006 = vpop.xlane.xlu0 %3005
      %v3007 = vmax.f32 %v2862, %v2864
      %3008 = vmax.xlane.f32.xlu0 %v3007
      %v3009 = vpop.xlane.xlu0 %3008
      %v3010 = vmax.f32 %v2868, %v2870
      %3011 = vmax.xlane.f32.xlu0 %v3010
      %v3012 = vpop.xlane.xlu0 %3011
      %v3013 = vmax.f32 %v2872, %v2874
      %3014 = vmax.xlane.f32.xlu0 %v3013
      %v3015 = vpop.xlane.xlu0 %3014
      %v3016 = vmax.f32 %v2878, %v2880
      %3017 = vmax.xlane.f32.xlu0 %v3016
      %v3018 = vpop.xlane.xlu0 %3017
      %v3019 = vmax.f32 %v2882, %v2884
      %3020 = vmax.xlane.f32.xlu0 %v3019
      %v3021 = vpop.xlane.xlu0 %3020
      %v3022 = vmax.f32 %v2888, %v2890
      %3023 = vmax.xlane.f32.xlu0 %v3022
      %v3024 = vpop.xlane.xlu0 %3023
      %v3025 = vmax.f32 %v2892, %v2894
      %3026 = vmax.xlane.f32.xlu0 %v3025
      %v3027 = vpop.xlane.xlu0 %3026
      %v3028 = vmax.f32 %v2898, %v2900
      %3029 = vmax.xlane.f32.xlu0 %v3028
      %v3030 = vpop.xlane.xlu0 %3029
      %v3031 = vmax.f32 %v2902, %v2904
      %3032 = vmax.xlane.f32.xlu0 %v3031
      %v3033 = vpop.xlane.xlu0 %3032
      %v3034 = vmax.f32 %v2908, %v2910
      %3035 = vmax.xlane.f32.xlu0 %v3034
      %v3036 = vpop.xlane.xlu0 %3035
      %v3037 = vmax.f32 %v2912, %v2914
      %3038 = vmax.xlane.f32.xlu0 %v3037
      %v3039 = vpop.xlane.xlu0 %3038
      %v3040 = vmax.f32 %v2918, %v2920
      %3041 = vmax.xlane.f32.xlu0 %v3040
      %v3042 = vpop.xlane.xlu0 %3041
      %v3043 = vmax.f32 %v2922, %v2924
      %3044 = vmax.xlane.f32.xlu0 %v3043
      %v3045 = vpop.xlane.xlu0 %3044
      %v3046 = vmax.f32 %v2928, %v2930
      %3047 = vmax.xlane.f32.xlu0 %v3046
      %v3048 = vpop.xlane.xlu0 %3047
      %v3049 = vmax.f32 %v2932, %v2934
      %3050 = vmax.xlane.f32.xlu0 %v3049
      %v3051 = vpop.xlane.xlu0 %3050
      %v3052 = vmax.f32 %v2938, %v2940
      %3053 = vmax.xlane.f32.xlu0 %v3052
      %v3054 = vpop.xlane.xlu0 %3053
      %v3055 = vmax.f32 %v2942, %v2944
      %3056 = vmax.xlane.f32.xlu0 %v3055
      %v3057 = vpop.xlane.xlu0 %3056
      %v3058 = vmax.f32 %v2948, %v2950
      %3059 = vmax.xlane.f32.xlu0 %v3058
      %v3060 = vpop.xlane.xlu0 %3059
      %v3061 = vmax.f32 %v2952, %v2954
      %3062 = vmax.xlane.f32.xlu0 %v3061
      %v3063 = vpop.xlane.xlu0 %3062
      %v3064 = vmax.f32 %v2958, %v2960
      %3065 = vmax.xlane.f32.xlu0 %v3064
      %v3066 = vpop.xlane.xlu0 %3065
      %v3067 = vmax.f32 %v2962, %v2964
      %3068 = vmax.xlane.f32.xlu0 %v3067
      %v3069 = vpop.xlane.xlu0 %3068
      %v3070 = vmax.f32 %v2968, %v2970
      %3071 = vmax.xlane.f32.xlu0 %v3070
      %v3072 = vpop.xlane.xlu0 %3071
      %v3073 = vmax.f32 %v2972, %v2974
      %3074 = vmax.xlane.f32.xlu0 %v3073
      %v3075 = vpop.xlane.xlu0 %3074
      %v3076 = vmax.f32 %v2978, %v2980
      %3077 = vmax.xlane.f32.xlu0 %v3076
      %v3078 = vpop.xlane.xlu0 %3077
      %v3079 = vmax.f32 %v2982, %v2984
      %3080 = vmax.xlane.f32.xlu0 %v3079
      %v3081 = vpop.xlane.xlu0 %3080
      %v3082 = vsub.f32 %v2828, %v2988
      %v3083 = vsub.f32 %v2830, %v2988
      %v3084 = vsub.f32 %v2832, %v2991
      %v3085 = vsub.f32 %v2834, %v2991
      %v3086 = vsub.f32 %v2838, %v2994
      %v3087 = vsub.f32 %v2840, %v2994
      %v3088 = vsub.f32 %v2842, %v2997
      %v3089 = vsub.f32 %v2844, %v2997
      %v3090 = vsub.f32 %v2848, %v3000
      %v3091 = vsub.f32 %v2850, %v3000
      %v3092 = vsub.f32 %v2852, %v3003
      %v3093 = vsub.f32 %v2854, %v3003
      %v3094 = vsub.f32 %v2858, %v3006
      %v3095 = vsub.f32 %v2860, %v3006
      %v3096 = vsub.f32 %v2862, %v3009
      %v3097 = vsub.f32 %v2864, %v3009
      %v3098 = vsub.f32 %v2868, %v3012
      %v3099 = vsub.f32 %v2870, %v3012
      %v3100 = vsub.f32 %v2872, %v3015
      %v3101 = vsub.f32 %v2874, %v3015
      %v3102 = vsub.f32 %v2878, %v3018
      %v3103 = vsub.f32 %v2880, %v3018
      %v3104 = vsub.f32 %v2882, %v3021
      %v3105 = vsub.f32 %v2884, %v3021
      %v3106 = vsub.f32 %v2888, %v3024
      %v3107 = vsub.f32 %v2890, %v3024
      %v3108 = vsub.f32 %v2892, %v3027
      %v3109 = vsub.f32 %v2894, %v3027
      %v3110 = vsub.f32 %v2898, %v3030
      %v3111 = vsub.f32 %v2900, %v3030
      %v3112 = vsub.f32 %v2902, %v3033
      %v3113 = vsub.f32 %v2904, %v3033
      %v3114 = vsub.f32 %v2908, %v3036
      %v3115 = vsub.f32 %v2910, %v3036
      %v3116 = vsub.f32 %v2912, %v3039
      %v3117 = vsub.f32 %v2914, %v3039
      %v3118 = vsub.f32 %v2918, %v3042
      %v3119 = vsub.f32 %v2920, %v3042
      %v3120 = vsub.f32 %v2922, %v3045
      %v3121 = vsub.f32 %v2924, %v3045
      %v3122 = vsub.f32 %v2928, %v3048
      %v3123 = vsub.f32 %v2930, %v3048
      %v3124 = vsub.f32 %v2932, %v3051
      %v3125 = vsub.f32 %v2934, %v3051
      %v3126 = vsub.f32 %v2938, %v3054
      %v3127 = vsub.f32 %v2940, %v3054
      %v3128 = vsub.f32 %v2942, %v3057
      %v3129 = vsub.f32 %v2944, %v3057
      %v3130 = vsub.f32 %v2948, %v3060
      %v3131 = vsub.f32 %v2950, %v3060
      %v3132 = vsub.f32 %v2952, %v3063
      %v3133 = vsub.f32 %v2954, %v3063
      %v3134 = vsub.f32 %v2958, %v3066
      %v3135 = vsub.f32 %v2960, %v3066
      %v3136 = vsub.f32 %v2962, %v3069
      %v3137 = vsub.f32 %v2964, %v3069
      %v3138 = vsub.f32 %v2968, %v3072
      %v3139 = vsub.f32 %v2970, %v3072
      %v3140 = vsub.f32 %v2972, %v3075
      %v3141 = vsub.f32 %v2974, %v3075
      %v3142 = vsub.f32 %v2978, %v3078
      %v3143 = vsub.f32 %v2980, %v3078
      %v3144 = vsub.f32 %v2982, %v3081
      %v3145 = vsub.f32 %v2984, %v3081
      %v3146 = vmul.f32 %v3082, 1.442695
      %v3147 = vpow.pop %v3146
      %v3148 = vmul.f32 %v3083, 1.442695
      %v3149 = vpow.pop %v3148
      %v3150 = vmul.f32 %v3084, 1.442695
      %v3151 = vpow.pop %v3150
      %v3152 = vmul.f32 %v3085, 1.442695
      %v3153 = vpow.pop %v3152
      %v3154 = vmul.f32 %v3086, 1.442695
      %v3155 = vpow.pop %v3154
      %v3156 = vmul.f32 %v3087, 1.442695
      %v3157 = vpow.pop %v3156
      %v3158 = vmul.f32 %v3088, 1.442695
      %v3159 = vpow.pop %v3158
      %v3160 = vmul.f32 %v3089, 1.442695
      %v3161 = vpow.pop %v3160
      %v3162 = vmul.f32 %v3090, 1.442695
      %v3163 = vpow.pop %v3162
      %v3164 = vmul.f32 %v3091, 1.442695
      %v3165 = vpow.pop %v3164
      %v3166 = vmul.f32 %v3092, 1.442695
      %v3167 = vpow.pop %v3166
      %v3168 = vmul.f32 %v3093, 1.442695
      %v3169 = vpow.pop %v3168
      %v3170 = vmul.f32 %v3094, 1.442695
      %v3171 = vpow.pop %v3170
      %v3172 = vmul.f32 %v3095, 1.442695
      %v3173 = vpow.pop %v3172
      %v3174 = vmul.f32 %v3096, 1.442695
      %v3175 = vpow.pop %v3174
      %v3176 = vmul.f32 %v3097, 1.442695
      %v3177 = vpow.pop %v3176
      %v3178 = vmul.f32 %v3098, 1.442695
      %v3179 = vpow.pop %v3178
      %v3180 = vmul.f32 %v3099, 1.442695
      %v3181 = vpow.pop %v3180
      %v3182 = vmul.f32 %v3100, 1.442695
      %v3183 = vpow.pop %v3182
      %v3184 = vmul.f32 %v3101, 1.442695
      %v3185 = vpow.pop %v3184
      %v3186 = vmul.f32 %v3102, 1.442695
      %v3187 = vpow.pop %v3186
      %v3188 = vmul.f32 %v3103, 1.442695
      %v3189 = vpow.pop %v3188
      %v3190 = vmul.f32 %v3104, 1.442695
      %v3191 = vpow.pop %v3190
      %v3192 = vmul.f32 %v3105, 1.442695
      %v3193 = vpow.pop %v3192
      %v3194 = vmul.f32 %v3106, 1.442695
      %v3195 = vpow.pop %v3194
      %v3196 = vmul.f32 %v3107, 1.442695
      %v3197 = vpow.pop %v3196
      %v3198 = vmul.f32 %v3108, 1.442695
      %v3199 = vpow.pop %v3198
      %v3200 = vmul.f32 %v3109, 1.442695
      %v3201 = vpow.pop %v3200
      %v3202 = vmul.f32 %v3110, 1.442695
      %v3203 = vpow.pop %v3202
      %v3204 = vmul.f32 %v3111, 1.442695
      %v3205 = vpow.pop %v3204
      %v3206 = vmul.f32 %v3112, 1.442695
      %v3207 = vpow.pop %v3206
      %v3208 = vmul.f32 %v3113, 1.442695
      %v3209 = vpow.pop %v3208
      %v3210 = vmul.f32 %v3114, 1.442695
      %v3211 = vpow.pop %v3210
      %v3212 = vmul.f32 %v3115, 1.442695
      %v3213 = vpow.pop %v3212
      %v3214 = vmul.f32 %v3116, 1.442695
      %v3215 = vpow.pop %v3214
      %v3216 = vmul.f32 %v3117, 1.442695
      %v3217 = vpow.pop %v3216
      %v3218 = vmul.f32 %v3118, 1.442695
      %v3219 = vpow.pop %v3218
      %v3220 = vmul.f32 %v3119, 1.442695
      %v3221 = vpow.pop %v3220
      %v3222 = vmul.f32 %v3120, 1.442695
      %v3223 = vpow.pop %v3222
      %v3224 = vmul.f32 %v3121, 1.442695
      %v3225 = vpow.pop %v3224
      %v3226 = vmul.f32 %v3122, 1.442695
      %v3227 = vpow.pop %v3226
      %v3228 = vmul.f32 %v3123, 1.442695
      %v3229 = vpow.pop %v3228
      %v3230 = vmul.f32 %v3124, 1.442695
      %v3231 = vpow.pop %v3230
      %v3232 = vmul.f32 %v3125, 1.442695
      %v3233 = vpow.pop %v3232
      %v3234 = vmul.f32 %v3126, 1.442695
      %v3235 = vpow.pop %v3234
      %v3236 = vmul.f32 %v3127, 1.442695
      %v3237 = vpow.pop %v3236
      %v3238 = vmul.f32 %v3128, 1.442695
      %v3239 = vpow.pop %v3238
      %v3240 = vmul.f32 %v3129, 1.442695
      %v3241 = vpow.pop %v3240
      %v3242 = vmul.f32 %v3130, 1.442695
      %v3243 = vpow.pop %v3242
      %v3244 = vmul.f32 %v3131, 1.442695
      %v3245 = vpow.pop %v3244
      %v3246 = vmul.f32 %v3132, 1.442695
      %v3247 = vpow.pop %v3246
      %v3248 = vmul.f32 %v3133, 1.442695
      %v3249 = vpow.pop %v3248
      %v3250 = vmul.f32 %v3134, 1.442695
      %v3251 = vpow.pop %v3250
      %v3252 = vmul.f32 %v3135, 1.442695
      %v3253 = vpow.pop %v3252
      %v3254 = vmul.f32 %v3136, 1.442695
      %v3255 = vpow.pop %v3254
      %v3256 = vmul.f32 %v3137, 1.442695
      %v3257 = vpow.pop %v3256
      %v3258 = vmul.f32 %v3138, 1.442695
      %v3259 = vpow.pop %v3258
      %v3260 = vmul.f32 %v3139, 1.442695
      %v3261 = vpow.pop %v3260
      %v3262 = vmul.f32 %v3140, 1.442695
      %v3263 = vpow.pop %v3262
      %v3264 = vmul.f32 %v3141, 1.442695
      %v3265 = vpow.pop %v3264
      %v3266 = vmul.f32 %v3142, 1.442695
      %v3267 = vpow.pop %v3266
      %v3268 = vmul.f32 %v3143, 1.442695
      %v3269 = vpow.pop %v3268
      %v3270 = vmul.f32 %v3144, 1.442695
      %v3271 = vpow.pop %v3270
      %v3272 = vmul.f32 %v3145, 1.442695
      %v3273 = vpow.pop %v3272
      %v3274 = vadd.f32 %v3147, %v3149
      %3275 = vadd.xlane.f32.xlu0 %v3274
      %v3276 = vpop.xlane.xlu0 %3275
      %v3277 = vadd.f32 %v3151, %v3153
      %3278 = vadd.xlane.f32.xlu0 %v3277
      %v3279 = vpop.xlane.xlu0 %3278
      %v3280 = vadd.f32 %v3155, %v3157
      %3281 = vadd.xlane.f32.xlu0 %v3280
      %v3282 = vpop.xlane.xlu0 %3281
      %v3283 = vadd.f32 %v3159, %v3161
      %3284 = vadd.xlane.f32.xlu0 %v3283
      %v3285 = vpop.xlane.xlu0 %3284
      %v3286 = vadd.f32 %v3163, %v3165
      %3287 = vadd.xlane.f32.xlu0 %v3286
      %v3288 = vpop.xlane.xlu0 %3287
      %v3289 = vadd.f32 %v3167, %v3169
      %3290 = vadd.xlane.f32.xlu0 %v3289
      %v3291 = vpop.xlane.xlu0 %3290
      %v3292 = vadd.f32 %v3171, %v3173
      %3293 = vadd.xlane.f32.xlu0 %v3292
      %v3294 = vpop.xlane.xlu0 %3293
      %v3295 = vadd.f32 %v3175, %v3177
      %3296 = vadd.xlane.f32.xlu0 %v3295
      %v3297 = vpop.xlane.xlu0 %3296
      %v3298 = vadd.f32 %v3179, %v3181
      %3299 = vadd.xlane.f32.xlu0 %v3298
      %v3300 = vpop.xlane.xlu0 %3299
      %v3301 = vadd.f32 %v3183, %v3185
      %3302 = vadd.xlane.f32.xlu0 %v3301
      %v3303 = vpop.xlane.xlu0 %3302
      %v3304 = vadd.f32 %v3187, %v3189
      %3305 = vadd.xlane.f32.xlu0 %v3304
      %v3306 = vpop.xlane.xlu0 %3305
      %v3307 = vadd.f32 %v3191, %v3193
      %3308 = vadd.xlane.f32.xlu0 %v3307
      %v3309 = vpop.xlane.xlu0 %3308
      %v3310 = vadd.f32 %v3195, %v3197
      %3311 = vadd.xlane.f32.xlu0 %v3310
      %v3312 = vpop.xlane.xlu0 %3311
      %v3313 = vadd.f32 %v3199, %v3201
      %3314 = vadd.xlane.f32.xlu0 %v3313
      %v3315 = vpop.xlane.xlu0 %3314
      %v3316 = vadd.f32 %v3203, %v3205
      %3317 = vadd.xlane.f32.xlu0 %v3316
      %v3318 = vpop.xlane.xlu0 %3317
      %v3319 = vadd.f32 %v3207, %v3209
      %3320 = vadd.xlane.f32.xlu0 %v3319
      %v3321 = vpop.xlane.xlu0 %3320
      %v3322 = vadd.f32 %v3211, %v3213
      %3323 = vadd.xlane.f32.xlu0 %v3322
      %v3324 = vpop.xlane.xlu0 %3323
      %v3325 = vadd.f32 %v3215, %v3217
      %3326 = vadd.xlane.f32.xlu0 %v3325
      %v3327 = vpop.xlane.xlu0 %3326
      %v3328 = vadd.f32 %v3219, %v3221
      %3329 = vadd.xlane.f32.xlu0 %v3328
      %v3330 = vpop.xlane.xlu0 %3329
      %v3331 = vadd.f32 %v3223, %v3225
      %3332 = vadd.xlane.f32.xlu0 %v3331
      %v3333 = vpop.xlane.xlu0 %3332
      %v3334 = vadd.f32 %v3227, %v3229
      %3335 = vadd.xlane.f32.xlu0 %v3334
      %v3336 = vpop.xlane.xlu0 %3335
      %v3337 = vadd.f32 %v3231, %v3233
      %3338 = vadd.xlane.f32.xlu0 %v3337
      %v3339 = vpop.xlane.xlu0 %3338
      %v3340 = vadd.f32 %v3235, %v3237
      %3341 = vadd.xlane.f32.xlu0 %v3340
      %v3342 = vpop.xlane.xlu0 %3341
      %v3343 = vadd.f32 %v3239, %v3241
      %3344 = vadd.xlane.f32.xlu0 %v3343
      %v3345 = vpop.xlane.xlu0 %3344
      %v3346 = vadd.f32 %v3243, %v3245
      %3347 = vadd.xlane.f32.xlu0 %v3346
      %v3348 = vpop.xlane.xlu0 %3347
      %v3349 = vadd.f32 %v3247, %v3249
      %3350 = vadd.xlane.f32.xlu0 %v3349
      %v3351 = vpop.xlane.xlu0 %3350
      %v3352 = vadd.f32 %v3251, %v3253
      %3353 = vadd.xlane.f32.xlu0 %v3352
      %v3354 = vpop.xlane.xlu0 %3353
      %v3355 = vadd.f32 %v3255, %v3257
      %3356 = vadd.xlane.f32.xlu0 %v3355
      %v3357 = vpop.xlane.xlu0 %3356
      %v3358 = vadd.f32 %v3259, %v3261
      %3359 = vadd.xlane.f32.xlu0 %v3358
      %v3360 = vpop.xlane.xlu0 %3359
      %v3361 = vadd.f32 %v3263, %v3265
      %3362 = vadd.xlane.f32.xlu0 %v3361
      %v3363 = vpop.xlane.xlu0 %3362
      %v3364 = vadd.f32 %v3267, %v3269
      %3365 = vadd.xlane.f32.xlu0 %v3364
      %v3366 = vpop.xlane.xlu0 %3365
      %v3367 = vadd.f32 %v3271, %v3273
      %3368 = vadd.xlane.f32.xlu0 %v3367
      %v3369 = vpop.xlane.xlu0 %3368
      %v3370 = vpack.c.bf16 %v3151, %v3147
      %v3371 = vpack.c.bf16 %v3153, %v3149
      %v3372 = vpack.c.bf16 %v3159, %v3155
      %v3373 = vpack.c.bf16 %v3161, %v3157
      %v3374 = vpack.c.bf16 %v3167, %v3163
      %v3375 = vpack.c.bf16 %v3169, %v3165
      %v3376 = vpack.c.bf16 %v3175, %v3171
      %v3377 = vpack.c.bf16 %v3177, %v3173
      %v3378 = vpack.c.bf16 %v3183, %v3179
      %v3379 = vpack.c.bf16 %v3185, %v3181
      %v3380 = vpack.c.bf16 %v3191, %v3187
      %v3381 = vpack.c.bf16 %v3193, %v3189
      %v3382 = vpack.c.bf16 %v3199, %v3195
      %v3383 = vpack.c.bf16 %v3201, %v3197
      %v3384 = vpack.c.bf16 %v3207, %v3203
      %v3385 = vpack.c.bf16 %v3209, %v3205
      %v3386 = vpack.c.bf16 %v3215, %v3211
      %v3387 = vpack.c.bf16 %v3217, %v3213
      %v3388 = vpack.c.bf16 %v3223, %v3219
      %v3389 = vpack.c.bf16 %v3225, %v3221
      %v3390 = vpack.c.bf16 %v3231, %v3227
      %v3391 = vpack.c.bf16 %v3233, %v3229
      %v3392 = vpack.c.bf16 %v3239, %v3235
      %v3393 = vpack.c.bf16 %v3241, %v3237
      %v3394 = vpack.c.bf16 %v3247, %v3243
      %v3395 = vpack.c.bf16 %v3249, %v3245
      %v3396 = vpack.c.bf16 %v3255, %v3251
      %v3397 = vpack.c.bf16 %v3257, %v3253
      %v3398 = vpack.c.bf16 %v3263, %v3259
      %v3399 = vpack.c.bf16 %v3265, %v3261
      %v3400 = vpack.c.bf16 %v3271, %v3267
      %v3401 = vpack.c.bf16 %v3273, %v3269
      %v3402 = vld [vmem:[#allocation5] sm:$0xf]
      %v3403 = vld [vmem:[#allocation5 + $0x4] sm:$0xf]
      %v3404 = vld [vmem:[#allocation5 + $0x8] sm:$0xf]
      %v3405 = vld [vmem:[#allocation5 + $0xc] sm:$0xf]
      %v3406 = vld [vmem:[#allocation5 + $0x10] sm:$0xf]
      %v3407 = vld [vmem:[#allocation5 + $0x14] sm:$0xf]
      %v3408 = vld [vmem:[#allocation5 + $0x18] sm:$0xf]
      %v3409 = vld [vmem:[#allocation5 + $0x1c] sm:$0xf]
      %v3410 = vld [vmem:[#allocation5 + $0x20] sm:$0xf]
      %v3411 = vld [vmem:[#allocation5 + $0x24] sm:$0xf]
      %v3412 = vld [vmem:[#allocation5 + $0x28] sm:$0xf]
      %v3413 = vld [vmem:[#allocation5 + $0x2c] sm:$0xf]
      %v3414 = vld [vmem:[#allocation5 + $0x30] sm:$0xf]
      %v3415 = vld [vmem:[#allocation5 + $0x34] sm:$0xf]
      %v3416 = vld [vmem:[#allocation5 + $0x38] sm:$0xf]
      %v3417 = vld [vmem:[#allocation5 + $0x3c] sm:$0xf]
      %v3418 = vld [vmem:[#allocation5 + $0x40] sm:$0xf]
      %v3419 = vld [vmem:[#allocation5 + $0x44] sm:$0xf]
      %v3420 = vld [vmem:[#allocation5 + $0x48] sm:$0xf]
      %v3421 = vld [vmem:[#allocation5 + $0x4c] sm:$0xf]
      %v3422 = vld [vmem:[#allocation5 + $0x50] sm:$0xf]
      %v3423 = vld [vmem:[#allocation5 + $0x54] sm:$0xf]
      %v3424 = vld [vmem:[#allocation5 + $0x58] sm:$0xf]
      %v3425 = vld [vmem:[#allocation5 + $0x5c] sm:$0xf]
      %v3426 = vld [vmem:[#allocation5 + $0x60] sm:$0xf]
      %v3427 = vld [vmem:[#allocation5 + $0x64] sm:$0xf]
      %v3428 = vld [vmem:[#allocation5 + $0x68] sm:$0xf]
      %v3429 = vld [vmem:[#allocation5 + $0x6c] sm:$0xf]
      %v3430 = vld [vmem:[#allocation5 + $0x70] sm:$0xf]
      %v3431 = vld [vmem:[#allocation5 + $0x74] sm:$0xf]
      %v3432 = vld [vmem:[#allocation5 + $0x78] sm:$0xf]
      %v3433 = vld [vmem:[#allocation5 + $0x7c] sm:$0xf]
      %v3466 = vunpack.c.l.b16 %v3402
      %v3467 = vunpack.c.l.b16 %v3403
      %v3468 = vunpack.c.l.b16 %v3404
      %v3469 = vunpack.c.l.b16 %v3405
      %v3470 = vunpack.c.l.b16 %v3406
      %v3471 = vunpack.c.l.b16 %v3407
      %v3472 = vunpack.c.l.b16 %v3408
      %v3473 = vunpack.c.l.b16 %v3409
      %v3474 = vunpack.c.l.b16 %v3410
      %v3475 = vunpack.c.l.b16 %v3411
      %v3476 = vunpack.c.l.b16 %v3412
      %v3477 = vunpack.c.l.b16 %v3413
      %v3478 = vunpack.c.l.b16 %v3414
      %v3479 = vunpack.c.l.b16 %v3415
      %v3480 = vunpack.c.l.b16 %v3416
      %v3481 = vunpack.c.l.b16 %v3417
      %v3482 = vunpack.c.l.b16 %v3418
      %v3483 = vunpack.c.l.b16 %v3419
      %v3484 = vunpack.c.l.b16 %v3420
      %v3485 = vunpack.c.l.b16 %v3421
      %v3486 = vunpack.c.l.b16 %v3422
      %v3487 = vunpack.c.l.b16 %v3423
      %v3488 = vunpack.c.l.b16 %v3424
      %v3489 = vunpack.c.l.b16 %v3425
      %v3490 = vunpack.c.l.b16 %v3426
      %v3491 = vunpack.c.l.b16 %v3427
      %v3492 = vunpack.c.l.b16 %v3428
      %v3493 = vunpack.c.l.b16 %v3429
      %v3494 = vunpack.c.l.b16 %v3430
      %v3495 = vunpack.c.l.b16 %v3431
      %v3496 = vunpack.c.l.b16 %v3432
      %v3497 = vunpack.c.l.b16 %v3433
      %v3498 = vpack.c.b16 %v3467, %v3466
      %v3499 = vpack.c.b16 %v3469, %v3468
      %v3500 = vpack.c.b16 %v3471, %v3470
      %v3501 = vpack.c.b16 %v3473, %v3472
      %v3502 = vpack.c.b16 %v3475, %v3474
      %v3503 = vpack.c.b16 %v3477, %v3476
      %v3504 = vpack.c.b16 %v3479, %v3478
      %v3505 = vpack.c.b16 %v3481, %v3480
      %v3506 = vpack.c.b16 %v3483, %v3482
      %v3507 = vpack.c.b16 %v3485, %v3484
      %v3508 = vpack.c.b16 %v3487, %v3486
      %v3509 = vpack.c.b16 %v3489, %v3488
      %v3510 = vpack.c.b16 %v3491, %v3490
      %v3511 = vpack.c.b16 %v3493, %v3492
      %v3512 = vpack.c.b16 %v3495, %v3494
      %v3513 = vpack.c.b16 %v3497, %v3496
      %3530 = vmatprep.subr.bf16.mxu0 0
      %3531 = vmatpush1.bf16.msra.mxu0 %v3505
      %3532 = vmatprep.subr.bf16.mxu0 0
      %3533 = vmatpush1.bf16.msra.mxu0 %v3504
      %3534 = vmatprep.subr.bf16.mxu0 0
      %3535 = vmatpush1.bf16.msra.mxu0 %v3503
      %3536 = vmatprep.subr.bf16.mxu0 0
      %3537 = vmatpush1.bf16.msra.mxu0 %v3502
      %3538 = vmatprep.subr.bf16.mxu0 0
      %3539 = vmatpush1.bf16.msra.mxu0 %v3501
      %3540 = vmatprep.subr.bf16.mxu0 0
      %3541 = vmatpush1.bf16.msra.mxu0 %v3500
      %3542 = vmatprep.subr.bf16.mxu0 0
      %3543 = vmatpush1.bf16.msra.mxu0 %v3499
      %3544 = vmatprep.subr.bf16.mxu0 0
      %3545 = vmatpush1.bf16.msra.mxu0 %v3498
      %3546 = vmatprep.subr.bf16.mxu0 0
      %3547 = vmatpush2.bf16.msra.mxu0 %v3513
      %3548 = vmatprep.subr.bf16.mxu0 0
      %3549 = vmatpush2.bf16.msra.mxu0 %v3512
      %3550 = vmatprep.subr.bf16.mxu0 0
      %3551 = vmatpush2.bf16.msra.mxu0 %v3511
      %3552 = vmatprep.subr.bf16.mxu0 0
      %3553 = vmatpush2.bf16.msra.mxu0 %v3510
      %3554 = vmatprep.subr.bf16.mxu0 0
      %3555 = vmatpush2.bf16.msra.mxu0 %v3509
      %3556 = vmatprep.subr.bf16.mxu0 0
      %3557 = vmatpush2.bf16.msra.mxu0 %v3508
      %3558 = vmatprep.subr.bf16.mxu0 0
      %3559 = vmatpush2.bf16.msra.mxu0 %v3507
      %3560 = vmatprep.subr.bf16.mxu0 0
      %3561 = vmatpush2.bf16.msra.mxu0 %v3506
      %3562 = vmatprep.mubr.bf16.mxu0 %v3371
      %3563 = vmatmul.mubr.bf16.gmra.mxu0 %v3370
      %v3564 = vpop.f32.mrf.mxu0
      %v3565 = vadd.f32 0.0, %v3564
      %v3566 = vpop.f32.mrf.mxu0
      %v3567 = vpop.f32.mrf.mxu0
      %v3568 = vadd.f32 0.0, %v3567
      %v3569 = vpop.f32.mrf.mxu0
      %3570 = vmatprep.mubr.bf16.mxu0 %v3373
      %3571 = vmatmul.mubr.bf16.gmra.mxu0 %v3372
      %v3572 = vpop.f32.mrf.mxu0
      %v3573 = vadd.f32 0.0, %v3572
      %v3574 = vpop.f32.mrf.mxu0
      %v3575 = vpop.f32.mrf.mxu0
      %v3576 = vadd.f32 0.0, %v3575
      %v3577 = vpop.f32.mrf.mxu0
      %3578 = vmatprep.mubr.bf16.mxu0 %v3375
      %3579 = vmatmul.mubr.bf16.gmra.mxu0 %v3374
      %v3580 = vpop.f32.mrf.mxu0
      %v3581 = vadd.f32 0.0, %v3580
      %v3582 = vpop.f32.mrf.mxu0
      %v3583 = vpop.f32.mrf.mxu0
      %v3584 = vadd.f32 0.0, %v3583
      %v3585 = vpop.f32.mrf.mxu0
      %3586 = vmatprep.mubr.bf16.mxu0 %v3377
      %3587 = vmatmul.mubr.bf16.gmra.mxu0 %v3376
      %v3588 = vpop.f32.mrf.mxu0
      %v3589 = vadd.f32 0.0, %v3588
      %v3590 = vpop.f32.mrf.mxu0
      %v3591 = vpop.f32.mrf.mxu0
      %v3592 = vadd.f32 0.0, %v3591
      %v3593 = vpop.f32.mrf.mxu0
      %3594 = vmatprep.mubr.bf16.mxu0 %v3379
      %3595 = vmatmul.mubr.bf16.gmra.mxu0 %v3378
      %v3596 = vpop.f32.mrf.mxu0
      %v3597 = vadd.f32 0.0, %v3596
      %v3598 = vpop.f32.mrf.mxu0
      %v3599 = vpop.f32.mrf.mxu0
      %v3600 = vadd.f32 0.0, %v3599
      %v3601 = vpop.f32.mrf.mxu0
      %3602 = vmatprep.mubr.bf16.mxu0 %v3381
      %3603 = vmatmul.mubr.bf16.gmra.mxu0 %v3380
      %v3604 = vpop.f32.mrf.mxu0
      %v3605 = vadd.f32 0.0, %v3604
      %v3606 = vpop.f32.mrf.mxu0
      %v3607 = vpop.f32.mrf.mxu0
      %v3608 = vadd.f32 0.0, %v3607
      %v3609 = vpop.f32.mrf.mxu0
      %3610 = vmatprep.mubr.bf16.mxu0 %v3383
      %3611 = vmatmul.mubr.bf16.gmra.mxu0 %v3382
      %v3612 = vpop.f32.mrf.mxu0
      %v3613 = vadd.f32 0.0, %v3612
      %v3614 = vpop.f32.mrf.mxu0
      %v3615 = vpop.f32.mrf.mxu0
      %v3616 = vadd.f32 0.0, %v3615
      %v3617 = vpop.f32.mrf.mxu0
      %3618 = vmatprep.mubr.bf16.mxu0 %v3385
      %3619 = vmatmul.mubr.bf16.gmra.mxu0 %v3384
      %v3620 = vpop.f32.mrf.mxu0
      %v3621 = vadd.f32 0.0, %v3620
      %v3622 = vpop.f32.mrf.mxu0
      %v3623 = vpop.f32.mrf.mxu0
      %v3624 = vadd.f32 0.0, %v3623
      %v3625 = vpop.f32.mrf.mxu0
      %3626 = vmatprep.mubr.bf16.mxu0 %v3387
      %3627 = vmatmul.mubr.bf16.gmra.mxu0 %v3386
      %v3628 = vpop.f32.mrf.mxu0
      %v3629 = vadd.f32 0.0, %v3628
      %v3630 = vpop.f32.mrf.mxu0
      %v3631 = vpop.f32.mrf.mxu0
      %v3632 = vadd.f32 0.0, %v3631
      %v3633 = vpop.f32.mrf.mxu0
      %3634 = vmatprep.mubr.bf16.mxu0 %v3389
      %3635 = vmatmul.mubr.bf16.gmra.mxu0 %v3388
      %v3636 = vpop.f32.mrf.mxu0
      %v3637 = vadd.f32 0.0, %v3636
      %v3638 = vpop.f32.mrf.mxu0
      %v3639 = vpop.f32.mrf.mxu0
      %v3640 = vadd.f32 0.0, %v3639
      %v3641 = vpop.f32.mrf.mxu0
      %3642 = vmatprep.mubr.bf16.mxu0 %v3391
      %3643 = vmatmul.mubr.bf16.gmra.mxu0 %v3390
      %v3644 = vpop.f32.mrf.mxu0
      %v3645 = vadd.f32 0.0, %v3644
      %v3646 = vpop.f32.mrf.mxu0
      %v3647 = vpop.f32.mrf.mxu0
      %v3648 = vadd.f32 0.0, %v3647
      %v3649 = vpop.f32.mrf.mxu0
      %3650 = vmatprep.mubr.bf16.mxu0 %v3393
      %3651 = vmatmul.mubr.bf16.gmra.mxu0 %v3392
      %v3652 = vpop.f32.mrf.mxu0
      %v3653 = vadd.f32 0.0, %v3652
      %v3654 = vpop.f32.mrf.mxu0
      %v3655 = vpop.f32.mrf.mxu0
      %v3656 = vadd.f32 0.0, %v3655
      %v3657 = vpop.f32.mrf.mxu0
      %3658 = vmatprep.mubr.bf16.mxu0 %v3395
      %3659 = vmatmul.mubr.bf16.gmra.mxu0 %v3394
      %v3660 = vpop.f32.mrf.mxu0
      %v3661 = vadd.f32 0.0, %v3660
      %v3662 = vpop.f32.mrf.mxu0
      %v3663 = vpop.f32.mrf.mxu0
      %v3664 = vadd.f32 0.0, %v3663
      %v3665 = vpop.f32.mrf.mxu0
      %3666 = vmatprep.mubr.bf16.mxu0 %v3397
      %3667 = vmatmul.mubr.bf16.gmra.mxu0 %v3396
      %v3668 = vpop.f32.mrf.mxu0
      %v3669 = vadd.f32 0.0, %v3668
      %v3670 = vpop.f32.mrf.mxu0
      %v3671 = vpop.f32.mrf.mxu0
      %v3672 = vadd.f32 0.0, %v3671
      %v3673 = vpop.f32.mrf.mxu0
      %3674 = vmatprep.mubr.bf16.mxu0 %v3399
      %3675 = vmatmul.mubr.bf16.gmra.mxu0 %v3398
      %v3676 = vpop.f32.mrf.mxu0
      %v3677 = vadd.f32 0.0, %v3676
      %v3678 = vpop.f32.mrf.mxu0
      %v3679 = vpop.f32.mrf.mxu0
      %v3680 = vadd.f32 0.0, %v3679
      %v3681 = vpop.f32.mrf.mxu0
      %3682 = vmatprep.mubr.bf16.mxu0 %v3401
      %3683 = vmatmul.mubr.bf16.gmra.mxu0 %v3400
      %v3684 = vpop.f32.mrf.mxu0
      %v3685 = vadd.f32 0.0, %v3684
      %v3686 = vpop.f32.mrf.mxu0
      %v3687 = vpop.f32.mrf.mxu0
      %v3688 = vadd.f32 0.0, %v3687
      %v3689 = vpop.f32.mrf.mxu0
      %3690 = vdwg.mxu0
      %v3691 = vrcp.pop %v3276
      %v3692 = vrcp.pop %v3279
      %v3693 = vrcp.pop %v3282
      %v3694 = vrcp.pop %v3285
      %v3695 = vrcp.pop %v3288
      %v3696 = vrcp.pop %v3291
      %v3697 = vrcp.pop %v3294
      %v3698 = vrcp.pop %v3297
      %v3699 = vrcp.pop %v3300
      %v3700 = vrcp.pop %v3303
      %v3701 = vrcp.pop %v3306
      %v3702 = vrcp.pop %v3309
      %v3703 = vrcp.pop %v3312
      %v3704 = vrcp.pop %v3315
      %v3705 = vrcp.pop %v3318
      %v3706 = vrcp.pop %v3321
      %v3707 = vrcp.pop %v3324
      %v3708 = vrcp.pop %v3327
      %v3709 = vrcp.pop %v3330
      %v3710 = vrcp.pop %v3333
      %v3711 = vrcp.pop %v3336
      %v3712 = vrcp.pop %v3339
      %v3713 = vrcp.pop %v3342
      %v3714 = vrcp.pop %v3345
      %v3715 = vrcp.pop %v3348
      %v3716 = vrcp.pop %v3351
      %v3717 = vrcp.pop %v3354
      %v3718 = vrcp.pop %v3357
      %v3719 = vrcp.pop %v3360
      %v3720 = vrcp.pop %v3363
      %v3721 = vrcp.pop %v3366
      %v3722 = vrcp.pop %v3369
      %v3723 = vmul.f32 %v3565, %v3691
      %v3724 = vmul.f32 %v3568, %v3692
      %v3725 = vmul.f32 %v3573, %v3693
      %v3726 = vmul.f32 %v3576, %v3694
      %v3727 = vmul.f32 %v3581, %v3695
      %v3728 = vmul.f32 %v3584, %v3696
      %v3729 = vmul.f32 %v3589, %v3697
      %v3730 = vmul.f32 %v3592, %v3698
      %v3731 = vmul.f32 %v3597, %v3699
      %v3732 = vmul.f32 %v3600, %v3700
      %v3733 = vmul.f32 %v3605, %v3701
      %v3734 = vmul.f32 %v3608, %v3702
      %v3735 = vmul.f32 %v3613, %v3703
      %v3736 = vmul.f32 %v3616, %v3704
      %v3737 = vmul.f32 %v3621, %v3705
      %v3738 = vmul.f32 %v3624, %v3706
      %v3739 = vmul.f32 %v3629, %v3707
      %v3740 = vmul.f32 %v3632, %v3708
      %v3741 = vmul.f32 %v3637, %v3709
      %v3742 = vmul.f32 %v3640, %v3710
      %v3743 = vmul.f32 %v3645, %v3711
      %v3744 = vmul.f32 %v3648, %v3712
      %v3745 = vmul.f32 %v3653, %v3713
      %v3746 = vmul.f32 %v3656, %v3714
      %v3747 = vmul.f32 %v3661, %v3715
      %v3748 = vmul.f32 %v3664, %v3716
      %v3749 = vmul.f32 %v3669, %v3717
      %v3750 = vmul.f32 %v3672, %v3718
      %v3751 = vmul.f32 %v3677, %v3719
      %v3752 = vmul.f32 %v3680, %v3720
      %v3753 = vmul.f32 %v3685, %v3721
      %v3754 = vmul.f32 %v3688, %v3722
      %v3755 = vpack.c.bf16 %v3724, %v3723
      %v3756 = vpack.c.bf16 %v3726, %v3725
      %v3757 = vpack.c.bf16 %v3728, %v3727
      %v3758 = vpack.c.bf16 %v3730, %v3729
      %v3759 = vpack.c.bf16 %v3732, %v3731
      %v3760 = vpack.c.bf16 %v3734, %v3733
      %v3761 = vpack.c.bf16 %v3736, %v3735
      %v3762 = vpack.c.bf16 %v3738, %v3737
      %v3763 = vpack.c.bf16 %v3740, %v3739
      %v3764 = vpack.c.bf16 %v3742, %v3741
      %v3765 = vpack.c.bf16 %v3744, %v3743
      %v3766 = vpack.c.bf16 %v3746, %v3745
      %v3767 = vpack.c.bf16 %v3748, %v3747
      %v3768 = vpack.c.bf16 %v3750, %v3749
      %v3769 = vpack.c.bf16 %v3752, %v3751
      %v3770 = vpack.c.bf16 %v3754, %v3753
      %v3771 = vld [vmem:[%s8] sm:$0xf]
      %v3772 = vld [vmem:[%s8 + $0x4] sm:$0xf]
      %v3773 = vld [vmem:[%s8 + $0x8] sm:$0xf]
      %v3774 = vld [vmem:[%s8 + $0xc] sm:$0xf]
      %v3775 = vld [vmem:[%s8 + $0x10] sm:$0xf]
      %v3776 = vld [vmem:[%s8 + $0x14] sm:$0xf]
      %v3777 = vld [vmem:[%s8 + $0x18] sm:$0xf]
      %v3778 = vld [vmem:[%s8 + $0x1c] sm:$0xf]
      %v3779 = vld [vmem:[%s8 + $0x20] sm:$0xf]
      %v3780 = vld [vmem:[%s8 + $0x24] sm:$0xf]
      %v3781 = vld [vmem:[%s8 + $0x28] sm:$0xf]
      %v3782 = vld [vmem:[%s8 + $0x2c] sm:$0xf]
      %v3783 = vld [vmem:[%s8 + $0x30] sm:$0xf]
      %v3784 = vld [vmem:[%s8 + $0x34] sm:$0xf]
      %v3785 = vld [vmem:[%s8 + $0x38] sm:$0xf]
      %v3786 = vld [vmem:[%s8 + $0x3c] sm:$0xf]
      %v3787 = vld [vmem:[%s9] sm:$0x1]
      %v3789 = vlaneseq
      %v3790 = vshrl.u32 %v3789, 7
      %v3791 = vsub.s32 0, %v3790
      %v3792 = vrot.slane %v3787, %v3791
      %v3810 = vunpack.c.l.b16 %v3771
      %v3811 = vunpack.c.l.b16 %v3772
      %v3812 = vunpack.c.l.b16 %v3773
      %v3813 = vunpack.c.l.b16 %v3774
      %v3814 = vunpack.c.l.b16 %v3775
      %v3815 = vunpack.c.l.b16 %v3776
      %v3816 = vunpack.c.l.b16 %v3777
      %v3817 = vunpack.c.l.b16 %v3778
      %v3818 = vunpack.c.l.b16 %v3779
      %v3819 = vunpack.c.l.b16 %v3780
      %v3820 = vunpack.c.l.b16 %v3781
      %v3821 = vunpack.c.l.b16 %v3782
      %v3822 = vunpack.c.l.b16 %v3783
      %v3823 = vunpack.c.l.b16 %v3784
      %v3824 = vunpack.c.l.b16 %v3785
      %v3825 = vunpack.c.l.b16 %v3786
      %v3826 = vpack.c.b16 %v3811, %v3810
      %v3827 = vpack.c.b16 %v3813, %v3812
      %v3828 = vpack.c.b16 %v3815, %v3814
      %v3829 = vpack.c.b16 %v3817, %v3816
      %v3830 = vpack.c.b16 %v3819, %v3818
      %v3831 = vpack.c.b16 %v3821, %v3820
      %v3832 = vpack.c.b16 %v3823, %v3822
      %v3833 = vpack.c.b16 %v3825, %v3824
      %3842 = vmatprep.subr.bf16.mxu0 0
      %3843 = vmatpush1.bf16.msra.mxu0 %v3833
      %3844 = vmatprep.subr.bf16.mxu0 0
      %3845 = vmatpush1.bf16.msra.mxu0 %v3832
      %3846 = vmatprep.subr.bf16.mxu0 0
      %3847 = vmatpush1.bf16.msra.mxu0 %v3831
      %3848 = vmatprep.subr.bf16.mxu0 0
      %3849 = vmatpush1.bf16.msra.mxu0 %v3830
      %3850 = vmatprep.subr.bf16.mxu0 0
      %3851 = vmatpush1.bf16.msra.mxu0 %v3829
      %3852 = vmatprep.subr.bf16.mxu0 0
      %3853 = vmatpush1.bf16.msra.mxu0 %v3828
      %3854 = vmatprep.subr.bf16.mxu0 0
      %3855 = vmatpush1.bf16.msra.mxu0 %v3827
      %3856 = vmatprep.subr.bf16.mxu0 0
      %3857 = vmatpush1.bf16.msra.mxu0 %v3826
      %3858 = vmatprep.subr.bf16.mxu0 0
      %3859 = vmatpush2.bf16.msra.mxu0 0
      %3860 = vmatprep.subr.bf16.mxu0 0
      %3861 = vmatpush2.bf16.msra.mxu0 0
      %3862 = vmatprep.subr.bf16.mxu0 0
      %3863 = vmatpush2.bf16.msra.mxu0 0
      %3864 = vmatprep.subr.bf16.mxu0 0
      %3865 = vmatpush2.bf16.msra.mxu0 0
      %3866 = vmatprep.subr.bf16.mxu0 0
      %3867 = vmatpush2.bf16.msra.mxu0 0
      %3868 = vmatprep.subr.bf16.mxu0 0
      %3869 = vmatpush2.bf16.msra.mxu0 0
      %3870 = vmatprep.subr.bf16.mxu0 0
      %3871 = vmatpush2.bf16.msra.mxu0 0
      %3872 = vmatprep.subr.bf16.mxu0 0
      %3873 = vmatpush2.bf16.msra.mxu0 0
      %3874 = vmatprep.mubr.bf16.mxu0 0
      %3875 = vmatmul.mubr.bf16.gmra.mxu0 %v3755
      %v3876 = vpop.f32.mrf.mxu0
      %v3877 = vadd.f32 %v3792, %v3876
      %v3878 = vpop.f32.mrf.mxu0
      %v3879 = vpop.f32.mrf.mxu0
      %v3880 = vadd.f32 %v3792, %v3879
      %v3881 = vpop.f32.mrf.mxu0
      %3882 = vmatprep.mubr.bf16.mxu0 0
      %3883 = vmatmul.mubr.bf16.gmra.mxu0 %v3756
      %v3884 = vpop.f32.mrf.mxu0
      %v3885 = vadd.f32 %v3792, %v3884
      %v3886 = vpop.f32.mrf.mxu0
      %v3887 = vpop.f32.mrf.mxu0
      %v3888 = vadd.f32 %v3792, %v3887
      %v3889 = vpop.f32.mrf.mxu0
      %3890 = vmatprep.mubr.bf16.mxu0 0
      %3891 = vmatmul.mubr.bf16.gmra.mxu0 %v3757
      %v3892 = vpop.f32.mrf.mxu0
      %v3893 = vadd.f32 %v3792, %v3892
      %v3894 = vpop.f32.mrf.mxu0
      %v3895 = vpop.f32.mrf.mxu0
      %v3896 = vadd.f32 %v3792, %v3895
      %v3897 = vpop.f32.mrf.mxu0
      %3898 = vmatprep.mubr.bf16.mxu0 0
      %3899 = vmatmul.mubr.bf16.gmra.mxu0 %v3758
      %v3900 = vpop.f32.mrf.mxu0
      %v3901 = vadd.f32 %v3792, %v3900
      %v3902 = vpop.f32.mrf.mxu0
      %v3903 = vpop.f32.mrf.mxu0
      %v3904 = vadd.f32 %v3792, %v3903
      %v3905 = vpop.f32.mrf.mxu0
      %3906 = vmatprep.mubr.bf16.mxu0 0
      %3907 = vmatmul.mubr.bf16.gmra.mxu0 %v3759
      %v3908 = vpop.f32.mrf.mxu0
      %v3909 = vadd.f32 %v3792, %v3908
      %v3910 = vpop.f32.mrf.mxu0
      %v3911 = vpop.f32.mrf.mxu0
      %v3912 = vadd.f32 %v3792, %v3911
      %v3913 = vpop.f32.mrf.mxu0
      %3914 = vmatprep.mubr.bf16.mxu0 0
      %3915 = vmatmul.mubr.bf16.gmra.mxu0 %v3760
      %v3916 = vpop.f32.mrf.mxu0
      %v3917 = vadd.f32 %v3792, %v3916
      %v3918 = vpop.f32.mrf.mxu0
      %v3919 = vpop.f32.mrf.mxu0
      %v3920 = vadd.f32 %v3792, %v3919
      %v3921 = vpop.f32.mrf.mxu0
      %3922 = vmatprep.mubr.bf16.mxu0 0
      %3923 = vmatmul.mubr.bf16.gmra.mxu0 %v3761
      %v3924 = vpop.f32.mrf.mxu0
      %v3925 = vadd.f32 %v3792, %v3924
      %v3926 = vpop.f32.mrf.mxu0
      %v3927 = vpop.f32.mrf.mxu0
      %v3928 = vadd.f32 %v3792, %v3927
      %v3929 = vpop.f32.mrf.mxu0
      %3930 = vmatprep.mubr.bf16.mxu0 0
      %3931 = vmatmul.mubr.bf16.gmra.mxu0 %v3762
      %v3932 = vpop.f32.mrf.mxu0
      %v3933 = vadd.f32 %v3792, %v3932
      %v3934 = vpop.f32.mrf.mxu0
      %v3935 = vpop.f32.mrf.mxu0
      %v3936 = vadd.f32 %v3792, %v3935
      %v3937 = vpop.f32.mrf.mxu0
      %3938 = vmatprep.mubr.bf16.mxu0 0
      %3939 = vmatmul.mubr.bf16.gmra.mxu0 %v3763
      %v3940 = vpop.f32.mrf.mxu0
      %v3941 = vadd.f32 %v3792, %v3940
      %v3942 = vpop.f32.mrf.mxu0
      %v3943 = vpop.f32.mrf.mxu0
      %v3944 = vadd.f32 %v3792, %v3943
      %v3945 = vpop.f32.mrf.mxu0
      %3946 = vmatprep.mubr.bf16.mxu0 0
      %3947 = vmatmul.mubr.bf16.gmra.mxu0 %v3764
      %v3948 = vpop.f32.mrf.mxu0
      %v3949 = vadd.f32 %v3792, %v3948
      %v3950 = vpop.f32.mrf.mxu0
      %v3951 = vpop.f32.mrf.mxu0
      %v3952 = vadd.f32 %v3792, %v3951
      %v3953 = vpop.f32.mrf.mxu0
      %3954 = vmatprep.mubr.bf16.mxu0 0
      %3955 = vmatmul.mubr.bf16.gmra.mxu0 %v3765
      %v3956 = vpop.f32.mrf.mxu0
      %v3957 = vadd.f32 %v3792, %v3956
      %v3958 = vpop.f32.mrf.mxu0
      %v3959 = vpop.f32.mrf.mxu0
      %v3960 = vadd.f32 %v3792, %v3959
      %v3961 = vpop.f32.mrf.mxu0
      %3962 = vmatprep.mubr.bf16.mxu0 0
      %3963 = vmatmul.mubr.bf16.gmra.mxu0 %v3766
      %v3964 = vpop.f32.mrf.mxu0
      %v3965 = vadd.f32 %v3792, %v3964
      %v3966 = vpop.f32.mrf.mxu0
      %v3967 = vpop.f32.mrf.mxu0
      %v3968 = vadd.f32 %v3792, %v3967
      %v3969 = vpop.f32.mrf.mxu0
      %3970 = vmatprep.mubr.bf16.mxu0 0
      %3971 = vmatmul.mubr.bf16.gmra.mxu0 %v3767
      %v3972 = vpop.f32.mrf.mxu0
      %v3973 = vadd.f32 %v3792, %v3972
      %v3974 = vpop.f32.mrf.mxu0
      %v3975 = vpop.f32.mrf.mxu0
      %v3976 = vadd.f32 %v3792, %v3975
      %v3977 = vpop.f32.mrf.mxu0
      %3978 = vmatprep.mubr.bf16.mxu0 0
      %3979 = vmatmul.mubr.bf16.gmra.mxu0 %v3768
      %v3980 = vpop.f32.mrf.mxu0
      %v3981 = vadd.f32 %v3792, %v3980
      %v3982 = vpop.f32.mrf.mxu0
      %v3983 = vpop.f32.mrf.mxu0
      %v3984 = vadd.f32 %v3792, %v3983
      %v3985 = vpop.f32.mrf.mxu0
      %3986 = vmatprep.mubr.bf16.mxu0 0
      %3987 = vmatmul.mubr.bf16.gmra.mxu0 %v3769
      %v3988 = vpop.f32.mrf.mxu0
      %v3989 = vadd.f32 %v3792, %v3988
      %v3990 = vpop.f32.mrf.mxu0
      %v3991 = vpop.f32.mrf.mxu0
      %v3992 = vadd.f32 %v3792, %v3991
      %v3993 = vpop.f32.mrf.mxu0
      %3994 = vmatprep.mubr.bf16.mxu0 0
      %3995 = vmatmul.mubr.bf16.gmra.mxu0 %v3770
      %v3996 = vpop.f32.mrf.mxu0
      %v3997 = vadd.f32 %v3792, %v3996
      %v3998 = vpop.f32.mrf.mxu0
      %v3999 = vpop.f32.mrf.mxu0
      %v4000 = vadd.f32 %v3792, %v3999
      %v4001 = vpop.f32.mrf.mxu0
      %4002 = vdwg.mxu0
      %s4003 = scalar_lea.vmem [#allocation2], %s2564
      %v4004 = vld [vmem:[%s4003] sm:$0xff]
      %v4005 = vld [vmem:[%s4003 + $0x8] sm:$0xff]
      %v4006 = vld [vmem:[%s4003 + $0x10] sm:$0xff]
      %v4007 = vld [vmem:[%s4003 + $0x18] sm:$0xff]
      %v4008 = vld [vmem:[%s4003 + $0x20] sm:$0xff]
      %v4009 = vld [vmem:[%s4003 + $0x28] sm:$0xff]
      %v4010 = vld [vmem:[%s4003 + $0x30] sm:$0xff]
      %v4011 = vld [vmem:[%s4003 + $0x38] sm:$0xff]
      %v4012 = vld [vmem:[%s4003 + $0x40] sm:$0xff]
      %v4013 = vld [vmem:[%s4003 + $0x48] sm:$0xff]
      %v4014 = vld [vmem:[%s4003 + $0x50] sm:$0xff]
      %v4015 = vld [vmem:[%s4003 + $0x58] sm:$0xff]
      %v4016 = vld [vmem:[%s4003 + $0x60] sm:$0xff]
      %v4017 = vld [vmem:[%s4003 + $0x68] sm:$0xff]
      %v4018 = vld [vmem:[%s4003 + $0x70] sm:$0xff]
      %v4019 = vld [vmem:[%s4003 + $0x78] sm:$0xff]
      %v4020 = vld [vmem:[%s4003 + $0x80] sm:$0xff]
      %v4021 = vld [vmem:[%s4003 + $0x88] sm:$0xff]
      %v4022 = vld [vmem:[%s4003 + $0x90] sm:$0xff]
      %v4023 = vld [vmem:[%s4003 + $0x98] sm:$0xff]
      %v4024 = vld [vmem:[%s4003 + $0xa0] sm:$0xff]
      %v4025 = vld [vmem:[%s4003 + $0xa8] sm:$0xff]
      %v4026 = vld [vmem:[%s4003 + $0xb0] sm:$0xff]
      %v4027 = vld [vmem:[%s4003 + $0xb8] sm:$0xff]
      %v4028 = vld [vmem:[%s4003 + $0xc0] sm:$0xff]
      %v4029 = vld [vmem:[%s4003 + $0xc8] sm:$0xff]
      %v4030 = vld [vmem:[%s4003 + $0xd0] sm:$0xff]
      %v4031 = vld [vmem:[%s4003 + $0xd8] sm:$0xff]
      %v4032 = vld [vmem:[%s4003 + $0xe0] sm:$0xff]
      %v4033 = vld [vmem:[%s4003 + $0xe8] sm:$0xff]
      %v4034 = vld [vmem:[%s4003 + $0xf0] sm:$0xff]
      %v4035 = vld [vmem:[%s4003 + $0xf8] sm:$0xff]
      %v4036 = vadd.f32 %v3877, %v4004
      %v4037 = vadd.f32 %v3880, %v4005
      %v4038 = vadd.f32 %v3885, %v4006
      %v4039 = vadd.f32 %v3888, %v4007
      %v4040 = vadd.f32 %v3893, %v4008
      %v4041 = vadd.f32 %v3896, %v4009
      %v4042 = vadd.f32 %v3901, %v4010
      %v4043 = vadd.f32 %v3904, %v4011
      %v4044 = vadd.f32 %v3909, %v4012
      %v4045 = vadd.f32 %v3912, %v4013
      %v4046 = vadd.f32 %v3917, %v4014
      %v4047 = vadd.f32 %v3920, %v4015
      %v4048 = vadd.f32 %v3925, %v4016
      %v4049 = vadd.f32 %v3928, %v4017
      %v4050 = vadd.f32 %v3933, %v4018
      %v4051 = vadd.f32 %v3936, %v4019
      %v4052 = vadd.f32 %v3941, %v4020
      %v4053 = vadd.f32 %v3944, %v4021
      %v4054 = vadd.f32 %v3949, %v4022
      %v4055 = vadd.f32 %v3952, %v4023
      %v4056 = vadd.f32 %v3957, %v4024
      %v4057 = vadd.f32 %v3960, %v4025
      %v4058 = vadd.f32 %v3965, %v4026
      %v4059 = vadd.f32 %v3968, %v4027
      %v4060 = vadd.f32 %v3973, %v4028
      %v4061 = vadd.f32 %v3976, %v4029
      %v4062 = vadd.f32 %v3981, %v4030
      %v4063 = vadd.f32 %v3984, %v4031
      %v4064 = vadd.f32 %v3989, %v4032
      %v4065 = vadd.f32 %v3992, %v4033
      %v4066 = vadd.f32 %v3997, %v4034
      %v4067 = vadd.f32 %v4000, %v4035
      %4068 = vxpose.xlu0.b32.start [1/16] %v4036, 128
      %4069 = vxpose.xlu0.b32.cont [2/16] %v4037, 128
      %4070 = vxpose.xlu0.b32.cont [3/16] %v4038, 128
      %4071 = vxpose.xlu0.b32.cont [4/16] %v4039, 128
      %4072 = vxpose.xlu0.b32.cont [5/16] %v4040, 128
      %4073 = vxpose.xlu0.b32.cont [6/16] %v4041, 128
      %4074 = vxpose.xlu0.b32.cont [7/16] %v4042, 128
      %4075 = vxpose.xlu0.b32.cont [8/16] %v4043, 128
      %4076 = vxpose.xlu0.b32.cont [9/16] %v4044, 128
      %4077 = vxpose.xlu0.b32.cont [10/16] %v4045, 128
      %4078 = vxpose.xlu0.b32.cont [11/16] %v4046, 128
      %4079 = vxpose.xlu0.b32.cont [12/16] %v4047, 128
      %4080 = vxpose.xlu0.b32.cont [13/16] %v4048, 128
      %4081 = vxpose.xlu0.b32.cont [14/16] %v4049, 128
      %4082 = vxpose.xlu0.b32.cont [15/16] %v4050, 128
      %4083 = vxpose.xlu0.b32.end [16/16] %v4051, 128
      %v4084 = vpop.trf.xlu0
      %v4085 = vpop.trf.xlu0
      %v4086 = vpop.trf.xlu0
      %v4087 = vpop.trf.xlu0
      %v4088 = vpop.trf.xlu0
      %v4089 = vpop.trf.xlu0
      %v4090 = vpop.trf.xlu0
      %v4091 = vpop.trf.xlu0
      %v4092 = vpop.trf.xlu0
      %v4093 = vpop.trf.xlu0
      %v4094 = vpop.trf.xlu0
      %v4095 = vpop.trf.xlu0
      %v4096 = vpop.trf.xlu0
      %v4097 = vpop.trf.xlu0
      %v4098 = vpop.trf.xlu0
      %v4099 = vpop.trf.xlu0
      %4100 = vxpose.xlu0.b32.start [1/16] %v4052, 128
      %4101 = vxpose.xlu0.b32.cont [2/16] %v4053, 128
      %4102 = vxpose.xlu0.b32.cont [3/16] %v4054, 128
      %4103 = vxpose.xlu0.b32.cont [4/16] %v4055, 128
      %4104 = vxpose.xlu0.b32.cont [5/16] %v4056, 128
      %4105 = vxpose.xlu0.b32.cont [6/16] %v4057, 128
      %4106 = vxpose.xlu0.b32.cont [7/16] %v4058, 128
      %4107 = vxpose.xlu0.b32.cont [8/16] %v4059, 128
      %4108 = vxpose.xlu0.b32.cont [9/16] %v4060, 128
      %4109 = vxpose.xlu0.b32.cont [10/16] %v4061, 128
      %4110 = vxpose.xlu0.b32.cont [11/16] %v4062, 128
      %4111 = vxpose.xlu0.b32.cont [12/16] %v4063, 128
      %4112 = vxpose.xlu0.b32.cont [13/16] %v4064, 128
      %4113 = vxpose.xlu0.b32.cont [14/16] %v4065, 128
      %4114 = vxpose.xlu0.b32.cont [15/16] %v4066, 128
      %4115 = vxpose.xlu0.b32.end [16/16] %v4067, 128
      %v4116 = vpop.trf.xlu0
      %v4117 = vpop.trf.xlu0
      %v4118 = vpop.trf.xlu0
      %v4119 = vpop.trf.xlu0
      %v4120 = vpop.trf.xlu0
      %v4121 = vpop.trf.xlu0
      %v4122 = vpop.trf.xlu0
      %v4123 = vpop.trf.xlu0
      %v4124 = vpop.trf.xlu0
      %v4125 = vpop.trf.xlu0
      %v4126 = vpop.trf.xlu0
      %v4127 = vpop.trf.xlu0
      %v4128 = vpop.trf.xlu0
      %v4129 = vpop.trf.xlu0
      %v4130 = vpop.trf.xlu0
      %v4131 = vpop.trf.xlu0
      %4132 = vst [vmem:[%s381] sm:$0xff] %v4084
      %4133 = vst [vmem:[%s381 + $0x8] sm:$0xff] %v4116
      %4134 = vst [vmem:[%s381 + $0x10] sm:$0xff] %v4085
      %4135 = vst [vmem:[%s381 + $0x18] sm:$0xff] %v4117
      %4136 = vst [vmem:[%s381 + $0x20] sm:$0xff] %v4086
      %4137 = vst [vmem:[%s381 + $0x28] sm:$0xff] %v4118
      %4138 = vst [vmem:[%s381 + $0x30] sm:$0xff] %v4087
      %4139 = vst [vmem:[%s381 + $0x38] sm:$0xff] %v4119
      %4140 = vst [vmem:[%s381 + $0x40] sm:$0xff] %v4088
      %4141 = vst [vmem:[%s381 + $0x48] sm:$0xff] %v4120
      %4142 = vst [vmem:[%s381 + $0x50] sm:$0xff] %v4089
      %4143 = vst [vmem:[%s381 + $0x58] sm:$0xff] %v4121
      %4144 = vst [vmem:[%s381 + $0x60] sm:$0xff] %v4090
      %4145 = vst [vmem:[%s381 + $0x68] sm:$0xff] %v4122
      %4146 = vst [vmem:[%s381 + $0x70] sm:$0xff] %v4091
      %4147 = vst [vmem:[%s381 + $0x78] sm:$0xff] %v4123
      %4148 = vst [vmem:[%s381 + $0x80] sm:$0xff] %v4092
      %4149 = vst [vmem:[%s381 + $0x88] sm:$0xff] %v4124
      %4150 = vst [vmem:[%s381 + $0x90] sm:$0xff] %v4093
      %4151 = vst [vmem:[%s381 + $0x98] sm:$0xff] %v4125
      %4152 = vst [vmem:[%s381 + $0xa0] sm:$0xff] %v4094
      %4153 = vst [vmem:[%s381 + $0xa8] sm:$0xff] %v4126
      %4154 = vst [vmem:[%s381 + $0xb0] sm:$0xff] %v4095
      %4155 = vst [vmem:[%s381 + $0xb8] sm:$0xff] %v4127
      %4156 = vst [vmem:[%s381 + $0xc0] sm:$0xff] %v4096
      %4157 = vst [vmem:[%s381 + $0xc8] sm:$0xff] %v4128
      %4158 = vst [vmem:[%s381 + $0xd0] sm:$0xff] %v4097
      %4159 = vst [vmem:[%s381 + $0xd8] sm:$0xff] %v4129
      %4160 = vst [vmem:[%s381 + $0xe0] sm:$0xff] %v4098
      %4161 = vst [vmem:[%s381 + $0xe8] sm:$0xff] %v4130
      %4162 = vst [vmem:[%s381 + $0xf0] sm:$0xff] %v4099
      %4163 = vst [vmem:[%s381 + $0xf8] sm:$0xff] %v4131
      %s4164 = smul.u32 2, %s26
      %p4165 = scmp.lt.s32.totalorder %s25, 1
      %s4166 = scalar_select %p4165, %s25, 1
      %p4167 = scmp.lt.s32.totalorder %s4164, 1
      %s4168 = scalar_select %p4167, %s4164, 1
      %s4169 = smul.addr %s4166, 32
      %s4170 = sadd.s32 %s4168, %s4169
      %s4171 = smul.addr %s4170, 8
      %s4172 = scalar_lea.vmem %s10, %s4171
      // Predicated region
      $region65: #{attn_block.1} parent=59 // pred_check
        %p4173 = pneg %p268
      $region66: #{attn_block.1} parent=59 // pred_check_branch
        %4175 = sbr.rel (%p4173) target = $region68
      $region67: #{attn_block.1} parent=59 // pred_region
        %s4176 = smul.u32 2, %s26
      $region68: #{attn_block.1} parent=59 // pred_fallthru
        _
    $region60: #{attn_block.1} parent=5 // pred_fallthru
      _
    %p4177 = scmp.le.s32.totalorder 2, %s16
    // Predicated region
    $region69: #{attn_block.1} parent=5 // pred_check
      %p4178 = pneg %p4177
    $region70: #{attn_block.1} parent=5 // pred_check_branch
      %4180 = sbr.rel (%p4178) target = $region72
    $region71: #{attn_block.1} parent=5 // pred_region
      %s4181 = ssub.s32 %s16, 2
      // Predicated region
      $region73: #{attn_block.1} parent=71 // pred_check
        %p4182 = pneg %p274
      $region74: #{attn_block.1} parent=71 // pred_check_branch
        %4184 = sbr.rel (%p4182) target = $region76
      $region75: #{attn_block.1} parent=71 // pred_region
        %s4185 = smul.u32 2, %s28
        %p4186 = scmp.lt.s32.totalorder %s27, 1
        %s4187 = scalar_select %p4186, %s27, 1
        %p4188 = scmp.lt.s32.totalorder %s4185, 1
        %s4189 = scalar_select %p4188, %s4185, 1
        %s4190 = smul.addr %s4187, 32
        %s4191 = sadd.s32 %s4189, %s4190
        %s4192 = smul.addr %s4191, 8
        %s4193 = scalar_lea.vmem %s10, %s4192
      $region76: #{attn_block.1} parent=71 // pred_fallthru
        _
    $region72: #{attn_block.1} parent=5 // pred_fallthru
      _
  $region6: #{attn_block.1} parent=0 // loop_footer
    %s20 = sadd.s32 1, %s16
  $region7: #{attn_block.1} parent=0 // loop_footer_branch
    %15 = sbr.rel target = $region3
  $region8: #{attn_block.1} parent=0 // loop_exit
    _

</llo_original>
